<compile_context>
chip_gen: v7x
topology: tpu7x:2x2x1
jax: 0.10.0
libtpu: 0.0.40
codegen_flags: <defaults>
</compile_context>

<pallas_src>
import jax
import jax.numpy as jnp
from jax.experimental import pallas as pl
from jax.experimental.pallas import tpu as pltpu

BN_EPS = 1e-5
LANE = 128

IN_DIM = 400
LATENT_DIM = 16
ENC_DIMS = [(400, 271), (271, 142), (142, 64), (64, 32)]
DEC_BN_DIMS = [(LATENT_DIM, 32), (32, 64), (64, 142), (142, 271)]
DEC_OUT_DIM = (271, 400)


def _rup(n, m=LANE):
    """Round n up to a multiple of m."""
    return ((n + m - 1) // m) * m


LATENT_PAD = _rup(LATENT_DIM)     # 128
IN_PAD = _rup(IN_DIM)             # 512
OUT_PAD = _rup(DEC_OUT_DIM[1])    # 512
HEADS_PAD = 2 * LATENT_PAD        # 256 (mu || logvar)
VEC_WIDTH = 512                   # widest padded feature dim

# ----------------------------------------------------------------------------
# Static row layout of the packed per-feature vector table.
# Each BN layer owns 3 consecutive rows: [bias, gamma, beta].
# ----------------------------------------------------------------------------
_row = 0
ENC_VEC_ROWS = []                 # [(first_row, padded_width), ...]
for _din, _dout in ENC_DIMS:
    ENC_VEC_ROWS.append((_row, _rup(_dout)))
    _row += 3
HEADS_BIAS_ROW = _row
_row += 1
DEC_VEC_ROWS = []
for _din, _dout in DEC_BN_DIMS:
    DEC_VEC_ROWS.append((_row, _rup(_dout)))
    _row += 3
OUT_BIAS_ROW = _row
_row += 1
VEC_ROWS = _rup(_row, 8)          # pad sublane count to a multiple of 8 (-> 32)


# ----------------------------------------------------------------------------
# Fused kernel
# ----------------------------------------------------------------------------
def _linear_bn_relu(h, w_ref, vecs_ref, row, width):
    """y = relu(batchnorm_train(h @ W + b)); single-pass BN folded to one FMA.

    Exact for zero-padded lanes: padded bias/gamma/beta rows are zero, so the
    padded output lanes stay exactly 0 through BN + ReLU.
    """
    b = vecs_ref[row:row + 1, :width]          # (1, width) f32
    g = vecs_ref[row + 1:row + 2, :width]
    bt = vecs_ref[row + 2:row + 3, :width]

    y = jnp.dot(h.astype(jnp.bfloat16), w_ref[...],
                preferred_element_type=jnp.float32) + b
    mean = jnp.mean(y, axis=0, keepdims=True)
    msq = jnp.mean(y * y, axis=0, keepdims=True)
    var = msq - mean * mean                    # biased batch variance
    scale = g * jax.lax.rsqrt(var + BN_EPS)    # gamma / sqrt(var+eps)
    shift = bt - mean * scale                  # beta - mean*scale
    return jnp.maximum(y * scale + shift, 0.0)


def _vae_kernel(x_ref, eps_ref,
                w_e0, w_e1, w_e2, w_e3,
                w_heads,
                w_d0, w_d1, w_d2, w_d3,
                w_out,
                vecs_ref,
                recon_ref, mu_ref, logvar_ref):
    """Whole VAE forward pass; all refs are full-array VMEM residents."""
    # ---- encoder ----
    h = x_ref[...]
    for w_ref, (row, width) in zip([w_e0, w_e1, w_e2, w_e3], ENC_VEC_ROWS):
        h = _linear_bn_relu(h, w_ref, vecs_ref, row, width)

    # ---- fused mu / log_var heads: one MXU push on the resident h ----
    b_heads = vecs_ref[HEADS_BIAS_ROW:HEADS_BIAS_ROW + 1, :HEADS_PAD]
    heads = jnp.dot(h.astype(jnp.bfloat16), w_heads[...],
                    preferred_element_type=jnp.float32) + b_heads
    mu = heads[:, :LATENT_PAD]
    logvar = heads[:, LATENT_PAD:HEADS_PAD]
    mu_ref[...] = mu
    logvar_ref[...] = logvar

    # ---- reparameterize: z = mu + eps * exp(0.5 * logvar) (EUP) ----
    z = mu + eps_ref[...] * jnp.exp(0.5 * logvar)

    # ---- decoder ----
    h = z
    for w_ref, (row, width) in zip([w_d0, w_d1, w_d2, w_d3], DEC_VEC_ROWS):
        h = _linear_bn_relu(h, w_ref, vecs_ref, row, width)

    # Last decoder layer: plain Linear (no BN / no ReLU), matching the spec.
    b_out = vecs_ref[OUT_BIAS_ROW:OUT_BIAS_ROW + 1, :OUT_PAD]
    recon_ref[...] = jnp.dot(h.astype(jnp.bfloat16), w_out[...],
                             preferred_element_type=jnp.float32) + b_out


# ----------------------------------------------------------------------------
# Parameter construction (deterministic, synthetic, pre-padded to 128 lanes)
# ----------------------------------------------------------------------------
def _pad2(a, rows, cols, dtype):
    out = jnp.zeros((rows, cols), dtype)
    return out.at[: a.shape[0], : a.shape[1]].set(a.astype(dtype))


def _make_linear(key, d_in, d_out):
    kw, kb = jax.random.split(key)
    bound = 1.0 / float(d_in) ** 0.5
    w = jax.random.uniform(kw, (d_in, d_out), jnp.float32, -bound, bound)
    b = jax.random.uniform(kb, (d_out,), jnp.float32, -bound, bound)
    return w, b


def build_params(key, latent_dim):
    """Returns (w_e0..w_e3, w_heads, w_d0..w_d3, w_out, vecs).

    Weights are bf16 and zero-padded to 128-lane multiples; biases / BN gamma /
    BN beta are packed (f32) into one (VEC_ROWS, 512) table.
    """
    keys = jax.random.split(key, len(ENC_DIMS) + 2 + len(DEC_BN_DIMS) + 1)
    ki = iter(keys)

    weights = []
    vecs = jnp.zeros((VEC_ROWS, VEC_WIDTH), jnp.float32)

    def set_row(v, row, vec, lane_off=0):
        return v.at[row, lane_off:lane_off + vec.shape[0]].set(vec)

    # encoder: Linear + BN(+ReLU) x4
    for (d_in, d_out), (row, _w) in zip(ENC_DIMS, ENC_VEC_ROWS):
        w, b = _make_linear(next(ki), d_in, d_out)
        weights.append(_pad2(w, _rup(d_in), _rup(d_out), jnp.bfloat16))
        vecs = set_row(vecs, row, b)                                    # bias
        vecs = set_row(vecs, row + 1, jnp.ones((d_out,), jnp.float32))  # gamma
        # beta row stays zero

    # merged mu / log_var heads: concat along padded output axis
    w_mu, b_mu = _make_linear(next(ki), 32, latent_dim)
    w_lv, b_lv = _make_linear(next(ki), 32, latent_dim)
    pi = _rup(32)
    w_heads = jnp.concatenate(
        [_pad2(w_mu, pi, LATENT_PAD, jnp.bfloat16),
         _pad2(w_lv, pi, LATENT_PAD, jnp.bfloat16)], axis=1)
    weights.append(w_heads)
    vecs = set_row(vecs, HEADS_BIAS_ROW, b_mu, lane_off=0)
    vecs = set_row(vecs, HEADS_BIAS_ROW, b_lv, lane_off=LATENT_PAD)

    # decoder: Linear + BN(+ReLU) x4
    for (d_in, d_out), (row, _w) in zip(DEC_BN_DIMS, DEC_VEC_ROWS):
        w, b = _make_linear(next(ki), d_in, d_out)
        weights.append(_pad2(w, _rup(d_in), _rup(d_out), jnp.bfloat16))
        vecs = set_row(vecs, row, b)
        vecs = set_row(vecs, row + 1, jnp.ones((d_out,), jnp.float32))

    # final decoder Linear (no BN / no activation)
    d_in, d_out = DEC_OUT_DIM
    w, b = _make_linear(next(ki), d_in, d_out)
    weights.append(_pad2(w, _rup(d_in), _rup(d_out), jnp.bfloat16))
    vecs = set_row(vecs, OUT_BIAS_ROW, b)

    return (*weights, vecs)


# ----------------------------------------------------------------------------
# Forward pass (mirrors VariationalAutoencoder.forward) — single pallas_call
# ----------------------------------------------------------------------------
@jax.jit
def vae_forward(params, x, eps):
    *weights, vecs = params
    batch = x.shape[0]
    x_pad = jnp.zeros((batch, IN_PAD), jnp.float32).at[:, :IN_DIM].set(x)
    eps_pad = jnp.zeros((batch, LATENT_PAD), jnp.float32).at[:, :LATENT_DIM].set(eps)

    vmem = pl.BlockSpec(memory_space=pltpu.MemorySpace.VMEM)
    inputs = (x_pad, eps_pad, *weights, vecs)

    # Advisory cost estimate for the XLA scheduler.
    matmul_dims = ([(_rup(di), _rup(do)) for di, do in ENC_DIMS]
                   + [(LATENT_PAD, HEADS_PAD)]
                   + [(_rup(di), _rup(do)) for di, do in DEC_BN_DIMS]
                   + [(_rup(DEC_OUT_DIM[0]), OUT_PAD)])
    flops = 2 * batch * sum(k * n for k, n in matmul_dims)
    transcendentals = (batch * LATENT_PAD                       # exp
                       + sum(_rup(do) for _, do in ENC_DIMS + DEC_BN_DIMS))  # rsqrt
    in_bytes = sum(int(a.size) * a.dtype.itemsize for a in inputs)
    out_bytes = batch * (OUT_PAD + 2 * LATENT_PAD) * 4

    # NOTE(v7x/throughput): at batch=8 a grid / core-split would be pure
    # overhead; for batch >= 128, switch to a leading "parallel" batch grid
    # axis with constant-index weight BlockSpecs (weights DMAed once, resident).
    recon_pad, mu_pad, logvar_pad = pl.pallas_call(
        _vae_kernel,
        out_shape=(
            jax.ShapeDtypeStruct((batch, OUT_PAD), jnp.float32),
            jax.ShapeDtypeStruct((batch, LATENT_PAD), jnp.float32),
            jax.ShapeDtypeStruct((batch, LATENT_PAD), jnp.float32),
        ),
        in_specs=[vmem] * len(inputs),
        out_specs=(vmem, vmem, vmem),
        cost_estimate=pl.CostEstimate(flops=flops,
                                      transcendentals=transcendentals,
                                      bytes_accessed=in_bytes + out_bytes),
    )(*inputs)

    return (recon_pad[:, :DEC_OUT_DIM[1]],
            mu_pad[:, :LATENT_DIM],
            logvar_pad[:, :LATENT_DIM])


# ----------------------------------------------------------------------------
if __name__ == "__main__":
    BATCH = 8  # BatchNorm1d (training mode) needs batch > 1

    root = jax.random.PRNGKey(0)
    k_params, k_x, k_eps = jax.random.split(root, 3)

    params = build_params(k_params, LATENT_DIM)
    x = jax.random.normal(k_x, (BATCH, IN_DIM), jnp.float32)
    # eps ~ N(0,1): plays the role of torch.randn_like(std), sampled in glue code.
    eps = jax.random.normal(k_eps, (BATCH, LATENT_DIM), jnp.float32)

    recon_x, mu, logvar = vae_forward(params, x, eps)
    jax.block_until_ready((recon_x, mu, logvar))

    assert recon_x.shape == (BATCH, IN_DIM)
    assert mu.shape == (BATCH, LATENT_DIM)
    assert logvar.shape == (BATCH, LATENT_DIM)
    assert bool(jnp.all(jnp.isfinite(recon_x)))
    assert bool(jnp.all(jnp.isfinite(mu)))
    assert bool(jnp.all(jnp.isfinite(logvar)))
    print("KERNEL_OK")
</pallas_src>

<mosaic_0001>
module attributes {stable_mosaic.version = 11 : i64} {
  func.func @_vae_kernel(%arg0: memref<8x512xf32, #tpu.memory_space<vmem>>, %arg1: memref<8x128xf32, #tpu.memory_space<vmem>>, %arg2: memref<512x384xbf16, #tpu.memory_space<vmem>>, %arg3: memref<384x256xbf16, #tpu.memory_space<vmem>>, %arg4: memref<256x128xbf16, #tpu.memory_space<vmem>>, %arg5: memref<128x128xbf16, #tpu.memory_space<vmem>>, %arg6: memref<128x256xbf16, #tpu.memory_space<vmem>>, %arg7: memref<128x128xbf16, #tpu.memory_space<vmem>>, %arg8: memref<128x128xbf16, #tpu.memory_space<vmem>>, %arg9: memref<128x256xbf16, #tpu.memory_space<vmem>>, %arg10: memref<256x384xbf16, #tpu.memory_space<vmem>>, %arg11: memref<384x512xbf16, #tpu.memory_space<vmem>>, %arg12: memref<32x512xf32, #tpu.memory_space<vmem>>, %arg13: memref<8x512xf32, #tpu.memory_space<vmem>>, %arg14: memref<8x128xf32, #tpu.memory_space<vmem>>, %arg15: memref<8x128xf32, #tpu.memory_space<vmem>>) attributes {dimension_semantics = [], scalar_prefetch = 0 : i64, scratch_operands = 0 : i64, tpu.core_type = #tpu.core_type<tc>} {
    %c0 = arith.constant 0 : index
    %c0_0 = arith.constant 0 : index
    %0 = vector.load %arg0[%c0, %c0_0] : memref<8x512xf32, #tpu.memory_space<vmem>>, vector<8x512xf32>
    %c0_1 = arith.constant 0 : index
    %c0_2 = arith.constant 0 : index
    %1 = vector.load %arg12[%c0_1, %c0_2] : memref<32x512xf32, #tpu.memory_space<vmem>>, vector<1x384xf32>
    %c1 = arith.constant 1 : index
    %c0_3 = arith.constant 0 : index
    %2 = vector.load %arg12[%c1, %c0_3] : memref<32x512xf32, #tpu.memory_space<vmem>>, vector<1x384xf32>
    %c2 = arith.constant 2 : index
    %c0_4 = arith.constant 0 : index
    %3 = vector.load %arg12[%c2, %c0_4] : memref<32x512xf32, #tpu.memory_space<vmem>>, vector<1x384xf32>
    %4 = arith.truncf %0 : vector<8x512xf32> to vector<8x512xbf16>
    %c0_5 = arith.constant 0 : index
    %c0_6 = arith.constant 0 : index
    %5 = vector.load %arg2[%c0_5, %c0_6] : memref<512x384xbf16, #tpu.memory_space<vmem>>, vector<512x384xbf16>
    %cst = arith.constant dense<0.000000e+00> : vector<8x384xf32>
    %6 = tpu.matmul %4, %5, %cst {dimension_numbers = #tpu.dot_dimension_numbers<[1], [0], [0], [1], [0, 0, 1, 1], [], []>} : vector<8x512xbf16>, vector<512x384xbf16>, vector<8x384xf32> -> vector<8x384xf32>
    %7 = vector.broadcast %1 : vector<1x384xf32> to vector<8x384xf32>
    %8 = arith.addf %6, %7 : vector<8x384xf32>
    %cst_7 = arith.constant dense<0.000000e+00> : vector<384xf32>
    %9 = vector.multi_reduction <add>, %8, %cst_7 [0] : vector<8x384xf32> to vector<384xf32>
    %10 = vector.shape_cast %9 : vector<384xf32> to vector<1x384xf32>
    %cst_8 = arith.constant 8.000000e+00 : f32
    %11 = vector.broadcast %cst_8 : f32 to vector<1x384xf32>
    %12 = arith.divf %10, %11 : vector<1x384xf32>
    %13 = arith.mulf %8, %8 : vector<8x384xf32>
    %cst_9 = arith.constant dense<0.000000e+00> : vector<384xf32>
    %14 = vector.multi_reduction <add>, %13, %cst_9 [0] : vector<8x384xf32> to vector<384xf32>
    %15 = vector.shape_cast %14 : vector<384xf32> to vector<1x384xf32>
    %cst_10 = arith.constant 8.000000e+00 : f32
    %16 = vector.broadcast %cst_10 : f32 to vector<1x384xf32>
    %17 = arith.divf %15, %16 : vector<1x384xf32>
    %18 = arith.mulf %12, %12 : vector<1x384xf32>
    %19 = arith.subf %17, %18 : vector<1x384xf32>
    %cst_11 = arith.constant 9.99999974E-6 : f32
    %20 = vector.broadcast %cst_11 : f32 to vector<1x384xf32>
    %21 = arith.addf %19, %20 : vector<1x384xf32>
    %22 = math.rsqrt %21 : vector<1x384xf32>
    %23 = arith.mulf %2, %22 : vector<1x384xf32>
    %24 = arith.mulf %12, %23 : vector<1x384xf32>
    %25 = arith.subf %3, %24 : vector<1x384xf32>
    %26 = vector.broadcast %23 : vector<1x384xf32> to vector<8x384xf32>
    %27 = arith.mulf %8, %26 : vector<8x384xf32>
    %28 = vector.broadcast %25 : vector<1x384xf32> to vector<8x384xf32>
    %29 = arith.addf %27, %28 : vector<8x384xf32>
    %cst_12 = arith.constant 0.000000e+00 : f32
    %30 = vector.broadcast %cst_12 : f32 to vector<8x384xf32>
    %31 = arith.maximumf %29, %30 : vector<8x384xf32>
    %c3 = arith.constant 3 : index
    %c0_13 = arith.constant 0 : index
    %32 = vector.load %arg12[%c3, %c0_13] : memref<32x512xf32, #tpu.memory_space<vmem>>, vector<1x256xf32>
    %c4 = arith.constant 4 : index
    %c0_14 = arith.constant 0 : index
    %33 = vector.load %arg12[%c4, %c0_14] : memref<32x512xf32, #tpu.memory_space<vmem>>, vector<1x256xf32>
    %c5 = arith.constant 5 : index
    %c0_15 = arith.constant 0 : index
    %34 = vector.load %arg12[%c5, %c0_15] : memref<32x512xf32, #tpu.memory_space<vmem>>, vector<1x256xf32>
    %35 = arith.truncf %31 : vector<8x384xf32> to vector<8x384xbf16>
    %c0_16 = arith.constant 0 : index
    %c0_17 = arith.constant 0 : index
    %36 = vector.load %arg3[%c0_16, %c0_17] : memref<384x256xbf16, #tpu.memory_space<vmem>>, vector<384x256xbf16>
    %cst_18 = arith.constant dense<0.000000e+00> : vector<8x256xf32>
    %37 = tpu.matmul %35, %36, %cst_18 {dimension_numbers = #tpu.dot_dimension_numbers<[1], [0], [0], [1], [0, 0, 1, 1], [], []>} : vector<8x384xbf16>, vector<384x256xbf16>, vector<8x256xf32> -> vector<8x256xf32>
    %38 = vector.broadcast %32 : vector<1x256xf32> to vector<8x256xf32>
    %39 = arith.addf %37, %38 : vector<8x256xf32>
    %cst_19 = arith.constant dense<0.000000e+00> : vector<256xf32>
    %40 = vector.multi_reduction <add>, %39, %cst_19 [0] : vector<8x256xf32> to vector<256xf32>
    %41 = vector.shape_cast %40 : vector<256xf32> to vector<1x256xf32>
    %cst_20 = arith.constant 8.000000e+00 : f32
    %42 = vector.broadcast %cst_20 : f32 to vector<1x256xf32>
    %43 = arith.divf %41, %42 : vector<1x256xf32>
    %44 = arith.mulf %39, %39 : vector<8x256xf32>
    %cst_21 = arith.constant dense<0.000000e+00> : vector<256xf32>
    %45 = vector.multi_reduction <add>, %44, %cst_21 [0] : vector<8x256xf32> to vector<256xf32>
    %46 = vector.shape_cast %45 : vector<256xf32> to vector<1x256xf32>
    %cst_22 = arith.constant 8.000000e+00 : f32
    %47 = vector.broadcast %cst_22 : f32 to vector<1x256xf32>
    %48 = arith.divf %46, %47 : vector<1x256xf32>
    %49 = arith.mulf %43, %43 : vector<1x256xf32>
    %50 = arith.subf %48, %49 : vector<1x256xf32>
    %cst_23 = arith.constant 9.99999974E-6 : f32
    %51 = vector.broadcast %cst_23 : f32 to vector<1x256xf32>
    %52 = arith.addf %50, %51 : vector<1x256xf32>
    %53 = math.rsqrt %52 : vector<1x256xf32>
    %54 = arith.mulf %33, %53 : vector<1x256xf32>
    %55 = arith.mulf %43, %54 : vector<1x256xf32>
    %56 = arith.subf %34, %55 : vector<1x256xf32>
    %57 = vector.broadcast %54 : vector<1x256xf32> to vector<8x256xf32>
    %58 = arith.mulf %39, %57 : vector<8x256xf32>
    %59 = vector.broadcast %56 : vector<1x256xf32> to vector<8x256xf32>
    %60 = arith.addf %58, %59 : vector<8x256xf32>
    %cst_24 = arith.constant 0.000000e+00 : f32
    %61 = vector.broadcast %cst_24 : f32 to vector<8x256xf32>
    %62 = arith.maximumf %60, %61 : vector<8x256xf32>
    %c6 = arith.constant 6 : index
    %c0_25 = arith.constant 0 : index
    %63 = vector.load %arg12[%c6, %c0_25] : memref<32x512xf32, #tpu.memory_space<vmem>>, vector<1x128xf32>
    %c7 = arith.constant 7 : index
    %c0_26 = arith.constant 0 : index
    %64 = vector.load %arg12[%c7, %c0_26] : memref<32x512xf32, #tpu.memory_space<vmem>>, vector<1x128xf32>
    %c8 = arith.constant 8 : index
    %c0_27 = arith.constant 0 : index
    %65 = vector.load %arg12[%c8, %c0_27] : memref<32x512xf32, #tpu.memory_space<vmem>>, vector<1x128xf32>
    %66 = arith.truncf %62 : vector<8x256xf32> to vector<8x256xbf16>
    %c0_28 = arith.constant 0 : index
    %c0_29 = arith.constant 0 : index
    %67 = vector.load %arg4[%c0_28, %c0_29] : memref<256x128xbf16, #tpu.memory_space<vmem>>, vector<256x128xbf16>
    %cst_30 = arith.constant dense<0.000000e+00> : vector<8x128xf32>
    %68 = tpu.matmul %66, %67, %cst_30 {dimension_numbers = #tpu.dot_dimension_numbers<[1], [0], [0], [1], [0, 0, 1, 1], [], []>} : vector<8x256xbf16>, vector<256x128xbf16>, vector<8x128xf32> -> vector<8x128xf32>
    %69 = vector.broadcast %63 : vector<1x128xf32> to vector<8x128xf32>
    %70 = arith.addf %68, %69 : vector<8x128xf32>
    %cst_31 = arith.constant dense<0.000000e+00> : vector<128xf32>
    %71 = vector.multi_reduction <add>, %70, %cst_31 [0] : vector<8x128xf32> to vector<128xf32>
    %72 = vector.shape_cast %71 : vector<128xf32> to vector<1x128xf32>
    %cst_32 = arith.constant 8.000000e+00 : f32
    %73 = vector.broadcast %cst_32 : f32 to vector<1x128xf32>
    %74 = arith.divf %72, %73 : vector<1x128xf32>
    %75 = arith.mulf %70, %70 : vector<8x128xf32>
    %cst_33 = arith.constant dense<0.000000e+00> : vector<128xf32>
    %76 = vector.multi_reduction <add>, %75, %cst_33 [0] : vector<8x128xf32> to vector<128xf32>
    %77 = vector.shape_cast %76 : vector<128xf32> to vector<1x128xf32>
    %cst_34 = arith.constant 8.000000e+00 : f32
    %78 = vector.broadcast %cst_34 : f32 to vector<1x128xf32>
    %79 = arith.divf %77, %78 : vector<1x128xf32>
    %80 = arith.mulf %74, %74 : vector<1x128xf32>
    %81 = arith.subf %79, %80 : vector<1x128xf32>
    %cst_35 = arith.constant 9.99999974E-6 : f32
    %82 = vector.broadcast %cst_35 : f32 to vector<1x128xf32>
    %83 = arith.addf %81, %82 : vector<1x128xf32>
    %84 = math.rsqrt %83 : vector<1x128xf32>
    %85 = arith.mulf %64, %84 : vector<1x128xf32>
    %86 = arith.mulf %74, %85 : vector<1x128xf32>
    %87 = arith.subf %65, %86 : vector<1x128xf32>
    %88 = vector.broadcast %85 : vector<1x128xf32> to vector<8x128xf32>
    %89 = arith.mulf %70, %88 : vector<8x128xf32>
    %90 = vector.broadcast %87 : vector<1x128xf32> to vector<8x128xf32>
    %91 = arith.addf %89, %90 : vector<8x128xf32>
    %cst_36 = arith.constant 0.000000e+00 : f32
    %92 = vector.broadcast %cst_36 : f32 to vector<8x128xf32>
    %93 = arith.maximumf %91, %92 : vector<8x128xf32>
    %c9 = arith.constant 9 : index
    %c0_37 = arith.constant 0 : index
    %94 = vector.load %arg12[%c9, %c0_37] : memref<32x512xf32, #tpu.memory_space<vmem>>, vector<1x128xf32>
    %c10 = arith.constant 10 : index
    %c0_38 = arith.constant 0 : index
    %95 = vector.load %arg12[%c10, %c0_38] : memref<32x512xf32, #tpu.memory_space<vmem>>, vector<1x128xf32>
    %c11 = arith.constant 11 : index
    %c0_39 = arith.constant 0 : index
    %96 = vector.load %arg12[%c11, %c0_39] : memref<32x512xf32, #tpu.memory_space<vmem>>, vector<1x128xf32>
    %97 = arith.truncf %93 : vector<8x128xf32> to vector<8x128xbf16>
    %c0_40 = arith.constant 0 : index
    %c0_41 = arith.constant 0 : index
    %98 = vector.load %arg5[%c0_40, %c0_41] : memref<128x128xbf16, #tpu.memory_space<vmem>>, vector<128x128xbf16>
    %cst_42 = arith.constant dense<0.000000e+00> : vector<8x128xf32>
    %99 = tpu.matmul %97, %98, %cst_42 {dimension_numbers = #tpu.dot_dimension_numbers<[1], [0], [0], [1], [0, 0, 1, 1], [], []>} : vector<8x128xbf16>, vector<128x128xbf16>, vector<8x128xf32> -> vector<8x128xf32>
    %100 = vector.broadcast %94 : vector<1x128xf32> to vector<8x128xf32>
    %101 = arith.addf %99, %100 : vector<8x128xf32>
    %cst_43 = arith.constant dense<0.000000e+00> : vector<128xf32>
    %102 = vector.multi_reduction <add>, %101, %cst_43 [0] : vector<8x128xf32> to vector<128xf32>
    %103 = vector.shape_cast %102 : vector<128xf32> to vector<1x128xf32>
    %cst_44 = arith.constant 8.000000e+00 : f32
    %104 = vector.broadcast %cst_44 : f32 to vector<1x128xf32>
    %105 = arith.divf %103, %104 : vector<1x128xf32>
    %106 = arith.mulf %101, %101 : vector<8x128xf32>
    %cst_45 = arith.constant dense<0.000000e+00> : vector<128xf32>
    %107 = vector.multi_reduction <add>, %106, %cst_45 [0] : vector<8x128xf32> to vector<128xf32>
    %108 = vector.shape_cast %107 : vector<128xf32> to vector<1x128xf32>
    %cst_46 = arith.constant 8.000000e+00 : f32
    %109 = vector.broadcast %cst_46 : f32 to vector<1x128xf32>
    %110 = arith.divf %108, %109 : vector<1x128xf32>
    %111 = arith.mulf %105, %105 : vector<1x128xf32>
    %112 = arith.subf %110, %111 : vector<1x128xf32>
    %cst_47 = arith.constant 9.99999974E-6 : f32
    %113 = vector.broadcast %cst_47 : f32 to vector<1x128xf32>
    %114 = arith.addf %112, %113 : vector<1x128xf32>
    %115 = math.rsqrt %114 : vector<1x128xf32>
    %116 = arith.mulf %95, %115 : vector<1x128xf32>
    %117 = arith.mulf %105, %116 : vector<1x128xf32>
    %118 = arith.subf %96, %117 : vector<1x128xf32>
    %119 = vector.broadcast %116 : vector<1x128xf32> to vector<8x128xf32>
    %120 = arith.mulf %101, %119 : vector<8x128xf32>
    %121 = vector.broadcast %118 : vector<1x128xf32> to vector<8x128xf32>
    %122 = arith.addf %120, %121 : vector<8x128xf32>
    %cst_48 = arith.constant 0.000000e+00 : f32
    %123 = vector.broadcast %cst_48 : f32 to vector<8x128xf32>
    %124 = arith.maximumf %122, %123 : vector<8x128xf32>
    %c12 = arith.constant 12 : index
    %c0_49 = arith.constant 0 : index
    %125 = vector.load %arg12[%c12, %c0_49] : memref<32x512xf32, #tpu.memory_space<vmem>>, vector<1x256xf32>
    %126 = arith.truncf %124 : vector<8x128xf32> to vector<8x128xbf16>
    %c0_50 = arith.constant 0 : index
    %c0_51 = arith.constant 0 : index
    %127 = vector.load %arg6[%c0_50, %c0_51] : memref<128x256xbf16, #tpu.memory_space<vmem>>, vector<128x256xbf16>
    %cst_52 = arith.constant dense<0.000000e+00> : vector<8x256xf32>
    %128 = tpu.matmul %126, %127, %cst_52 {dimension_numbers = #tpu.dot_dimension_numbers<[1], [0], [0], [1], [0, 0, 1, 1], [], []>} : vector<8x128xbf16>, vector<128x256xbf16>, vector<8x256xf32> -> vector<8x256xf32>
    %129 = vector.broadcast %125 : vector<1x256xf32> to vector<8x256xf32>
    %130 = arith.addf %128, %129 : vector<8x256xf32>
    %131 = vector.extract_strided_slice %130 {offsets = [0, 0], sizes = [8, 128], strides = [1, 1]} : vector<8x256xf32> to vector<8x128xf32>
    %132 = vector.extract_strided_slice %130 {offsets = [0, 128], sizes = [8, 128], strides = [1, 1]} : vector<8x256xf32> to vector<8x128xf32>
    %c0_53 = arith.constant 0 : index
    %c0_54 = arith.constant 0 : index
    %133 = vector.load %arg14[%c0_53, %c0_54] : memref<8x128xf32, #tpu.memory_space<vmem>>, vector<8x128xf32>
    tpu.vector_store %arg14[%c0_53, %c0_54], %131 {strides = array<i32>} : memref<8x128xf32, #tpu.memory_space<vmem>>, vector<8x128xf32>,
    %c0_55 = arith.constant 0 : index
    %c0_56 = arith.constant 0 : index
    %134 = vector.load %arg15[%c0_55, %c0_56] : memref<8x128xf32, #tpu.memory_space<vmem>>, vector<8x128xf32>
    tpu.vector_store %arg15[%c0_55, %c0_56], %132 {strides = array<i32>} : memref<8x128xf32, #tpu.memory_space<vmem>>, vector<8x128xf32>,
    %c0_57 = arith.constant 0 : index
    %c0_58 = arith.constant 0 : index
    %135 = vector.load %arg1[%c0_57, %c0_58] : memref<8x128xf32, #tpu.memory_space<vmem>>, vector<8x128xf32>
    %cst_59 = arith.constant 5.000000e-01 : f32
    %136 = vector.broadcast %cst_59 : f32 to vector<8x128xf32>
    %137 = arith.mulf %136, %132 : vector<8x128xf32>
    %138 = math.exp %137 : vector<8x128xf32>
    %139 = arith.mulf %135, %138 : vector<8x128xf32>
    %140 = arith.addf %131, %139 : vector<8x128xf32>
    %c13 = arith.constant 13 : index
    %c0_60 = arith.constant 0 : index
    %141 = vector.load %arg12[%c13, %c0_60] : memref<32x512xf32, #tpu.memory_space<vmem>>, vector<1x128xf32>
    %c14 = arith.constant 14 : index
    %c0_61 = arith.constant 0 : index
    %142 = vector.load %arg12[%c14, %c0_61] : memref<32x512xf32, #tpu.memory_space<vmem>>, vector<1x128xf32>
    %c15 = arith.constant 15 : index
    %c0_62 = arith.constant 0 : index
    %143 = vector.load %arg12[%c15, %c0_62] : memref<32x512xf32, #tpu.memory_space<vmem>>, vector<1x128xf32>
    %144 = arith.truncf %140 : vector<8x128xf32> to vector<8x128xbf16>
    %c0_63 = arith.constant 0 : index
    %c0_64 = arith.constant 0 : index
    %145 = vector.load %arg7[%c0_63, %c0_64] : memref<128x128xbf16, #tpu.memory_space<vmem>>, vector<128x128xbf16>
    %cst_65 = arith.constant dense<0.000000e+00> : vector<8x128xf32>
    %146 = tpu.matmul %144, %145, %cst_65 {dimension_numbers = #tpu.dot_dimension_numbers<[1], [0], [0], [1], [0, 0, 1, 1], [], []>} : vector<8x128xbf16>, vector<128x128xbf16>, vector<8x128xf32> -> vector<8x128xf32>
    %147 = vector.broadcast %141 : vector<1x128xf32> to vector<8x128xf32>
    %148 = arith.addf %146, %147 : vector<8x128xf32>
    %cst_66 = arith.constant dense<0.000000e+00> : vector<128xf32>
    %149 = vector.multi_reduction <add>, %148, %cst_66 [0] : vector<8x128xf32> to vector<128xf32>
    %150 = vector.shape_cast %149 : vector<128xf32> to vector<1x128xf32>
    %cst_67 = arith.constant 8.000000e+00 : f32
    %151 = vector.broadcast %cst_67 : f32 to vector<1x128xf32>
    %152 = arith.divf %150, %151 : vector<1x128xf32>
    %153 = arith.mulf %148, %148 : vector<8x128xf32>
    %cst_68 = arith.constant dense<0.000000e+00> : vector<128xf32>
    %154 = vector.multi_reduction <add>, %153, %cst_68 [0] : vector<8x128xf32> to vector<128xf32>
    %155 = vector.shape_cast %154 : vector<128xf32> to vector<1x128xf32>
    %cst_69 = arith.constant 8.000000e+00 : f32
    %156 = vector.broadcast %cst_69 : f32 to vector<1x128xf32>
    %157 = arith.divf %155, %156 : vector<1x128xf32>
    %158 = arith.mulf %152, %152 : vector<1x128xf32>
    %159 = arith.subf %157, %158 : vector<1x128xf32>
    %cst_70 = arith.constant 9.99999974E-6 : f32
    %160 = vector.broadcast %cst_70 : f32 to vector<1x128xf32>
    %161 = arith.addf %159, %160 : vector<1x128xf32>
    %162 = math.rsqrt %161 : vector<1x128xf32>
    %163 = arith.mulf %142, %162 : vector<1x128xf32>
    %164 = arith.mulf %152, %163 : vector<1x128xf32>
    %165 = arith.subf %143, %164 : vector<1x128xf32>
    %166 = vector.broadcast %163 : vector<1x128xf32> to vector<8x128xf32>
    %167 = arith.mulf %148, %166 : vector<8x128xf32>
    %168 = vector.broadcast %165 : vector<1x128xf32> to vector<8x128xf32>
    %169 = arith.addf %167, %168 : vector<8x128xf32>
    %cst_71 = arith.constant 0.000000e+00 : f32
    %170 = vector.broadcast %cst_71 : f32 to vector<8x128xf32>
    %171 = arith.maximumf %169, %170 : vector<8x128xf32>
    %c16 = arith.constant 16 : index
    %c0_72 = arith.constant 0 : index
    %172 = vector.load %arg12[%c16, %c0_72] : memref<32x512xf32, #tpu.memory_space<vmem>>, vector<1x128xf32>
    %c17 = arith.constant 17 : index
    %c0_73 = arith.constant 0 : index
    %173 = vector.load %arg12[%c17, %c0_73] : memref<32x512xf32, #tpu.memory_space<vmem>>, vector<1x128xf32>
    %c18 = arith.constant 18 : index
    %c0_74 = arith.constant 0 : index
    %174 = vector.load %arg12[%c18, %c0_74] : memref<32x512xf32, #tpu.memory_space<vmem>>, vector<1x128xf32>
    %175 = arith.truncf %171 : vector<8x128xf32> to vector<8x128xbf16>
    %c0_75 = arith.constant 0 : index
    %c0_76 = arith.constant 0 : index
    %176 = vector.load %arg8[%c0_75, %c0_76] : memref<128x128xbf16, #tpu.memory_space<vmem>>, vector<128x128xbf16>
    %cst_77 = arith.constant dense<0.000000e+00> : vector<8x128xf32>
    %177 = tpu.matmul %175, %176, %cst_77 {dimension_numbers = #tpu.dot_dimension_numbers<[1], [0], [0], [1], [0, 0, 1, 1], [], []>} : vector<8x128xbf16>, vector<128x128xbf16>, vector<8x128xf32> -> vector<8x128xf32>
    %178 = vector.broadcast %172 : vector<1x128xf32> to vector<8x128xf32>
    %179 = arith.addf %177, %178 : vector<8x128xf32>
    %cst_78 = arith.constant dense<0.000000e+00> : vector<128xf32>
    %180 = vector.multi_reduction <add>, %179, %cst_78 [0] : vector<8x128xf32> to vector<128xf32>
    %181 = vector.shape_cast %180 : vector<128xf32> to vector<1x128xf32>
    %cst_79 = arith.constant 8.000000e+00 : f32
    %182 = vector.broadcast %cst_79 : f32 to vector<1x128xf32>
    %183 = arith.divf %181, %182 : vector<1x128xf32>
    %184 = arith.mulf %179, %179 : vector<8x128xf32>
    %cst_80 = arith.constant dense<0.000000e+00> : vector<128xf32>
    %185 = vector.multi_reduction <add>, %184, %cst_80 [0] : vector<8x128xf32> to vector<128xf32>
    %186 = vector.shape_cast %185 : vector<128xf32> to vector<1x128xf32>
    %cst_81 = arith.constant 8.000000e+00 : f32
    %187 = vector.broadcast %cst_81 : f32 to vector<1x128xf32>
    %188 = arith.divf %186, %187 : vector<1x128xf32>
    %189 = arith.mulf %183, %183 : vector<1x128xf32>
    %190 = arith.subf %188, %189 : vector<1x128xf32>
    %cst_82 = arith.constant 9.99999974E-6 : f32
    %191 = vector.broadcast %cst_82 : f32 to vector<1x128xf32>
    %192 = arith.addf %190, %191 : vector<1x128xf32>
    %193 = math.rsqrt %192 : vector<1x128xf32>
    %194 = arith.mulf %173, %193 : vector<1x128xf32>
    %195 = arith.mulf %183, %194 : vector<1x128xf32>
    %196 = arith.subf %174, %195 : vector<1x128xf32>
    %197 = vector.broadcast %194 : vector<1x128xf32> to vector<8x128xf32>
    %198 = arith.mulf %179, %197 : vector<8x128xf32>
    %199 = vector.broadcast %196 : vector<1x128xf32> to vector<8x128xf32>
    %200 = arith.addf %198, %199 : vector<8x128xf32>
    %cst_83 = arith.constant 0.000000e+00 : f32
    %201 = vector.broadcast %cst_83 : f32 to vector<8x128xf32>
    %202 = arith.maximumf %200, %201 : vector<8x128xf32>
    %c19 = arith.constant 19 : index
    %c0_84 = arith.constant 0 : index
    %203 = vector.load %arg12[%c19, %c0_84] : memref<32x512xf32, #tpu.memory_space<vmem>>, vector<1x256xf32>
    %c20 = arith.constant 20 : index
    %c0_85 = arith.constant 0 : index
    %204 = vector.load %arg12[%c20, %c0_85] : memref<32x512xf32, #tpu.memory_space<vmem>>, vector<1x256xf32>
    %c21 = arith.constant 21 : index
    %c0_86 = arith.constant 0 : index
    %205 = vector.load %arg12[%c21, %c0_86] : memref<32x512xf32, #tpu.memory_space<vmem>>, vector<1x256xf32>
    %206 = arith.truncf %202 : vector<8x128xf32> to vector<8x128xbf16>
    %c0_87 = arith.constant 0 : index
    %c0_88 = arith.constant 0 : index
    %207 = vector.load %arg9[%c0_87, %c0_88] : memref<128x256xbf16, #tpu.memory_space<vmem>>, vector<128x256xbf16>
    %cst_89 = arith.constant dense<0.000000e+00> : vector<8x256xf32>
    %208 = tpu.matmul %206, %207, %cst_89 {dimension_numbers = #tpu.dot_dimension_numbers<[1], [0], [0], [1], [0, 0, 1, 1], [], []>} : vector<8x128xbf16>, vector<128x256xbf16>, vector<8x256xf32> -> vector<8x256xf32>
    %209 = vector.broadcast %203 : vector<1x256xf32> to vector<8x256xf32>
    %210 = arith.addf %208, %209 : vector<8x256xf32>
    %cst_90 = arith.constant dense<0.000000e+00> : vector<256xf32>
    %211 = vector.multi_reduction <add>, %210, %cst_90 [0] : vector<8x256xf32> to vector<256xf32>
    %212 = vector.shape_cast %211 : vector<256xf32> to vector<1x256xf32>
    %cst_91 = arith.constant 8.000000e+00 : f32
    %213 = vector.broadcast %cst_91 : f32 to vector<1x256xf32>
    %214 = arith.divf %212, %213 : vector<1x256xf32>
    %215 = arith.mulf %210, %210 : vector<8x256xf32>
    %cst_92 = arith.constant dense<0.000000e+00> : vector<256xf32>
    %216 = vector.multi_reduction <add>, %215, %cst_92 [0] : vector<8x256xf32> to vector<256xf32>
    %217 = vector.shape_cast %216 : vector<256xf32> to vector<1x256xf32>
    %cst_93 = arith.constant 8.000000e+00 : f32
    %218 = vector.broadcast %cst_93 : f32 to vector<1x256xf32>
    %219 = arith.divf %217, %218 : vector<1x256xf32>
    %220 = arith.mulf %214, %214 : vector<1x256xf32>
    %221 = arith.subf %219, %220 : vector<1x256xf32>
    %cst_94 = arith.constant 9.99999974E-6 : f32
    %222 = vector.broadcast %cst_94 : f32 to vector<1x256xf32>
    %223 = arith.addf %221, %222 : vector<1x256xf32>
    %224 = math.rsqrt %223 : vector<1x256xf32>
    %225 = arith.mulf %204, %224 : vector<1x256xf32>
    %226 = arith.mulf %214, %225 : vector<1x256xf32>
    %227 = arith.subf %205, %226 : vector<1x256xf32>
    %228 = vector.broadcast %225 : vector<1x256xf32> to vector<8x256xf32>
    %229 = arith.mulf %210, %228 : vector<8x256xf32>
    %230 = vector.broadcast %227 : vector<1x256xf32> to vector<8x256xf32>
    %231 = arith.addf %229, %230 : vector<8x256xf32>
    %cst_95 = arith.constant 0.000000e+00 : f32
    %232 = vector.broadcast %cst_95 : f32 to vector<8x256xf32>
    %233 = arith.maximumf %231, %232 : vector<8x256xf32>
    %c22 = arith.constant 22 : index
    %c0_96 = arith.constant 0 : index
    %234 = vector.load %arg12[%c22, %c0_96] : memref<32x512xf32, #tpu.memory_space<vmem>>, vector<1x384xf32>
    %c23 = arith.constant 23 : index
    %c0_97 = arith.constant 0 : index
    %235 = vector.load %arg12[%c23, %c0_97] : memref<32x512xf32, #tpu.memory_space<vmem>>, vector<1x384xf32>
    %c24 = arith.constant 24 : index
    %c0_98 = arith.constant 0 : index
    %236 = vector.load %arg12[%c24, %c0_98] : memref<32x512xf32, #tpu.memory_space<vmem>>, vector<1x384xf32>
    %237 = arith.truncf %233 : vector<8x256xf32> to vector<8x256xbf16>
    %c0_99 = arith.constant 0 : index
    %c0_100 = arith.constant 0 : index
    %238 = vector.load %arg10[%c0_99, %c0_100] : memref<256x384xbf16, #tpu.memory_space<vmem>>, vector<256x384xbf16>
    %cst_101 = arith.constant dense<0.000000e+00> : vector<8x384xf32>
    %239 = tpu.matmul %237, %238, %cst_101 {dimension_numbers = #tpu.dot_dimension_numbers<[1], [0], [0], [1], [0, 0, 1, 1], [], []>} : vector<8x256xbf16>, vector<256x384xbf16>, vector<8x384xf32> -> vector<8x384xf32>
    %240 = vector.broadcast %234 : vector<1x384xf32> to vector<8x384xf32>
    %241 = arith.addf %239, %240 : vector<8x384xf32>
    %cst_102 = arith.constant dense<0.000000e+00> : vector<384xf32>
    %242 = vector.multi_reduction <add>, %241, %cst_102 [0] : vector<8x384xf32> to vector<384xf32>
    %243 = vector.shape_cast %242 : vector<384xf32> to vector<1x384xf32>
    %cst_103 = arith.constant 8.000000e+00 : f32
    %244 = vector.broadcast %cst_103 : f32 to vector<1x384xf32>
    %245 = arith.divf %243, %244 : vector<1x384xf32>
    %246 = arith.mulf %241, %241 : vector<8x384xf32>
    %cst_104 = arith.constant dense<0.000000e+00> : vector<384xf32>
    %247 = vector.multi_reduction <add>, %246, %cst_104 [0] : vector<8x384xf32> to vector<384xf32>
    %248 = vector.shape_cast %247 : vector<384xf32> to vector<1x384xf32>
    %cst_105 = arith.constant 8.000000e+00 : f32
    %249 = vector.broadcast %cst_105 : f32 to vector<1x384xf32>
    %250 = arith.divf %248, %249 : vector<1x384xf32>
    %251 = arith.mulf %245, %245 : vector<1x384xf32>
    %252 = arith.subf %250, %251 : vector<1x384xf32>
    %cst_106 = arith.constant 9.99999974E-6 : f32
    %253 = vector.broadcast %cst_106 : f32 to vector<1x384xf32>
    %254 = arith.addf %252, %253 : vector<1x384xf32>
    %255 = math.rsqrt %254 : vector<1x384xf32>
    %256 = arith.mulf %235, %255 : vector<1x384xf32>
    %257 = arith.mulf %245, %256 : vector<1x384xf32>
    %258 = arith.subf %236, %257 : vector<1x384xf32>
    %259 = vector.broadcast %256 : vector<1x384xf32> to vector<8x384xf32>
    %260 = arith.mulf %241, %259 : vector<8x384xf32>
    %261 = vector.broadcast %258 : vector<1x384xf32> to vector<8x384xf32>
    %262 = arith.addf %260, %261 : vector<8x384xf32>
    %cst_107 = arith.constant 0.000000e+00 : f32
    %263 = vector.broadcast %cst_107 : f32 to vector<8x384xf32>
    %264 = arith.maximumf %262, %263 : vector<8x384xf32>
    %c25 = arith.constant 25 : index
    %c0_108 = arith.constant 0 : index
    %265 = vector.load %arg12[%c25, %c0_108] : memref<32x512xf32, #tpu.memory_space<vmem>>, vector<1x512xf32>
    %266 = arith.truncf %264 : vector<8x384xf32> to vector<8x384xbf16>
    %c0_109 = arith.constant 0 : index
    %c0_110 = arith.constant 0 : index
    %267 = vector.load %arg11[%c0_109, %c0_110] : memref<384x512xbf16, #tpu.memory_space<vmem>>, vector<384x512xbf16>
    %cst_111 = arith.constant dense<0.000000e+00> : vector<8x512xf32>
    %268 = tpu.matmul %266, %267, %cst_111 {dimension_numbers = #tpu.dot_dimension_numbers<[1], [0], [0], [1], [0, 0, 1, 1], [], []>} : vector<8x384xbf16>, vector<384x512xbf16>, vector<8x512xf32> -> vector<8x512xf32>
    %269 = vector.broadcast %265 : vector<1x512xf32> to vector<8x512xf32>
    %270 = arith.addf %268, %269 : vector<8x512xf32>
    %c0_112 = arith.constant 0 : index
    %c0_113 = arith.constant 0 : index
    %271 = vector.load %arg13[%c0_112, %c0_113] : memref<8x512xf32, #tpu.memory_space<vmem>>, vector<8x512xf32>
    tpu.vector_store %arg13[%c0_112, %c0_113], %270 {strides = array<i32>} : memref<8x512xf32, #tpu.memory_space<vmem>>, vector<8x512xf32>,
    return
  }
}

</mosaic_0001>

<llo_original>
// kernel: vae_forward.1
$region0: #{vae_forward.1}
  #allocation0 [shape = 'u32[]', space=smem, size = 0x4, offset = 0x4, fixed_abs, tag = 'smem constant byte address 0x4 - core index']
  #allocation1 [shape = 'u32[144,128]{1,0:T(1,128)}', space=vmem, size = 0x12000, scoped, tag = 'internal scratch']
  %s0 = inlined_call_operand.vmem [shape: f32[8,512], index: 0, kind: input, shape index: {}]
  %s1 = inlined_call_operand.vmem [shape: f32[8,128], index: 1, kind: input, shape index: {}]
  %s2 = inlined_call_operand.hbm [shape: bf16[512,384], index: 2, kind: input, shape index: {}]
  %s3 = inlined_call_operand.hbm [shape: bf16[384,256], index: 3, kind: input, shape index: {}]
  %s4 = inlined_call_operand.vmem [shape: bf16[256,128], index: 4, kind: input, shape index: {}]
  %s5 = inlined_call_operand.hbm [shape: bf16[128,128], index: 5, kind: input, shape index: {}]
  %s6 = inlined_call_operand.hbm [shape: bf16[128,256], index: 6, kind: input, shape index: {}]
  %s7 = inlined_call_operand.hbm [shape: bf16[128,128], index: 7, kind: input, shape index: {}]
  %s8 = inlined_call_operand.hbm [shape: bf16[128,128], index: 8, kind: input, shape index: {}]
  %s9 = inlined_call_operand.hbm [shape: bf16[128,256], index: 9, kind: input, shape index: {}]
  %s10 = inlined_call_operand.hbm [shape: bf16[256,384], index: 10, kind: input, shape index: {}]
  %s11 = inlined_call_operand.hbm [shape: bf16[384,512], index: 11, kind: input, shape index: {}]
  %s12 = inlined_call_operand.hbm [shape: f32[32,512], index: 12, kind: input, shape index: {}]
  %s13 = inlined_call_operand.hbm [shape: f32[8,512], index: 13, kind: output, shape index: {0}]
  %s14 = inlined_call_operand.hbm [shape: f32[8,128], index: 14, kind: output, shape index: {1}]
  %s15 = inlined_call_operand.hbm [shape: f32[8,128], index: 15, kind: output, shape index: {2}]
  %16 = xla_tuple %s13, %s14, %s15
  %s17 = sld [smem:[#allocation0]]
  $region118: #{vae_forward.1} parent=0
    _
  %s19 = ssub.s32 1, %s17
  %s20 = scalar_select 0, %s19, %s17
  $region1: #{vae_forward.1} parent=0
    #allocation2 [shape = 'u8[393216]{0}', space=vmem, size = 0x60000, scoped, tag = 'input window, operand 2, single buffered']
    #allocation3 [shape = 's32[1]{0}', space=sflag, size = 0x4, scoped, tag = 'scoped memory for vae_forward.1']
    #allocation4 [shape = 's32[1]{0}', space=sflag, size = 0x4, scoped, tag = 'scoped memory for vae_forward.1']
    #allocation5 [shape = 'u8[196608]{0}', space=vmem, size = 0x30000, scoped, tag = 'input window, operand 3, single buffered']
    #allocation6 [shape = 's32[1]{0}', space=sflag, size = 0x4, scoped, tag = 'scoped memory for vae_forward.1']
    #allocation7 [shape = 'u8[32768]{0}', space=vmem, size = 0x8000, scoped, tag = 'input window, operand 5, single buffered']
    #allocation8 [shape = 'u8[65536]{0}', space=vmem, size = 0x10000, scoped, tag = 'input window, operand 6, single buffered']
    #allocation9 [shape = 's32[1]{0}', space=sflag, size = 0x4, scoped, tag = 'scoped memory for vae_forward.1']
    #allocation10 [shape = 'u8[32768]{0}', space=vmem, size = 0x8000, scoped, tag = 'input window, operand 7, single buffered']
    #allocation11 [shape = 'u8[32768]{0}', space=vmem, size = 0x8000, scoped, tag = 'input window, operand 8, single buffered']
    #allocation12 [shape = 's32[1]{0}', space=sflag, size = 0x4, scoped, tag = 'scoped memory for vae_forward.1']
    #allocation13 [shape = 'u8[65536]{0}', space=vmem, size = 0x10000, scoped, tag = 'input window, operand 9, single buffered']
    #allocation14 [shape = 'u8[196608]{0}', space=vmem, size = 0x30000, scoped, tag = 'input window, operand 10, single buffered']
    #allocation15 [shape = 's32[1]{0}', space=sflag, size = 0x4, scoped, tag = 'scoped memory for vae_forward.1']
    #allocation16 [shape = 'u8[393216]{0}', space=vmem, size = 0x60000, scoped, tag = 'input window, operand 11, single buffered']
    #allocation17 [shape = 'u8[65536]{0}', space=vmem, size = 0x10000, scoped, tag = 'input window, operand 12, single buffered']
    #allocation18 [shape = 's32[1]{0}', space=sflag, size = 0x4, scoped, tag = 'scoped memory for vae_forward.1']
    #allocation19 [shape = 'u8[16384]{0}', space=vmem, size = 0x4000, scoped, tag = 'output window, operand 0, single buffered']
    #allocation20 [shape = 'u8[4096]{0}', space=vmem, size = 0x1000, scoped, tag = 'output window, operand 1, single buffered']
    #allocation21 [shape = 's32[1]{0}', space=sflag, size = 0x4, scoped, tag = 'scoped memory for vae_forward.1']
    #allocation22 [shape = 'u8[4096]{0}', space=vmem, size = 0x1000, scoped, tag = 'output window, operand 2, single buffered']
    %21 = vsyncpa [#allocation3], 0
    %22 = vsyncpa [#allocation6], 0
    %23 = vsyncpa [#allocation9], 0
    %24 = vsyncpa [#allocation12], 0
    %25 = vsyncpa [#allocation15], 0
    %26 = vsyncpa [#allocation18], 0
    %27 = vsyncpa [#allocation4], 0
    %28 = vsyncpa [#allocation21], 0
    // Predicated region
    $region2: #{vae_forward.1} parent=1 // pred_check
      _
    $region3: #{vae_forward.1} parent=1 // pred_check_branch
      %30 = sbr.rel (0) target = $region5
    $region4: #{vae_forward.1} parent=1 // pred_region
      _
    $region5: #{vae_forward.1} parent=1 // pred_fallthru
      _
    // Predicated region
    $region6: #{vae_forward.1} parent=1 // pred_check
      _
    $region7: #{vae_forward.1} parent=1 // pred_check_branch
      %32 = sbr.rel (0) target = $region9
    $region8: #{vae_forward.1} parent=1 // pred_region
      _
    $region9: #{vae_forward.1} parent=1 // pred_fallthru
      _
    // Predicated region
    $region10: #{vae_forward.1} parent=1 // pred_check
      _
    $region11: #{vae_forward.1} parent=1 // pred_check_branch
      %34 = sbr.rel (0) target = $region13
    $region12: #{vae_forward.1} parent=1 // pred_region
      %s36 = ssub.s32 12288, 12288
      %37 = vsyncadd [#allocation3], %s36
      %s38 = sshll.u32 [#allocation2], 4
      %s39 = int_to_ptr.vmem [resolvable:$true] %s38
      %44 = dma.hbm_to_vmem [thread:$0]  %s2, 12288, %s39, [#allocation3], 192, 192, 12
    $region13: #{vae_forward.1} parent=1 // pred_fallthru
      _
    // Predicated region
    $region14: #{vae_forward.1} parent=1 // pred_check
      _
    $region15: #{vae_forward.1} parent=1 // pred_check_branch
      %46 = sbr.rel (0) target = $region17
    $region16: #{vae_forward.1} parent=1 // pred_region
      %s48 = ssub.s32 6144, 6144
      %49 = vsyncadd [#allocation6], %s48
      %s50 = sshll.u32 [#allocation5], 4
      %s51 = int_to_ptr.vmem [resolvable:$true] %s50
      %56 = dma.hbm_to_vmem [thread:$0]  %s3, 6144, %s51, [#allocation6], 128, 128, 8
    $region17: #{vae_forward.1} parent=1 // pred_fallthru
      _
    // Predicated region
    $region18: #{vae_forward.1} parent=1 // pred_check
      _
    $region19: #{vae_forward.1} parent=1 // pred_check_branch
      %58 = sbr.rel (0) target = $region21
    $region20: #{vae_forward.1} parent=1 // pred_region
      _
    $region21: #{vae_forward.1} parent=1 // pred_fallthru
      _
    // Predicated region
    $region22: #{vae_forward.1} parent=1 // pred_check
      _
    $region23: #{vae_forward.1} parent=1 // pred_check_branch
      %60 = sbr.rel (0) target = $region25
    $region24: #{vae_forward.1} parent=1 // pred_region
      %s62 = ssub.s32 1024, 1024
      %63 = vsyncadd [#allocation6], %s62
      %s64 = sshll.u32 [#allocation7], 4
      %s65 = int_to_ptr.vmem [resolvable:$true] %s64
      %70 = dma.hbm_to_vmem [thread:$0]  %s5, 1024, %s65, [#allocation6], 64, 64, 4
    $region25: #{vae_forward.1} parent=1 // pred_fallthru
      _
    // Predicated region
    $region26: #{vae_forward.1} parent=1 // pred_check
      _
    $region27: #{vae_forward.1} parent=1 // pred_check_branch
      %72 = sbr.rel (0) target = $region29
    $region28: #{vae_forward.1} parent=1 // pred_region
      %s74 = ssub.s32 2048, 2048
      %75 = vsyncadd [#allocation9], %s74
      %s76 = sshll.u32 [#allocation8], 4
      %s77 = int_to_ptr.vmem [resolvable:$true] %s76
      %82 = dma.hbm_to_vmem [thread:$0]  %s6, 2048, %s77, [#allocation9], 128, 128, 8
    $region29: #{vae_forward.1} parent=1 // pred_fallthru
      _
    // Predicated region
    $region30: #{vae_forward.1} parent=1 // pred_check
      _
    $region31: #{vae_forward.1} parent=1 // pred_check_branch
      %84 = sbr.rel (0) target = $region33
    $region32: #{vae_forward.1} parent=1 // pred_region
      %s86 = ssub.s32 1024, 1024
      %87 = vsyncadd [#allocation9], %s86
      %s88 = sshll.u32 [#allocation10], 4
      %s89 = int_to_ptr.vmem [resolvable:$true] %s88
      %94 = dma.hbm_to_vmem [thread:$0]  %s7, 1024, %s89, [#allocation9], 64, 64, 4
    $region33: #{vae_forward.1} parent=1 // pred_fallthru
      _
    // Predicated region
    $region34: #{vae_forward.1} parent=1 // pred_check
      _
    $region35: #{vae_forward.1} parent=1 // pred_check_branch
      %96 = sbr.rel (0) target = $region37
    $region36: #{vae_forward.1} parent=1 // pred_region
      %s98 = ssub.s32 1024, 1024
      %99 = vsyncadd [#allocation12], %s98
      %s100 = sshll.u32 [#allocation11], 4
      %s101 = int_to_ptr.vmem [resolvable:$true] %s100
      %106 = dma.hbm_to_vmem [thread:$0]  %s8, 1024, %s101, [#allocation12], 64, 64, 4
    $region37: #{vae_forward.1} parent=1 // pred_fallthru
      _
    // Predicated region
    $region38: #{vae_forward.1} parent=1 // pred_check
      _
    $region39: #{vae_forward.1} parent=1 // pred_check_branch
      %108 = sbr.rel (0) target = $region41
    $region40: #{vae_forward.1} parent=1 // pred_region
      %s110 = ssub.s32 2048, 2048
      %111 = vsyncadd [#allocation12], %s110
      %s112 = sshll.u32 [#allocation13], 4
      %s113 = int_to_ptr.vmem [resolvable:$true] %s112
      %118 = dma.hbm_to_vmem [thread:$0]  %s9, 2048, %s113, [#allocation12], 128, 128, 8
    $region41: #{vae_forward.1} parent=1 // pred_fallthru
      _
    // Predicated region
    $region42: #{vae_forward.1} parent=1 // pred_check
      _
    $region43: #{vae_forward.1} parent=1 // pred_check_branch
      %120 = sbr.rel (0) target = $region45
    $region44: #{vae_forward.1} parent=1 // pred_region
      %s122 = ssub.s32 6144, 6144
      %123 = vsyncadd [#allocation15], %s122
      %s124 = sshll.u32 [#allocation14], 4
      %s125 = int_to_ptr.vmem [resolvable:$true] %s124
      %130 = dma.hbm_to_vmem [thread:$0]  %s10, 6144, %s125, [#allocation15], 192, 192, 12
    $region45: #{vae_forward.1} parent=1 // pred_fallthru
      _
    // Predicated region
    $region46: #{vae_forward.1} parent=1 // pred_check
      _
    $region47: #{vae_forward.1} parent=1 // pred_check_branch
      %132 = sbr.rel (0) target = $region49
    $region48: #{vae_forward.1} parent=1 // pred_region
      %s134 = ssub.s32 12288, 12288
      %135 = vsyncadd [#allocation15], %s134
      %s136 = sshll.u32 [#allocation16], 4
      %s137 = int_to_ptr.vmem [resolvable:$true] %s136
      %142 = dma.hbm_to_vmem [thread:$0]  %s11, 12288, %s137, [#allocation15], 256, 256, 16
    $region49: #{vae_forward.1} parent=1 // pred_fallthru
      _
    // Predicated region
    $region50: #{vae_forward.1} parent=1 // pred_check
      _
    $region51: #{vae_forward.1} parent=1 // pred_check_branch
      %144 = sbr.rel (0) target = $region53
    $region52: #{vae_forward.1} parent=1 // pred_region
      %s146 = ssub.s32 2048, 2048
      %147 = vsyncadd [#allocation18], %s146
      %s148 = sshll.u32 [#allocation17], 4
      %s149 = int_to_ptr.vmem [resolvable:$true] %s148
      %154 = dma.hbm_to_vmem [thread:$0]  %s12, 2048, %s149, [#allocation18], 512, 512, 32
    $region53: #{vae_forward.1} parent=1 // pred_fallthru
      _
    // Predicated region
    $region54: #{vae_forward.1} parent=1 // pred_check
      _
    $region55: #{vae_forward.1} parent=1 // pred_check_branch
      %156 = sbr.rel (0) target = $region57
    $region56: #{vae_forward.1} parent=1 // pred_region
      %157 = dma.done [#allocation3], 12288
    $region57: #{vae_forward.1} parent=1 // pred_fallthru
      _
    // Predicated region
    $region58: #{vae_forward.1} parent=1 // pred_check
      _
    $region59: #{vae_forward.1} parent=1 // pred_check_branch
      %159 = sbr.rel (0) target = $region61
    $region60: #{vae_forward.1} parent=1 // pred_region
      %160 = dma.done [#allocation6], 6144
    $region61: #{vae_forward.1} parent=1 // pred_fallthru
      _
    // Predicated region
    $region62: #{vae_forward.1} parent=1 // pred_check
      _
    $region63: #{vae_forward.1} parent=1 // pred_check_branch
      %162 = sbr.rel (0) target = $region65
    $region64: #{vae_forward.1} parent=1 // pred_region
      %163 = dma.done [#allocation6], 1024
    $region65: #{vae_forward.1} parent=1 // pred_fallthru
      _
    // Predicated region
    $region66: #{vae_forward.1} parent=1 // pred_check
      _
    $region67: #{vae_forward.1} parent=1 // pred_check_branch
      %165 = sbr.rel (0) target = $region69
    $region68: #{vae_forward.1} parent=1 // pred_region
      %166 = dma.done [#allocation9], 2048
    $region69: #{vae_forward.1} parent=1 // pred_fallthru
      _
    // Predicated region
    $region70: #{vae_forward.1} parent=1 // pred_check
      _
    $region71: #{vae_forward.1} parent=1 // pred_check_branch
      %168 = sbr.rel (0) target = $region73
    $region72: #{vae_forward.1} parent=1 // pred_region
      %169 = dma.done [#allocation9], 1024
    $region73: #{vae_forward.1} parent=1 // pred_fallthru
      _
    // Predicated region
    $region74: #{vae_forward.1} parent=1 // pred_check
      _
    $region75: #{vae_forward.1} parent=1 // pred_check_branch
      %171 = sbr.rel (0) target = $region77
    $region76: #{vae_forward.1} parent=1 // pred_region
      %172 = dma.done [#allocation12], 1024
    $region77: #{vae_forward.1} parent=1 // pred_fallthru
      _
    // Predicated region
    $region78: #{vae_forward.1} parent=1 // pred_check
      _
    $region79: #{vae_forward.1} parent=1 // pred_check_branch
      %174 = sbr.rel (0) target = $region81
    $region80: #{vae_forward.1} parent=1 // pred_region
      %175 = dma.done [#allocation12], 2048
    $region81: #{vae_forward.1} parent=1 // pred_fallthru
      _
    // Predicated region
    $region82: #{vae_forward.1} parent=1 // pred_check
      _
    $region83: #{vae_forward.1} parent=1 // pred_check_branch
      %177 = sbr.rel (0) target = $region85
    $region84: #{vae_forward.1} parent=1 // pred_region
      %178 = dma.done [#allocation15], 6144
    $region85: #{vae_forward.1} parent=1 // pred_fallthru
      _
    // Predicated region
    $region86: #{vae_forward.1} parent=1 // pred_check
      _
    $region87: #{vae_forward.1} parent=1 // pred_check_branch
      %180 = sbr.rel (0) target = $region89
    $region88: #{vae_forward.1} parent=1 // pred_region
      %181 = dma.done [#allocation15], 12288
    $region89: #{vae_forward.1} parent=1 // pred_fallthru
      _
    // Predicated region
    $region90: #{vae_forward.1} parent=1 // pred_check
      _
    $region91: #{vae_forward.1} parent=1 // pred_check_branch
      %183 = sbr.rel (0) target = $region93
    $region92: #{vae_forward.1} parent=1 // pred_region
      %184 = dma.done [#allocation18], 2048
    $region93: #{vae_forward.1} parent=1 // pred_fallthru
      _
    %v186 = vld [vmem:[%s0] sm:$0xff]
    %v187 = vld [vmem:[%s0 + $0x8] sm:$0xff]
    %v188 = vld [vmem:[%s0 + $0x10] sm:$0xff]
    %v189 = vld [vmem:[%s0 + $0x18] sm:$0xff]
    %v190 = vld [vmem:[#allocation17] ss:$8 sm:$0x7]
    %s191 = scalar_lea.vmem [#allocation17], 1
    %v192 = vld [vmem:[%s191] ss:$8 sm:$0x7]
    %s193 = scalar_lea.vmem [#allocation17], 2
    %v194 = vld [vmem:[%s193] ss:$8 sm:$0x7]
    %v195 = vpack.c.bf16 %v186, %v186
    %v196 = vpack.c.bf16 %v187, %v187
    %v197 = vpack.c.bf16 %v188, %v188
    %v198 = vpack.c.bf16 %v189, %v189
    %v199 = vld [vmem:[#allocation2] sm:$0xff]
    %v200 = vld [vmem:[#allocation2 + $0x8] sm:$0xf]
    %v201 = vld [vmem:[#allocation2 + $0xc] sm:$0xff]
    %v202 = vld [vmem:[#allocation2 + $0x14] sm:$0xf]
    %v203 = vld [vmem:[#allocation2 + $0x18] sm:$0xff]
    %v204 = vld [vmem:[#allocation2 + $0x20] sm:$0xf]
    %v205 = vld [vmem:[#allocation2 + $0x24] sm:$0xff]
    %v206 = vld [vmem:[#allocation2 + $0x2c] sm:$0xf]
    %v207 = vld [vmem:[#allocation2 + $0x30] sm:$0xff]
    %v208 = vld [vmem:[#allocation2 + $0x38] sm:$0xf]
    %v209 = vld [vmem:[#allocation2 + $0x3c] sm:$0xff]
    %v210 = vld [vmem:[#allocation2 + $0x44] sm:$0xf]
    %v211 = vld [vmem:[#allocation2 + $0x48] sm:$0xff]
    %v212 = vld [vmem:[#allocation2 + $0x50] sm:$0xf]
    %v213 = vld [vmem:[#allocation2 + $0x54] sm:$0xff]
    %v214 = vld [vmem:[#allocation2 + $0x5c] sm:$0xf]
    %v215 = vld [vmem:[#allocation2 + $0x60] sm:$0xff]
    %v216 = vld [vmem:[#allocation2 + $0x68] sm:$0xf]
    %v217 = vld [vmem:[#allocation2 + $0x6c] sm:$0xff]
    %v218 = vld [vmem:[#allocation2 + $0x74] sm:$0xf]
    %v219 = vld [vmem:[#allocation2 + $0x78] sm:$0xff]
    %v220 = vld [vmem:[#allocation2 + $0x80] sm:$0xf]
    %v221 = vld [vmem:[#allocation2 + $0x84] sm:$0xff]
    %v222 = vld [vmem:[#allocation2 + $0x8c] sm:$0xf]
    %v223 = vld [vmem:[#allocation2 + $0x90] sm:$0xff]
    %v224 = vld [vmem:[#allocation2 + $0x98] sm:$0xf]
    %v225 = vld [vmem:[#allocation2 + $0x9c] sm:$0xff]
    %v226 = vld [vmem:[#allocation2 + $0xa4] sm:$0xf]
    %v227 = vld [vmem:[#allocation2 + $0xa8] sm:$0xff]
    %v228 = vld [vmem:[#allocation2 + $0xb0] sm:$0xf]
    %v229 = vld [vmem:[#allocation2 + $0xb4] sm:$0xff]
    %v230 = vld [vmem:[#allocation2 + $0xbc] sm:$0xf]
    %v231 = vld [vmem:[#allocation2 + $0xc0] sm:$0xff]
    %v232 = vld [vmem:[#allocation2 + $0xc8] sm:$0xf]
    %v233 = vld [vmem:[#allocation2 + $0xcc] sm:$0xff]
    %v234 = vld [vmem:[#allocation2 + $0xd4] sm:$0xf]
    %v235 = vld [vmem:[#allocation2 + $0xd8] sm:$0xff]
    %v236 = vld [vmem:[#allocation2 + $0xe0] sm:$0xf]
    %v237 = vld [vmem:[#allocation2 + $0xe4] sm:$0xff]
    %v238 = vld [vmem:[#allocation2 + $0xec] sm:$0xf]
    %v239 = vld [vmem:[#allocation2 + $0xf0] sm:$0xff]
    %v240 = vld [vmem:[#allocation2 + $0xf8] sm:$0xf]
    %v241 = vld [vmem:[#allocation2 + $0xfc] sm:$0xff]
    %v242 = vld [vmem:[#allocation2 + $0x104] sm:$0xf]
    %v243 = vld [vmem:[#allocation2 + $0x108] sm:$0xff]
    %v244 = vld [vmem:[#allocation2 + $0x110] sm:$0xf]
    %v245 = vld [vmem:[#allocation2 + $0x114] sm:$0xff]
    %v246 = vld [vmem:[#allocation2 + $0x11c] sm:$0xf]
    %v247 = vld [vmem:[#allocation2 + $0x120] sm:$0xff]
    %v248 = vld [vmem:[#allocation2 + $0x128] sm:$0xf]
    %v249 = vld [vmem:[#allocation2 + $0x12c] sm:$0xff]
    %v250 = vld [vmem:[#allocation2 + $0x134] sm:$0xf]
    %v251 = vld [vmem:[#allocation2 + $0x138] sm:$0xff]
    %v252 = vld [vmem:[#allocation2 + $0x140] sm:$0xf]
    %v253 = vld [vmem:[#allocation2 + $0x144] sm:$0xff]
    %v254 = vld [vmem:[#allocation2 + $0x14c] sm:$0xf]
    %v255 = vld [vmem:[#allocation2 + $0x150] sm:$0xff]
    %v256 = vld [vmem:[#allocation2 + $0x158] sm:$0xf]
    %v257 = vld [vmem:[#allocation2 + $0x15c] sm:$0xff]
    %v258 = vld [vmem:[#allocation2 + $0x164] sm:$0xf]
    %v259 = vld [vmem:[#allocation2 + $0x168] sm:$0xff]
    %v260 = vld [vmem:[#allocation2 + $0x170] sm:$0xf]
    %v261 = vld [vmem:[#allocation2 + $0x174] sm:$0xff]
    %v262 = vld [vmem:[#allocation2 + $0x17c] sm:$0xf]
    %v263 = vld [vmem:[#allocation2 + $0x180] sm:$0xff]
    %v264 = vld [vmem:[#allocation2 + $0x188] sm:$0xf]
    %v265 = vld [vmem:[#allocation2 + $0x18c] sm:$0xff]
    %v266 = vld [vmem:[#allocation2 + $0x194] sm:$0xf]
    %v267 = vld [vmem:[#allocation2 + $0x198] sm:$0xff]
    %v268 = vld [vmem:[#allocation2 + $0x1a0] sm:$0xf]
    %v269 = vld [vmem:[#allocation2 + $0x1a4] sm:$0xff]
    %v270 = vld [vmem:[#allocation2 + $0x1ac] sm:$0xf]
    %v271 = vld [vmem:[#allocation2 + $0x1b0] sm:$0xff]
    %v272 = vld [vmem:[#allocation2 + $0x1b8] sm:$0xf]
    %v273 = vld [vmem:[#allocation2 + $0x1bc] sm:$0xff]
    %v274 = vld [vmem:[#allocation2 + $0x1c4] sm:$0xf]
    %v275 = vld [vmem:[#allocation2 + $0x1c8] sm:$0xff]
    %v276 = vld [vmem:[#allocation2 + $0x1d0] sm:$0xf]
    %v277 = vld [vmem:[#allocation2 + $0x1d4] sm:$0xff]
    %v278 = vld [vmem:[#allocation2 + $0x1dc] sm:$0xf]
    %v279 = vld [vmem:[#allocation2 + $0x1e0] sm:$0xff]
    %v280 = vld [vmem:[#allocation2 + $0x1e8] sm:$0xf]
    %v281 = vld [vmem:[#allocation2 + $0x1ec] sm:$0xff]
    %v282 = vld [vmem:[#allocation2 + $0x1f4] sm:$0xf]
    %v283 = vld [vmem:[#allocation2 + $0x1f8] sm:$0xff]
    %v284 = vld [vmem:[#allocation2 + $0x200] sm:$0xf]
    %v285 = vld [vmem:[#allocation2 + $0x204] sm:$0xff]
    %v286 = vld [vmem:[#allocation2 + $0x20c] sm:$0xf]
    %v287 = vld [vmem:[#allocation2 + $0x210] sm:$0xff]
    %v288 = vld [vmem:[#allocation2 + $0x218] sm:$0xf]
    %v289 = vld [vmem:[#allocation2 + $0x21c] sm:$0xff]
    %v290 = vld [vmem:[#allocation2 + $0x224] sm:$0xf]
    %v291 = vld [vmem:[#allocation2 + $0x228] sm:$0xff]
    %v292 = vld [vmem:[#allocation2 + $0x230] sm:$0xf]
    %v293 = vld [vmem:[#allocation2 + $0x234] sm:$0xff]
    %v294 = vld [vmem:[#allocation2 + $0x23c] sm:$0xf]
    %v295 = vld [vmem:[#allocation2 + $0x240] sm:$0xff]
    %v296 = vld [vmem:[#allocation2 + $0x248] sm:$0xf]
    %v297 = vld [vmem:[#allocation2 + $0x24c] sm:$0xff]
    %v298 = vld [vmem:[#allocation2 + $0x254] sm:$0xf]
    %v299 = vld [vmem:[#allocation2 + $0x258] sm:$0xff]
    %v300 = vld [vmem:[#allocation2 + $0x260] sm:$0xf]
    %v301 = vld [vmem:[#allocation2 + $0x264] sm:$0xff]
    %v302 = vld [vmem:[#allocation2 + $0x26c] sm:$0xf]
    %v303 = vld [vmem:[#allocation2 + $0x270] sm:$0xff]
    %v304 = vld [vmem:[#allocation2 + $0x278] sm:$0xf]
    %v305 = vld [vmem:[#allocation2 + $0x27c] sm:$0xff]
    %v306 = vld [vmem:[#allocation2 + $0x284] sm:$0xf]
    %v307 = vld [vmem:[#allocation2 + $0x288] sm:$0xff]
    %v308 = vld [vmem:[#allocation2 + $0x290] sm:$0xf]
    %v309 = vld [vmem:[#allocation2 + $0x294] sm:$0xff]
    %v310 = vld [vmem:[#allocation2 + $0x29c] sm:$0xf]
    %v311 = vld [vmem:[#allocation2 + $0x2a0] sm:$0xff]
    %v312 = vld [vmem:[#allocation2 + $0x2a8] sm:$0xf]
    %v313 = vld [vmem:[#allocation2 + $0x2ac] sm:$0xff]
    %v314 = vld [vmem:[#allocation2 + $0x2b4] sm:$0xf]
    %v315 = vld [vmem:[#allocation2 + $0x2b8] sm:$0xff]
    %v316 = vld [vmem:[#allocation2 + $0x2c0] sm:$0xf]
    %v317 = vld [vmem:[#allocation2 + $0x2c4] sm:$0xff]
    %v318 = vld [vmem:[#allocation2 + $0x2cc] sm:$0xf]
    %v319 = vld [vmem:[#allocation2 + $0x2d0] sm:$0xff]
    %v320 = vld [vmem:[#allocation2 + $0x2d8] sm:$0xf]
    %v321 = vld [vmem:[#allocation2 + $0x2dc] sm:$0xff]
    %v322 = vld [vmem:[#allocation2 + $0x2e4] sm:$0xf]
    %v323 = vld [vmem:[#allocation2 + $0x2e8] sm:$0xff]
    %v324 = vld [vmem:[#allocation2 + $0x2f0] sm:$0xf]
    %v325 = vld [vmem:[#allocation2 + $0x2f4] sm:$0xff]
    %v326 = vld [vmem:[#allocation2 + $0x2fc] sm:$0xf]
    %v328 = vlaneseq
    %v329 = vshrl.u32 %v328, 7
    %v330 = vsub.s32 0, %v329
    %v331 = vrot.slane %v190, %v330
    %v332 = vlaneseq
    %v333 = vshrl.u32 %v332, 7
    %v334 = vsub.s32 1, %v333
    %v335 = vrot.slane %v190, %v334
    %v336 = vlaneseq
    %v337 = vshrl.u32 %v336, 7
    %v338 = vsub.s32 2, %v337
    %v339 = vrot.slane %v190, %v338
    %v471 = vunpack.c.l.b16 %v199
    %v472 = vunpack.c.h.b16 %v199
    %v473 = vunpack.c.l.b16 %v200
    %v474 = vunpack.c.l.b16 %v201
    %v475 = vunpack.c.h.b16 %v201
    %v476 = vunpack.c.l.b16 %v202
    %v477 = vunpack.c.l.b16 %v203
    %v478 = vunpack.c.h.b16 %v203
    %v479 = vunpack.c.l.b16 %v204
    %v480 = vunpack.c.l.b16 %v205
    %v481 = vunpack.c.h.b16 %v205
    %v482 = vunpack.c.l.b16 %v206
    %v483 = vunpack.c.l.b16 %v207
    %v484 = vunpack.c.h.b16 %v207
    %v485 = vunpack.c.l.b16 %v208
    %v486 = vunpack.c.l.b16 %v209
    %v487 = vunpack.c.h.b16 %v209
    %v488 = vunpack.c.l.b16 %v210
    %v489 = vunpack.c.l.b16 %v211
    %v490 = vunpack.c.h.b16 %v211
    %v491 = vunpack.c.l.b16 %v212
    %v492 = vunpack.c.l.b16 %v213
    %v493 = vunpack.c.h.b16 %v213
    %v494 = vunpack.c.l.b16 %v214
    %v495 = vunpack.c.l.b16 %v215
    %v496 = vunpack.c.h.b16 %v215
    %v497 = vunpack.c.l.b16 %v216
    %v498 = vunpack.c.l.b16 %v217
    %v499 = vunpack.c.h.b16 %v217
    %v500 = vunpack.c.l.b16 %v218
    %v501 = vunpack.c.l.b16 %v219
    %v502 = vunpack.c.h.b16 %v219
    %v503 = vunpack.c.l.b16 %v220
    %v504 = vunpack.c.l.b16 %v221
    %v505 = vunpack.c.h.b16 %v221
    %v506 = vunpack.c.l.b16 %v222
    %v507 = vunpack.c.l.b16 %v223
    %v508 = vunpack.c.h.b16 %v223
    %v509 = vunpack.c.l.b16 %v224
    %v510 = vunpack.c.l.b16 %v225
    %v511 = vunpack.c.h.b16 %v225
    %v512 = vunpack.c.l.b16 %v226
    %v513 = vunpack.c.l.b16 %v227
    %v514 = vunpack.c.h.b16 %v227
    %v515 = vunpack.c.l.b16 %v228
    %v516 = vunpack.c.l.b16 %v229
    %v517 = vunpack.c.h.b16 %v229
    %v518 = vunpack.c.l.b16 %v230
    %v519 = vunpack.c.l.b16 %v231
    %v520 = vunpack.c.h.b16 %v231
    %v521 = vunpack.c.l.b16 %v232
    %v522 = vunpack.c.l.b16 %v233
    %v523 = vunpack.c.h.b16 %v233
    %v524 = vunpack.c.l.b16 %v234
    %v525 = vunpack.c.l.b16 %v235
    %v526 = vunpack.c.h.b16 %v235
    %v527 = vunpack.c.l.b16 %v236
    %v528 = vunpack.c.l.b16 %v237
    %v529 = vunpack.c.h.b16 %v237
    %v530 = vunpack.c.l.b16 %v238
    %v531 = vunpack.c.l.b16 %v239
    %v532 = vunpack.c.h.b16 %v239
    %v533 = vunpack.c.l.b16 %v240
    %v534 = vunpack.c.l.b16 %v241
    %v535 = vunpack.c.h.b16 %v241
    %v536 = vunpack.c.l.b16 %v242
    %v537 = vunpack.c.l.b16 %v243
    %v538 = vunpack.c.h.b16 %v243
    %v539 = vunpack.c.l.b16 %v244
    %v540 = vunpack.c.l.b16 %v245
    %v541 = vunpack.c.h.b16 %v245
    %v542 = vunpack.c.l.b16 %v246
    %v543 = vunpack.c.l.b16 %v247
    %v544 = vunpack.c.h.b16 %v247
    %v545 = vunpack.c.l.b16 %v248
    %v546 = vunpack.c.l.b16 %v249
    %v547 = vunpack.c.h.b16 %v249
    %v548 = vunpack.c.l.b16 %v250
    %v549 = vunpack.c.l.b16 %v251
    %v550 = vunpack.c.h.b16 %v251
    %v551 = vunpack.c.l.b16 %v252
    %v552 = vunpack.c.l.b16 %v253
    %v553 = vunpack.c.h.b16 %v253
    %v554 = vunpack.c.l.b16 %v254
    %v555 = vunpack.c.l.b16 %v255
    %v556 = vunpack.c.h.b16 %v255
    %v557 = vunpack.c.l.b16 %v256
    %v558 = vunpack.c.l.b16 %v257
    %v559 = vunpack.c.h.b16 %v257
    %v560 = vunpack.c.l.b16 %v258
    %v561 = vunpack.c.l.b16 %v259
    %v562 = vunpack.c.h.b16 %v259
    %v563 = vunpack.c.l.b16 %v260
    %v564 = vunpack.c.l.b16 %v261
    %v565 = vunpack.c.h.b16 %v261
    %v566 = vunpack.c.l.b16 %v262
    %v567 = vunpack.c.l.b16 %v263
    %v568 = vunpack.c.h.b16 %v263
    %v569 = vunpack.c.l.b16 %v264
    %v570 = vunpack.c.l.b16 %v265
    %v571 = vunpack.c.h.b16 %v265
    %v572 = vunpack.c.l.b16 %v266
    %v573 = vunpack.c.l.b16 %v267
    %v574 = vunpack.c.h.b16 %v267
    %v575 = vunpack.c.l.b16 %v268
    %v576 = vunpack.c.l.b16 %v269
    %v577 = vunpack.c.h.b16 %v269
    %v578 = vunpack.c.l.b16 %v270
    %v579 = vunpack.c.l.b16 %v271
    %v580 = vunpack.c.h.b16 %v271
    %v581 = vunpack.c.l.b16 %v272
    %v582 = vunpack.c.l.b16 %v273
    %v583 = vunpack.c.h.b16 %v273
    %v584 = vunpack.c.l.b16 %v274
    %v585 = vunpack.c.l.b16 %v275
    %v586 = vunpack.c.h.b16 %v275
    %v587 = vunpack.c.l.b16 %v276
    %v588 = vunpack.c.l.b16 %v277
    %v589 = vunpack.c.h.b16 %v277
    %v590 = vunpack.c.l.b16 %v278
    %v591 = vunpack.c.l.b16 %v279
    %v592 = vunpack.c.h.b16 %v279
    %v593 = vunpack.c.l.b16 %v280
    %v594 = vunpack.c.l.b16 %v281
    %v595 = vunpack.c.h.b16 %v281
    %v596 = vunpack.c.l.b16 %v282
    %v597 = vunpack.c.l.b16 %v283
    %v598 = vunpack.c.h.b16 %v283
    %v599 = vunpack.c.l.b16 %v284
    %v600 = vunpack.c.l.b16 %v285
    %v601 = vunpack.c.h.b16 %v285
    %v602 = vunpack.c.l.b16 %v286
    %v603 = vunpack.c.l.b16 %v287
    %v604 = vunpack.c.h.b16 %v287
    %v605 = vunpack.c.l.b16 %v288
    %v606 = vunpack.c.l.b16 %v289
    %v607 = vunpack.c.h.b16 %v289
    %v608 = vunpack.c.l.b16 %v290
    %v609 = vunpack.c.l.b16 %v291
    %v610 = vunpack.c.h.b16 %v291
    %v611 = vunpack.c.l.b16 %v292
    %v612 = vunpack.c.l.b16 %v293
    %v613 = vunpack.c.h.b16 %v293
    %v614 = vunpack.c.l.b16 %v294
    %v615 = vunpack.c.l.b16 %v295
    %v616 = vunpack.c.h.b16 %v295
    %v617 = vunpack.c.l.b16 %v296
    %v618 = vunpack.c.l.b16 %v297
    %v619 = vunpack.c.h.b16 %v297
    %v620 = vunpack.c.l.b16 %v298
    %v621 = vunpack.c.l.b16 %v299
    %v622 = vunpack.c.h.b16 %v299
    %v623 = vunpack.c.l.b16 %v300
    %v624 = vunpack.c.l.b16 %v301
    %v625 = vunpack.c.h.b16 %v301
    %v626 = vunpack.c.l.b16 %v302
    %v627 = vunpack.c.l.b16 %v303
    %v628 = vunpack.c.h.b16 %v303
    %v629 = vunpack.c.l.b16 %v304
    %v630 = vunpack.c.l.b16 %v305
    %v631 = vunpack.c.h.b16 %v305
    %v632 = vunpack.c.l.b16 %v306
    %v633 = vunpack.c.l.b16 %v307
    %v634 = vunpack.c.h.b16 %v307
    %v635 = vunpack.c.l.b16 %v308
    %v636 = vunpack.c.l.b16 %v309
    %v637 = vunpack.c.h.b16 %v309
    %v638 = vunpack.c.l.b16 %v310
    %v639 = vunpack.c.l.b16 %v311
    %v640 = vunpack.c.h.b16 %v311
    %v641 = vunpack.c.l.b16 %v312
    %v642 = vunpack.c.l.b16 %v313
    %v643 = vunpack.c.h.b16 %v313
    %v644 = vunpack.c.l.b16 %v314
    %v645 = vunpack.c.l.b16 %v315
    %v646 = vunpack.c.h.b16 %v315
    %v647 = vunpack.c.l.b16 %v316
    %v648 = vunpack.c.l.b16 %v317
    %v649 = vunpack.c.h.b16 %v317
    %v650 = vunpack.c.l.b16 %v318
    %v651 = vunpack.c.l.b16 %v319
    %v652 = vunpack.c.h.b16 %v319
    %v653 = vunpack.c.l.b16 %v320
    %v654 = vunpack.c.l.b16 %v321
    %v655 = vunpack.c.h.b16 %v321
    %v656 = vunpack.c.l.b16 %v322
    %v657 = vunpack.c.l.b16 %v323
    %v658 = vunpack.c.h.b16 %v323
    %v659 = vunpack.c.l.b16 %v324
    %v660 = vunpack.c.l.b16 %v325
    %v661 = vunpack.c.h.b16 %v325
    %v662 = vunpack.c.l.b16 %v326
    %v663 = vpack.c.b16 %v474, %v471
    %v664 = vpack.c.b16 %v475, %v472
    %v665 = vpack.c.b16 %v476, %v473
    %v666 = vpack.c.b16 %v480, %v477
    %v667 = vpack.c.b16 %v481, %v478
    %v668 = vpack.c.b16 %v482, %v479
    %v669 = vpack.c.b16 %v486, %v483
    %v670 = vpack.c.b16 %v487, %v484
    %v671 = vpack.c.b16 %v488, %v485
    %v672 = vpack.c.b16 %v492, %v489
    %v673 = vpack.c.b16 %v493, %v490
    %v674 = vpack.c.b16 %v494, %v491
    %v675 = vpack.c.b16 %v498, %v495
    %v676 = vpack.c.b16 %v499, %v496
    %v677 = vpack.c.b16 %v500, %v497
    %v678 = vpack.c.b16 %v504, %v501
    %v679 = vpack.c.b16 %v505, %v502
    %v680 = vpack.c.b16 %v506, %v503
    %v681 = vpack.c.b16 %v510, %v507
    %v682 = vpack.c.b16 %v511, %v508
    %v683 = vpack.c.b16 %v512, %v509
    %v684 = vpack.c.b16 %v516, %v513
    %v685 = vpack.c.b16 %v517, %v514
    %v686 = vpack.c.b16 %v518, %v515
    %v687 = vpack.c.b16 %v522, %v519
    %v688 = vpack.c.b16 %v523, %v520
    %v689 = vpack.c.b16 %v524, %v521
    %v690 = vpack.c.b16 %v528, %v525
    %v691 = vpack.c.b16 %v529, %v526
    %v692 = vpack.c.b16 %v530, %v527
    %v693 = vpack.c.b16 %v534, %v531
    %v694 = vpack.c.b16 %v535, %v532
    %v695 = vpack.c.b16 %v536, %v533
    %v696 = vpack.c.b16 %v540, %v537
    %v697 = vpack.c.b16 %v541, %v538
    %v698 = vpack.c.b16 %v542, %v539
    %v699 = vpack.c.b16 %v546, %v543
    %v700 = vpack.c.b16 %v547, %v544
    %v701 = vpack.c.b16 %v548, %v545
    %v702 = vpack.c.b16 %v552, %v549
    %v703 = vpack.c.b16 %v553, %v550
    %v704 = vpack.c.b16 %v554, %v551
    %v705 = vpack.c.b16 %v558, %v555
    %v706 = vpack.c.b16 %v559, %v556
    %v707 = vpack.c.b16 %v560, %v557
    %v708 = vpack.c.b16 %v564, %v561
    %v709 = vpack.c.b16 %v565, %v562
    %v710 = vpack.c.b16 %v566, %v563
    %v711 = vpack.c.b16 %v570, %v567
    %v712 = vpack.c.b16 %v571, %v568
    %v713 = vpack.c.b16 %v572, %v569
    %v714 = vpack.c.b16 %v576, %v573
    %v715 = vpack.c.b16 %v577, %v574
    %v716 = vpack.c.b16 %v578, %v575
    %v717 = vpack.c.b16 %v582, %v579
    %v718 = vpack.c.b16 %v583, %v580
    %v719 = vpack.c.b16 %v584, %v581
    %v720 = vpack.c.b16 %v588, %v585
    %v721 = vpack.c.b16 %v589, %v586
    %v722 = vpack.c.b16 %v590, %v587
    %v723 = vpack.c.b16 %v594, %v591
    %v724 = vpack.c.b16 %v595, %v592
    %v725 = vpack.c.b16 %v596, %v593
    %v726 = vpack.c.b16 %v600, %v597
    %v727 = vpack.c.b16 %v601, %v598
    %v728 = vpack.c.b16 %v602, %v599
    %v729 = vpack.c.b16 %v606, %v603
    %v730 = vpack.c.b16 %v607, %v604
    %v731 = vpack.c.b16 %v608, %v605
    %v732 = vpack.c.b16 %v612, %v609
    %v733 = vpack.c.b16 %v613, %v610
    %v734 = vpack.c.b16 %v614, %v611
    %v735 = vpack.c.b16 %v618, %v615
    %v736 = vpack.c.b16 %v619, %v616
    %v737 = vpack.c.b16 %v620, %v617
    %v738 = vpack.c.b16 %v624, %v621
    %v739 = vpack.c.b16 %v625, %v622
    %v740 = vpack.c.b16 %v626, %v623
    %v741 = vpack.c.b16 %v630, %v627
    %v742 = vpack.c.b16 %v631, %v628
    %v743 = vpack.c.b16 %v632, %v629
    %v744 = vpack.c.b16 %v636, %v633
    %v745 = vpack.c.b16 %v637, %v634
    %v746 = vpack.c.b16 %v638, %v635
    %v747 = vpack.c.b16 %v642, %v639
    %v748 = vpack.c.b16 %v643, %v640
    %v749 = vpack.c.b16 %v644, %v641
    %v750 = vpack.c.b16 %v648, %v645
    %v751 = vpack.c.b16 %v649, %v646
    %v752 = vpack.c.b16 %v650, %v647
    %v753 = vpack.c.b16 %v654, %v651
    %v754 = vpack.c.b16 %v655, %v652
    %v755 = vpack.c.b16 %v656, %v653
    %v756 = vpack.c.b16 %v660, %v657
    %v757 = vpack.c.b16 %v661, %v658
    %v758 = vpack.c.b16 %v662, %v659
    %855 = vmatprep.subr.bf16.mxu0 %v664
    %856 = vmatpush1.bf16.msra.mxu0 %v663
    %857 = vmatprep.subr.bf16.mxu0 %v667
    %858 = vmatpush1.bf16.msra.mxu0 %v666
    %859 = vmatprep.subr.bf16.mxu0 %v670
    %860 = vmatpush1.bf16.msra.mxu0 %v669
    %861 = vmatprep.subr.bf16.mxu0 %v673
    %862 = vmatpush1.bf16.msra.mxu0 %v672
    %863 = vmatprep.subr.bf16.mxu0 %v676
    %864 = vmatpush1.bf16.msra.mxu0 %v675
    %865 = vmatprep.subr.bf16.mxu0 %v679
    %866 = vmatpush1.bf16.msra.mxu0 %v678
    %867 = vmatprep.subr.bf16.mxu0 %v682
    %868 = vmatpush1.bf16.msra.mxu0 %v681
    %869 = vmatprep.subr.bf16.mxu0 %v685
    %870 = vmatpush1.bf16.msra.mxu0 %v684
    %871 = vmatprep.subr.bf16.mxu0 %v688
    %872 = vmatpush1.bf16.msra.mxu0 %v687
    %873 = vmatprep.subr.bf16.mxu0 %v691
    %874 = vmatpush1.bf16.msra.mxu0 %v690
    %875 = vmatprep.subr.bf16.mxu0 %v694
    %876 = vmatpush1.bf16.msra.mxu0 %v693
    %877 = vmatprep.subr.bf16.mxu0 %v697
    %878 = vmatpush1.bf16.msra.mxu0 %v696
    %879 = vmatprep.subr.bf16.mxu0 %v700
    %880 = vmatpush1.bf16.msra.mxu0 %v699
    %881 = vmatprep.subr.bf16.mxu0 %v703
    %882 = vmatpush1.bf16.msra.mxu0 %v702
    %883 = vmatprep.subr.bf16.mxu0 %v706
    %884 = vmatpush1.bf16.msra.mxu0 %v705
    %885 = vmatprep.subr.bf16.mxu0 %v709
    %886 = vmatpush1.bf16.msra.mxu0 %v708
    %887 = vmatprep.mubr.bf16.mxu0 %v196
    %888 = vmatmul.mubr.bf16.gmra.mrb[0].mxu0 %v195
    %v889 = vpop.f32.mrb[0].mxu0
    %v890 = vadd.f32 %v331, %v889
    %v891 = vpop.f32.mrb[0].mxu0
    %v892 = vadd.f32 %v335, %v891
    %v893 = vpop.f32.mrb[0].mxu0
    %v894 = vpop.f32.mrb[0].mxu0
    %895 = vdwg.mxu0
    %896 = vmatprep.subr.bf16.mxu0 %v712
    %897 = vmatpush1.bf16.msra.mxu0 %v711
    %898 = vmatprep.subr.bf16.mxu0 %v715
    %899 = vmatpush1.bf16.msra.mxu0 %v714
    %900 = vmatprep.subr.bf16.mxu0 %v718
    %901 = vmatpush1.bf16.msra.mxu0 %v717
    %902 = vmatprep.subr.bf16.mxu0 %v721
    %903 = vmatpush1.bf16.msra.mxu0 %v720
    %904 = vmatprep.subr.bf16.mxu0 %v724
    %905 = vmatpush1.bf16.msra.mxu0 %v723
    %906 = vmatprep.subr.bf16.mxu0 %v727
    %907 = vmatpush1.bf16.msra.mxu0 %v726
    %908 = vmatprep.subr.bf16.mxu0 %v730
    %909 = vmatpush1.bf16.msra.mxu0 %v729
    %910 = vmatprep.subr.bf16.mxu0 %v733
    %911 = vmatpush1.bf16.msra.mxu0 %v732
    %912 = vmatprep.subr.bf16.mxu0 %v736
    %913 = vmatpush1.bf16.msra.mxu0 %v735
    %914 = vmatprep.subr.bf16.mxu0 %v739
    %915 = vmatpush1.bf16.msra.mxu0 %v738
    %916 = vmatprep.subr.bf16.mxu0 %v742
    %917 = vmatpush1.bf16.msra.mxu0 %v741
    %918 = vmatprep.subr.bf16.mxu0 %v745
    %919 = vmatpush1.bf16.msra.mxu0 %v744
    %920 = vmatprep.subr.bf16.mxu0 %v748
    %921 = vmatpush1.bf16.msra.mxu0 %v747
    %922 = vmatprep.subr.bf16.mxu0 %v751
    %923 = vmatpush1.bf16.msra.mxu0 %v750
    %924 = vmatprep.subr.bf16.mxu0 %v754
    %925 = vmatpush1.bf16.msra.mxu0 %v753
    %926 = vmatprep.subr.bf16.mxu0 %v757
    %927 = vmatpush1.bf16.msra.mxu0 %v756
    %928 = vmatprep.mubr.bf16.mxu0 %v198
    %929 = vmatmul.mubr.bf16.gmra.mrb[0].mxu0 %v197
    %v930 = vpop.f32.mrb[0].mxu0
    %v931 = vadd.f32 %v890, %v930
    %v932 = vpop.f32.mrb[0].mxu0
    %v933 = vadd.f32 %v892, %v932
    %v934 = vpop.f32.mrb[0].mxu0
    %v935 = vpop.f32.mrb[0].mxu0
    %936 = vdwg.mxu0
    %937 = vmatprep.subr.bf16.mxu0 0
    %938 = vmatpush1.bf16.msra.mxu0 %v665
    %939 = vmatprep.subr.bf16.mxu0 0
    %940 = vmatpush1.bf16.msra.mxu0 %v668
    %941 = vmatprep.subr.bf16.mxu0 0
    %942 = vmatpush1.bf16.msra.mxu0 %v671
    %943 = vmatprep.subr.bf16.mxu0 0
    %944 = vmatpush1.bf16.msra.mxu0 %v674
    %945 = vmatprep.subr.bf16.mxu0 0
    %946 = vmatpush1.bf16.msra.mxu0 %v677
    %947 = vmatprep.subr.bf16.mxu0 0
    %948 = vmatpush1.bf16.msra.mxu0 %v680
    %949 = vmatprep.subr.bf16.mxu0 0
    %950 = vmatpush1.bf16.msra.mxu0 %v683
    %951 = vmatprep.subr.bf16.mxu0 0
    %952 = vmatpush1.bf16.msra.mxu0 %v686
    %953 = vmatprep.subr.bf16.mxu0 0
    %954 = vmatpush1.bf16.msra.mxu0 %v689
    %955 = vmatprep.subr.bf16.mxu0 0
    %956 = vmatpush1.bf16.msra.mxu0 %v692
    %957 = vmatprep.subr.bf16.mxu0 0
    %958 = vmatpush1.bf16.msra.mxu0 %v695
    %959 = vmatprep.subr.bf16.mxu0 0
    %960 = vmatpush1.bf16.msra.mxu0 %v698
    %961 = vmatprep.subr.bf16.mxu0 0
    %962 = vmatpush1.bf16.msra.mxu0 %v701
    %963 = vmatprep.subr.bf16.mxu0 0
    %964 = vmatpush1.bf16.msra.mxu0 %v704
    %965 = vmatprep.subr.bf16.mxu0 0
    %966 = vmatpush1.bf16.msra.mxu0 %v707
    %967 = vmatprep.subr.bf16.mxu0 0
    %968 = vmatpush1.bf16.msra.mxu0 %v710
    %969 = vmatprep.mubr.bf16.mxu0 %v196
    %970 = vmatmul.mubr.bf16.gmra.mrb[0].mxu0 %v195
    %v971 = vpop.f32.mrb[0].mxu0
    %v972 = vadd.f32 %v339, %v971
    %v973 = vpop.f32.mrb[0].mxu0
    %v974 = vpop.f32.mrb[0].mxu0
    %v975 = vpop.f32.mrb[0].mxu0
    %976 = vdwg.mxu0
    %977 = vmatprep.subr.bf16.mxu0 0
    %978 = vmatpush1.bf16.msra.mxu0 %v713
    %979 = vmatprep.subr.bf16.mxu0 0
    %980 = vmatpush1.bf16.msra.mxu0 %v716
    %981 = vmatprep.subr.bf16.mxu0 0
    %982 = vmatpush1.bf16.msra.mxu0 %v719
    %983 = vmatprep.subr.bf16.mxu0 0
    %984 = vmatpush1.bf16.msra.mxu0 %v722
    %985 = vmatprep.subr.bf16.mxu0 0
    %986 = vmatpush1.bf16.msra.mxu0 %v725
    %987 = vmatprep.subr.bf16.mxu0 0
    %988 = vmatpush1.bf16.msra.mxu0 %v728
    %989 = vmatprep.subr.bf16.mxu0 0
    %990 = vmatpush1.bf16.msra.mxu0 %v731
    %991 = vmatprep.subr.bf16.mxu0 0
    %992 = vmatpush1.bf16.msra.mxu0 %v734
    %993 = vmatprep.subr.bf16.mxu0 0
    %994 = vmatpush1.bf16.msra.mxu0 %v737
    %995 = vmatprep.subr.bf16.mxu0 0
    %996 = vmatpush1.bf16.msra.mxu0 %v740
    %997 = vmatprep.subr.bf16.mxu0 0
    %998 = vmatpush1.bf16.msra.mxu0 %v743
    %999 = vmatprep.subr.bf16.mxu0 0
    %1000 = vmatpush1.bf16.msra.mxu0 %v746
    %1001 = vmatprep.subr.bf16.mxu0 0
    %1002 = vmatpush1.bf16.msra.mxu0 %v749
    %1003 = vmatprep.subr.bf16.mxu0 0
    %1004 = vmatpush1.bf16.msra.mxu0 %v752
    %1005 = vmatprep.subr.bf16.mxu0 0
    %1006 = vmatpush1.bf16.msra.mxu0 %v755
    %1007 = vmatprep.subr.bf16.mxu0 0
    %1008 = vmatpush1.bf16.msra.mxu0 %v758
    %1009 = vmatprep.mubr.bf16.mxu0 %v198
    %1010 = vmatmul.mubr.bf16.gmra.mrb[0].mxu0 %v197
    %v1011 = vpop.f32.mrb[0].mxu0
    %v1012 = vadd.f32 %v972, %v1011
    %v1013 = vpop.f32.mrb[0].mxu0
    %v1014 = vpop.f32.mrb[0].mxu0
    %v1015 = vpop.f32.mrb[0].mxu0
    %1016 = vdwg.mxu0
    %v1017 = vrot.slane %v931, 4
    %v1018 = vadd.f32 %v931, %v1017
    %v1019 = vrot.slane %v1018, 2
    %v1020 = vadd.f32 %v1018, %v1019
    %v1021 = vrot.slane %v1020, 1
    %v1022 = vadd.f32 %v1020, %v1021
    %v1023 = vrot.slane %v933, 4
    %v1024 = vadd.f32 %v933, %v1023
    %v1025 = vrot.slane %v1024, 2
    %v1026 = vadd.f32 %v1024, %v1025
    %v1027 = vrot.slane %v1026, 1
    %v1028 = vadd.f32 %v1026, %v1027
    %v1029 = vrot.slane %v1012, 4
    %v1030 = vadd.f32 %v1012, %v1029
    %v1031 = vrot.slane %v1030, 2
    %v1032 = vadd.f32 %v1030, %v1031
    %v1033 = vrot.slane %v1032, 1
    %v1034 = vadd.f32 %v1032, %v1033
    %v1035 = vrcp.pop 8.0
    %v1036 = vmul.f32 %v1022, %v1035
    %v1037 = vmul.f32 %v1028, %v1035
    %v1038 = vmul.f32 %v1034, %v1035
    %v1039 = vmul.f32 %v931, %v931
    %v1040 = vmul.f32 %v933, %v933
    %v1041 = vmul.f32 %v1012, %v1012
    %v1042 = vrot.slane %v1039, 4
    %v1043 = vadd.f32 %v1039, %v1042
    %v1044 = vrot.slane %v1043, 2
    %v1045 = vadd.f32 %v1043, %v1044
    %v1046 = vrot.slane %v1045, 1
    %v1047 = vadd.f32 %v1045, %v1046
    %v1048 = vrot.slane %v1040, 4
    %v1049 = vadd.f32 %v1040, %v1048
    %v1050 = vrot.slane %v1049, 2
    %v1051 = vadd.f32 %v1049, %v1050
    %v1052 = vrot.slane %v1051, 1
    %v1053 = vadd.f32 %v1051, %v1052
    %v1054 = vrot.slane %v1041, 4
    %v1055 = vadd.f32 %v1041, %v1054
    %v1056 = vrot.slane %v1055, 2
    %v1057 = vadd.f32 %v1055, %v1056
    %v1058 = vrot.slane %v1057, 1
    %v1059 = vadd.f32 %v1057, %v1058
    %v1060 = vmul.f32 %v1047, %v1035
    %v1061 = vmul.f32 %v1053, %v1035
    %v1062 = vmul.f32 %v1059, %v1035
    %v1063 = vmul.f32 %v1036, %v1036
    %v1064 = vmul.f32 %v1037, %v1037
    %v1065 = vmul.f32 %v1038, %v1038
    %v1066 = vsub.f32 %v1060, %v1063
    %v1067 = vsub.f32 %v1061, %v1064
    %v1068 = vsub.f32 %v1062, %v1065
    %v1069 = vadd.f32 %v1066, 1e-05
    %v1070 = vadd.f32 %v1067, 1e-05
    %v1071 = vadd.f32 %v1068, 1e-05
    %v1072 = vrsqrt.pop %v1069
    %v1073 = vrsqrt.pop %v1070
    %v1074 = vrsqrt.pop %v1071
    %v1078 = vcombine.low %v1072, %v1073
    %v1080 = vunpack.c.l.s4 1966171168
    %v1081 = vunpack.c.0.s8 %v1080
    %v1082 = vlaneseq
    %v1083 = vshrl.u32 %v1082, 7
    %v1084 = vsub.s32 %v1081, %v1083
    %v1085 = vrot.slane %v1078, %v1084
    %v1087 = vunpack.c.l.s4 1966171168
    %v1088 = vunpack.c.0.s8 %v1087
    %v1089 = vlaneseq
    %v1090 = vshrl.u32 %v1089, 7
    %v1091 = vsub.s32 %v1088, %v1090
    %v1092 = vrot.slane %v1074, %v1091
    %v1093 = vcombine.low %v1085, %v1092
    %v1095 = vunpack.c.l.s4 1966171168
    %v1096 = vunpack.c.0.s8 %v1095
    %v1097 = vlaneseq
    %v1098 = vshrl.u32 %v1097, 7
    %v1099 = vsub.s32 %v1096, %v1098
    %v1100 = vrot.slane %v1093, %v1099
    %v1102 = vmul.f32 %v192, %v1100
    %v1104 = vlaneseq
    %v1105 = vshrl.u32 %v1104, 7
    %v1106 = vsub.s32 0, %v1105
    %v1107 = vrot.slane %v1102, %v1106
    %v1108 = vlaneseq
    %v1109 = vshrl.u32 %v1108, 7
    %v1110 = vsub.s32 1, %v1109
    %v1111 = vrot.slane %v1102, %v1110
    %v1112 = vlaneseq
    %v1113 = vshrl.u32 %v1112, 7
    %v1114 = vsub.s32 2, %v1113
    %v1115 = vrot.slane %v1102, %v1114
    %v1119 = vmul.f32 %v1036, %v1107
    %v1120 = vmul.f32 %v1037, %v1111
    %v1121 = vmul.f32 %v1038, %v1115
    %v1125 = vcombine.low %v1119, %v1120
    %v1127 = vunpack.c.l.s4 1966171168
    %v1128 = vunpack.c.0.s8 %v1127
    %v1129 = vlaneseq
    %v1130 = vshrl.u32 %v1129, 7
    %v1131 = vsub.s32 %v1128, %v1130
    %v1132 = vrot.slane %v1125, %v1131
    %v1134 = vunpack.c.l.s4 1966171168
    %v1135 = vunpack.c.0.s8 %v1134
    %v1136 = vlaneseq
    %v1137 = vshrl.u32 %v1136, 7
    %v1138 = vsub.s32 %v1135, %v1137
    %v1139 = vrot.slane %v1121, %v1138
    %v1140 = vcombine.low %v1132, %v1139
    %v1142 = vunpack.c.l.s4 1966171168
    %v1143 = vunpack.c.0.s8 %v1142
    %v1144 = vlaneseq
    %v1145 = vshrl.u32 %v1144, 7
    %v1146 = vsub.s32 %v1143, %v1145
    %v1147 = vrot.slane %v1140, %v1146
    %v1149 = vsub.f32 %v194, %v1147
    %v1150 = vmul.f32 %v931, %v1107
    %v1151 = vmul.f32 %v933, %v1111
    %v1152 = vmul.f32 %v1012, %v1115
    %v1154 = vlaneseq
    %v1155 = vshrl.u32 %v1154, 7
    %v1156 = vsub.s32 0, %v1155
    %v1157 = vrot.slane %v1149, %v1156
    %v1158 = vlaneseq
    %v1159 = vshrl.u32 %v1158, 7
    %v1160 = vsub.s32 1, %v1159
    %v1161 = vrot.slane %v1149, %v1160
    %v1162 = vlaneseq
    %v1163 = vshrl.u32 %v1162, 7
    %v1164 = vsub.s32 2, %v1163
    %v1165 = vrot.slane %v1149, %v1164
    %v1169 = vadd.f32 %v1150, %v1157
    %v1170 = vadd.f32 %v1151, %v1161
    %v1171 = vadd.f32 %v1152, %v1165
    %v1172 = vmax.f32 %v1169, 0.0
    %v1173 = vmax.f32 %v1170, 0.0
    %v1174 = vmax.f32 %v1171, 0.0
    %s1175 = scalar_lea.vmem [#allocation17], 3
    %v1176 = vld [vmem:[%s1175] ss:$8 sm:$0x3]
    %s1177 = scalar_lea.vmem [#allocation17], 4
    %v1178 = vld [vmem:[%s1177] ss:$8 sm:$0x3]
    %s1179 = scalar_lea.vmem [#allocation17], 5
    %v1180 = vld [vmem:[%s1179] ss:$8 sm:$0x3]
    %v1181 = vpack.c.bf16 %v1172, %v1172
    %v1182 = vpack.c.bf16 %v1173, %v1173
    %v1183 = vpack.c.bf16 %v1174, %v1174
    %v1184 = vld [vmem:[#allocation5] sm:$0xff]
    %v1185 = vld [vmem:[#allocation5 + $0x8] sm:$0xff]
    %v1186 = vld [vmem:[#allocation5 + $0x10] sm:$0xff]
    %v1187 = vld [vmem:[#allocation5 + $0x18] sm:$0xff]
    %v1188 = vld [vmem:[#allocation5 + $0x20] sm:$0xff]
    %v1189 = vld [vmem:[#allocation5 + $0x28] sm:$0xff]
    %v1190 = vld [vmem:[#allocation5 + $0x30] sm:$0xff]
    %v1191 = vld [vmem:[#allocation5 + $0x38] sm:$0xff]
    %v1192 = vld [vmem:[#allocation5 + $0x40] sm:$0xff]
    %v1193 = vld [vmem:[#allocation5 + $0x48] sm:$0xff]
    %v1194 = vld [vmem:[#allocation5 + $0x50] sm:$0xff]
    %v1195 = vld [vmem:[#allocation5 + $0x58] sm:$0xff]
    %v1196 = vld [vmem:[#allocation5 + $0x60] sm:$0xff]
    %v1197 = vld [vmem:[#allocation5 + $0x68] sm:$0xff]
    %v1198 = vld [vmem:[#allocation5 + $0x70] sm:$0xff]
    %v1199 = vld [vmem:[#allocation5 + $0x78] sm:$0xff]
    %v1200 = vld [vmem:[#allocation5 + $0x80] sm:$0xff]
    %v1201 = vld [vmem:[#allocation5 + $0x88] sm:$0xff]
    %v1202 = vld [vmem:[#allocation5 + $0x90] sm:$0xff]
    %v1203 = vld [vmem:[#allocation5 + $0x98] sm:$0xff]
    %v1204 = vld [vmem:[#allocation5 + $0xa0] sm:$0xff]
    %v1205 = vld [vmem:[#allocation5 + $0xa8] sm:$0xff]
    %v1206 = vld [vmem:[#allocation5 + $0xb0] sm:$0xff]
    %v1207 = vld [vmem:[#allocation5 + $0xb8] sm:$0xff]
    %v1208 = vld [vmem:[#allocation5 + $0xc0] sm:$0xff]
    %v1209 = vld [vmem:[#allocation5 + $0xc8] sm:$0xff]
    %v1210 = vld [vmem:[#allocation5 + $0xd0] sm:$0xff]
    %v1211 = vld [vmem:[#allocation5 + $0xd8] sm:$0xff]
    %v1212 = vld [vmem:[#allocation5 + $0xe0] sm:$0xff]
    %v1213 = vld [vmem:[#allocation5 + $0xe8] sm:$0xff]
    %v1214 = vld [vmem:[#allocation5 + $0xf0] sm:$0xff]
    %v1215 = vld [vmem:[#allocation5 + $0xf8] sm:$0xff]
    %v1216 = vld [vmem:[#allocation5 + $0x100] sm:$0xff]
    %v1217 = vld [vmem:[#allocation5 + $0x108] sm:$0xff]
    %v1218 = vld [vmem:[#allocation5 + $0x110] sm:$0xff]
    %v1219 = vld [vmem:[#allocation5 + $0x118] sm:$0xff]
    %v1220 = vld [vmem:[#allocation5 + $0x120] sm:$0xff]
    %v1221 = vld [vmem:[#allocation5 + $0x128] sm:$0xff]
    %v1222 = vld [vmem:[#allocation5 + $0x130] sm:$0xff]
    %v1223 = vld [vmem:[#allocation5 + $0x138] sm:$0xff]
    %v1224 = vld [vmem:[#allocation5 + $0x140] sm:$0xff]
    %v1225 = vld [vmem:[#allocation5 + $0x148] sm:$0xff]
    %v1226 = vld [vmem:[#allocation5 + $0x150] sm:$0xff]
    %v1227 = vld [vmem:[#allocation5 + $0x158] sm:$0xff]
    %v1228 = vld [vmem:[#allocation5 + $0x160] sm:$0xff]
    %v1229 = vld [vmem:[#allocation5 + $0x168] sm:$0xff]
    %v1230 = vld [vmem:[#allocation5 + $0x170] sm:$0xff]
    %v1231 = vld [vmem:[#allocation5 + $0x178] sm:$0xff]
    %v1233 = vlaneseq
    %v1234 = vshrl.u32 %v1233, 7
    %v1235 = vsub.s32 0, %v1234
    %v1236 = vrot.slane %v1176, %v1235
    %v1237 = vlaneseq
    %v1238 = vshrl.u32 %v1237, 7
    %v1239 = vsub.s32 1, %v1238
    %v1240 = vrot.slane %v1176, %v1239
    %v1291 = vunpack.c.l.b16 %v1184
    %v1292 = vunpack.c.h.b16 %v1184
    %v1293 = vunpack.c.l.b16 %v1185
    %v1294 = vunpack.c.h.b16 %v1185
    %v1295 = vunpack.c.l.b16 %v1186
    %v1296 = vunpack.c.h.b16 %v1186
    %v1297 = vunpack.c.l.b16 %v1187
    %v1298 = vunpack.c.h.b16 %v1187
    %v1299 = vunpack.c.l.b16 %v1188
    %v1300 = vunpack.c.h.b16 %v1188
    %v1301 = vunpack.c.l.b16 %v1189
    %v1302 = vunpack.c.h.b16 %v1189
    %v1303 = vunpack.c.l.b16 %v1190
    %v1304 = vunpack.c.h.b16 %v1190
    %v1305 = vunpack.c.l.b16 %v1191
    %v1306 = vunpack.c.h.b16 %v1191
    %v1307 = vunpack.c.l.b16 %v1192
    %v1308 = vunpack.c.h.b16 %v1192
    %v1309 = vunpack.c.l.b16 %v1193
    %v1310 = vunpack.c.h.b16 %v1193
    %v1311 = vunpack.c.l.b16 %v1194
    %v1312 = vunpack.c.h.b16 %v1194
    %v1313 = vunpack.c.l.b16 %v1195
    %v1314 = vunpack.c.h.b16 %v1195
    %v1315 = vunpack.c.l.b16 %v1196
    %v1316 = vunpack.c.h.b16 %v1196
    %v1317 = vunpack.c.l.b16 %v1197
    %v1318 = vunpack.c.h.b16 %v1197
    %v1319 = vunpack.c.l.b16 %v1198
    %v1320 = vunpack.c.h.b16 %v1198
    %v1321 = vunpack.c.l.b16 %v1199
    %v1322 = vunpack.c.h.b16 %v1199
    %v1323 = vunpack.c.l.b16 %v1200
    %v1324 = vunpack.c.h.b16 %v1200
    %v1325 = vunpack.c.l.b16 %v1201
    %v1326 = vunpack.c.h.b16 %v1201
    %v1327 = vunpack.c.l.b16 %v1202
    %v1328 = vunpack.c.h.b16 %v1202
    %v1329 = vunpack.c.l.b16 %v1203
    %v1330 = vunpack.c.h.b16 %v1203
    %v1331 = vunpack.c.l.b16 %v1204
    %v1332 = vunpack.c.h.b16 %v1204
    %v1333 = vunpack.c.l.b16 %v1205
    %v1334 = vunpack.c.h.b16 %v1205
    %v1335 = vunpack.c.l.b16 %v1206
    %v1336 = vunpack.c.h.b16 %v1206
    %v1337 = vunpack.c.l.b16 %v1207
    %v1338 = vunpack.c.h.b16 %v1207
    %v1339 = vunpack.c.l.b16 %v1208
    %v1340 = vunpack.c.h.b16 %v1208
    %v1341 = vunpack.c.l.b16 %v1209
    %v1342 = vunpack.c.h.b16 %v1209
    %v1343 = vunpack.c.l.b16 %v1210
    %v1344 = vunpack.c.h.b16 %v1210
    %v1345 = vunpack.c.l.b16 %v1211
    %v1346 = vunpack.c.h.b16 %v1211
    %v1347 = vunpack.c.l.b16 %v1212
    %v1348 = vunpack.c.h.b16 %v1212
    %v1349 = vunpack.c.l.b16 %v1213
    %v1350 = vunpack.c.h.b16 %v1213
    %v1351 = vunpack.c.l.b16 %v1214
    %v1352 = vunpack.c.h.b16 %v1214
    %v1353 = vunpack.c.l.b16 %v1215
    %v1354 = vunpack.c.h.b16 %v1215
    %v1355 = vunpack.c.l.b16 %v1216
    %v1356 = vunpack.c.h.b16 %v1216
    %v1357 = vunpack.c.l.b16 %v1217
    %v1358 = vunpack.c.h.b16 %v1217
    %v1359 = vunpack.c.l.b16 %v1218
    %v1360 = vunpack.c.h.b16 %v1218
    %v1361 = vunpack.c.l.b16 %v1219
    %v1362 = vunpack.c.h.b16 %v1219
    %v1363 = vunpack.c.l.b16 %v1220
    %v1364 = vunpack.c.h.b16 %v1220
    %v1365 = vunpack.c.l.b16 %v1221
    %v1366 = vunpack.c.h.b16 %v1221
    %v1367 = vunpack.c.l.b16 %v1222
    %v1368 = vunpack.c.h.b16 %v1222
    %v1369 = vunpack.c.l.b16 %v1223
    %v1370 = vunpack.c.h.b16 %v1223
    %v1371 = vunpack.c.l.b16 %v1224
    %v1372 = vunpack.c.h.b16 %v1224
    %v1373 = vunpack.c.l.b16 %v1225
    %v1374 = vunpack.c.h.b16 %v1225
    %v1375 = vunpack.c.l.b16 %v1226
    %v1376 = vunpack.c.h.b16 %v1226
    %v1377 = vunpack.c.l.b16 %v1227
    %v1378 = vunpack.c.h.b16 %v1227
    %v1379 = vunpack.c.l.b16 %v1228
    %v1380 = vunpack.c.h.b16 %v1228
    %v1381 = vunpack.c.l.b16 %v1229
    %v1382 = vunpack.c.h.b16 %v1229
    %v1383 = vunpack.c.l.b16 %v1230
    %v1384 = vunpack.c.h.b16 %v1230
    %v1385 = vunpack.c.l.b16 %v1231
    %v1386 = vunpack.c.h.b16 %v1231
    %v1387 = vpack.c.b16 %v1293, %v1291
    %v1388 = vpack.c.b16 %v1294, %v1292
    %v1389 = vpack.c.b16 %v1297, %v1295
    %v1390 = vpack.c.b16 %v1298, %v1296
    %v1391 = vpack.c.b16 %v1301, %v1299
    %v1392 = vpack.c.b16 %v1302, %v1300
    %v1393 = vpack.c.b16 %v1305, %v1303
    %v1394 = vpack.c.b16 %v1306, %v1304
    %v1395 = vpack.c.b16 %v1309, %v1307
    %v1396 = vpack.c.b16 %v1310, %v1308
    %v1397 = vpack.c.b16 %v1313, %v1311
    %v1398 = vpack.c.b16 %v1314, %v1312
    %v1399 = vpack.c.b16 %v1317, %v1315
    %v1400 = vpack.c.b16 %v1318, %v1316
    %v1401 = vpack.c.b16 %v1321, %v1319
    %v1402 = vpack.c.b16 %v1322, %v1320
    %v1403 = vpack.c.b16 %v1325, %v1323
    %v1404 = vpack.c.b16 %v1326, %v1324
    %v1405 = vpack.c.b16 %v1329, %v1327
    %v1406 = vpack.c.b16 %v1330, %v1328
    %v1407 = vpack.c.b16 %v1333, %v1331
    %v1408 = vpack.c.b16 %v1334, %v1332
    %v1409 = vpack.c.b16 %v1337, %v1335
    %v1410 = vpack.c.b16 %v1338, %v1336
    %v1411 = vpack.c.b16 %v1341, %v1339
    %v1412 = vpack.c.b16 %v1342, %v1340
    %v1413 = vpack.c.b16 %v1345, %v1343
    %v1414 = vpack.c.b16 %v1346, %v1344
    %v1415 = vpack.c.b16 %v1349, %v1347
    %v1416 = vpack.c.b16 %v1350, %v1348
    %v1417 = vpack.c.b16 %v1353, %v1351
    %v1418 = vpack.c.b16 %v1354, %v1352
    %v1419 = vpack.c.b16 %v1357, %v1355
    %v1420 = vpack.c.b16 %v1358, %v1356
    %v1421 = vpack.c.b16 %v1361, %v1359
    %v1422 = vpack.c.b16 %v1362, %v1360
    %v1423 = vpack.c.b16 %v1365, %v1363
    %v1424 = vpack.c.b16 %v1366, %v1364
    %v1425 = vpack.c.b16 %v1369, %v1367
    %v1426 = vpack.c.b16 %v1370, %v1368
    %v1427 = vpack.c.b16 %v1373, %v1371
    %v1428 = vpack.c.b16 %v1374, %v1372
    %v1429 = vpack.c.b16 %v1377, %v1375
    %v1430 = vpack.c.b16 %v1378, %v1376
    %v1431 = vpack.c.b16 %v1381, %v1379
    %v1432 = vpack.c.b16 %v1382, %v1380
    %v1433 = vpack.c.b16 %v1385, %v1383
    %v1434 = vpack.c.b16 %v1386, %v1384
    %1483 = vmatprep.subr.bf16.mxu0 %v1388
    %1484 = vmatpush1.bf16.msra.mxu0 %v1387
    %1485 = vmatprep.subr.bf16.mxu0 %v1390
    %1486 = vmatpush1.bf16.msra.mxu0 %v1389
    %1487 = vmatprep.subr.bf16.mxu0 %v1392
    %1488 = vmatpush1.bf16.msra.mxu0 %v1391
    %1489 = vmatprep.subr.bf16.mxu0 %v1394
    %1490 = vmatpush1.bf16.msra.mxu0 %v1393
    %1491 = vmatprep.subr.bf16.mxu0 %v1396
    %1492 = vmatpush1.bf16.msra.mxu0 %v1395
    %1493 = vmatprep.subr.bf16.mxu0 %v1398
    %1494 = vmatpush1.bf16.msra.mxu0 %v1397
    %1495 = vmatprep.subr.bf16.mxu0 %v1400
    %1496 = vmatpush1.bf16.msra.mxu0 %v1399
    %1497 = vmatprep.subr.bf16.mxu0 %v1402
    %1498 = vmatpush1.bf16.msra.mxu0 %v1401
    %1499 = vmatprep.subr.bf16.mxu0 %v1404
    %1500 = vmatpush1.bf16.msra.mxu0 %v1403
    %1501 = vmatprep.subr.bf16.mxu0 %v1406
    %1502 = vmatpush1.bf16.msra.mxu0 %v1405
    %1503 = vmatprep.subr.bf16.mxu0 %v1408
    %1504 = vmatpush1.bf16.msra.mxu0 %v1407
    %1505 = vmatprep.subr.bf16.mxu0 %v1410
    %1506 = vmatpush1.bf16.msra.mxu0 %v1409
    %1507 = vmatprep.subr.bf16.mxu0 %v1412
    %1508 = vmatpush1.bf16.msra.mxu0 %v1411
    %1509 = vmatprep.subr.bf16.mxu0 %v1414
    %1510 = vmatpush1.bf16.msra.mxu0 %v1413
    %1511 = vmatprep.subr.bf16.mxu0 %v1416
    %1512 = vmatpush1.bf16.msra.mxu0 %v1415
    %1513 = vmatprep.subr.bf16.mxu0 %v1418
    %1514 = vmatpush1.bf16.msra.mxu0 %v1417
    %1515 = vmatprep.mubr.bf16.mxu0 %v1182
    %1516 = vmatmul.mubr.bf16.gmra.mrb[0].mxu0 %v1181
    %v1517 = vpop.f32.mrb[0].mxu0
    %v1518 = vadd.f32 %v1236, %v1517
    %v1519 = vpop.f32.mrb[0].mxu0
    %v1520 = vadd.f32 %v1240, %v1519
    %v1521 = vpop.f32.mrb[0].mxu0
    %v1522 = vpop.f32.mrb[0].mxu0
    %1523 = vdwg.mxu0
    %1524 = vmatprep.subr.bf16.mxu0 %v1420
    %1525 = vmatpush1.bf16.msra.mxu0 %v1419
    %1526 = vmatprep.subr.bf16.mxu0 %v1422
    %1527 = vmatpush1.bf16.msra.mxu0 %v1421
    %1528 = vmatprep.subr.bf16.mxu0 %v1424
    %1529 = vmatpush1.bf16.msra.mxu0 %v1423
    %1530 = vmatprep.subr.bf16.mxu0 %v1426
    %1531 = vmatpush1.bf16.msra.mxu0 %v1425
    %1532 = vmatprep.subr.bf16.mxu0 %v1428
    %1533 = vmatpush1.bf16.msra.mxu0 %v1427
    %1534 = vmatprep.subr.bf16.mxu0 %v1430
    %1535 = vmatpush1.bf16.msra.mxu0 %v1429
    %1536 = vmatprep.subr.bf16.mxu0 %v1432
    %1537 = vmatpush1.bf16.msra.mxu0 %v1431
    %1538 = vmatprep.subr.bf16.mxu0 %v1434
    %1539 = vmatpush1.bf16.msra.mxu0 %v1433
    %1540 = vmatprep.subr.bf16.mxu0 0
    %1541 = vmatpush1.bf16.msra.mxu0 0
    %1542 = vmatprep.subr.bf16.mxu0 0
    %1543 = vmatpush1.bf16.msra.mxu0 0
    %1544 = vmatprep.subr.bf16.mxu0 0
    %1545 = vmatpush1.bf16.msra.mxu0 0
    %1546 = vmatprep.subr.bf16.mxu0 0
    %1547 = vmatpush1.bf16.msra.mxu0 0
    %1548 = vmatprep.subr.bf16.mxu0 0
    %1549 = vmatpush1.bf16.msra.mxu0 0
    %1550 = vmatprep.subr.bf16.mxu0 0
    %1551 = vmatpush1.bf16.msra.mxu0 0
    %1552 = vmatprep.subr.bf16.mxu0 0
    %1553 = vmatpush1.bf16.msra.mxu0 0
    %1554 = vmatprep.subr.bf16.mxu0 0
    %1555 = vmatpush1.bf16.msra.mxu0 0
    %1556 = vmatprep.mubr.bf16.mxu0 0
    %1557 = vmatmul.mubr.bf16.gmra.mrb[0].mxu0 %v1183
    %v1558 = vpop.f32.mrb[0].mxu0
    %v1559 = vadd.f32 %v1518, %v1558
    %v1560 = vpop.f32.mrb[0].mxu0
    %v1561 = vadd.f32 %v1520, %v1560
    %v1562 = vpop.f32.mrb[0].mxu0
    %v1563 = vpop.f32.mrb[0].mxu0
    %1564 = vdwg.mxu0
    %v1565 = vrot.slane %v1559, 4
    %v1566 = vadd.f32 %v1559, %v1565
    %v1567 = vrot.slane %v1566, 2
    %v1568 = vadd.f32 %v1566, %v1567
    %v1569 = vrot.slane %v1568, 1
    %v1570 = vadd.f32 %v1568, %v1569
    %v1571 = vrot.slane %v1561, 4
    %v1572 = vadd.f32 %v1561, %v1571
    %v1573 = vrot.slane %v1572, 2
    %v1574 = vadd.f32 %v1572, %v1573
    %v1575 = vrot.slane %v1574, 1
    %v1576 = vadd.f32 %v1574, %v1575
    %v1577 = vmul.f32 %v1570, %v1035
    %v1578 = vmul.f32 %v1576, %v1035
    %v1579 = vmul.f32 %v1559, %v1559
    %v1580 = vmul.f32 %v1561, %v1561
    %v1581 = vrot.slane %v1579, 4
    %v1582 = vadd.f32 %v1579, %v1581
    %v1583 = vrot.slane %v1582, 2
    %v1584 = vadd.f32 %v1582, %v1583
    %v1585 = vrot.slane %v1584, 1
    %v1586 = vadd.f32 %v1584, %v1585
    %v1587 = vrot.slane %v1580, 4
    %v1588 = vadd.f32 %v1580, %v1587
    %v1589 = vrot.slane %v1588, 2
    %v1590 = vadd.f32 %v1588, %v1589
    %v1591 = vrot.slane %v1590, 1
    %v1592 = vadd.f32 %v1590, %v1591
    %v1593 = vmul.f32 %v1586, %v1035
    %v1594 = vmul.f32 %v1592, %v1035
    %v1595 = vmul.f32 %v1577, %v1577
    %v1596 = vmul.f32 %v1578, %v1578
    %v1597 = vsub.f32 %v1593, %v1595
    %v1598 = vsub.f32 %v1594, %v1596
    %v1599 = vadd.f32 %v1597, 1e-05
    %v1600 = vadd.f32 %v1598, 1e-05
    %v1601 = vrsqrt.pop %v1599
    %v1602 = vrsqrt.pop %v1600
    %v1605 = vcombine.low %v1601, %v1602
    %v1607 = vunpack.c.l.s4 1966171168
    %v1608 = vunpack.c.0.s8 %v1607
    %v1609 = vlaneseq
    %v1610 = vshrl.u32 %v1609, 7
    %v1611 = vsub.s32 %v1608, %v1610
    %v1612 = vrot.slane %v1605, %v1611
    %v1614 = vunpack.c.l.s4 1966171168
    %v1615 = vunpack.c.0.s8 %v1614
    %v1616 = vlaneseq
    %v1617 = vshrl.u32 %v1616, 7
    %v1618 = vsub.s32 %v1615, %v1617
    %v1619 = vrot.slane %v1612, %v1618
    %v1621 = vmul.f32 %v1178, %v1619
    %v1623 = vlaneseq
    %v1624 = vshrl.u32 %v1623, 7
    %v1625 = vsub.s32 0, %v1624
    %v1626 = vrot.slane %v1621, %v1625
    %v1627 = vlaneseq
    %v1628 = vshrl.u32 %v1627, 7
    %v1629 = vsub.s32 1, %v1628
    %v1630 = vrot.slane %v1621, %v1629
    %v1633 = vmul.f32 %v1577, %v1626
    %v1634 = vmul.f32 %v1578, %v1630
    %v1637 = vcombine.low %v1633, %v1634
    %v1639 = vunpack.c.l.s4 1966171168
    %v1640 = vunpack.c.0.s8 %v1639
    %v1641 = vlaneseq
    %v1642 = vshrl.u32 %v1641, 7
    %v1643 = vsub.s32 %v1640, %v1642
    %v1644 = vrot.slane %v1637, %v1643
    %v1646 = vunpack.c.l.s4 1966171168
    %v1647 = vunpack.c.0.s8 %v1646
    %v1648 = vlaneseq
    %v1649 = vshrl.u32 %v1648, 7
    %v1650 = vsub.s32 %v1647, %v1649
    %v1651 = vrot.slane %v1644, %v1650
    %v1653 = vsub.f32 %v1180, %v1651
    %v1654 = vmul.f32 %v1559, %v1626
    %v1655 = vmul.f32 %v1561, %v1630
    %v1657 = vlaneseq
    %v1658 = vshrl.u32 %v1657, 7
    %v1659 = vsub.s32 0, %v1658
    %v1660 = vrot.slane %v1653, %v1659
    %v1661 = vlaneseq
    %v1662 = vshrl.u32 %v1661, 7
    %v1663 = vsub.s32 1, %v1662
    %v1664 = vrot.slane %v1653, %v1663
    %v1667 = vadd.f32 %v1654, %v1660
    %v1668 = vadd.f32 %v1655, %v1664
    %v1669 = vmax.f32 %v1667, 0.0
    %v1670 = vmax.f32 %v1668, 0.0
    %v1671 = vld [vmem:[#allocation17 + $0x6] ss:$0 sm:$0xff]
    %v1672 = vld [vmem:[#allocation17 + $0x7] ss:$0 sm:$0xff]
    %v1673 = vld [vmem:[#allocation17 + $0x20] ss:$0 sm:$0xff]
    %v1674 = vpack.c.bf16 %v1669, %v1669
    %v1675 = vpack.c.bf16 %v1670, %v1670
    %v1676 = vld [vmem:[%s4] sm:$0xf]
    %v1677 = vld [vmem:[%s4 + $0x4] sm:$0xf]
    %v1678 = vld [vmem:[%s4 + $0x8] sm:$0xf]
    %v1679 = vld [vmem:[%s4 + $0xc] sm:$0xf]
    %v1680 = vld [vmem:[%s4 + $0x10] sm:$0xf]
    %v1681 = vld [vmem:[%s4 + $0x14] sm:$0xf]
    %v1682 = vld [vmem:[%s4 + $0x18] sm:$0xf]
    %v1683 = vld [vmem:[%s4 + $0x1c] sm:$0xf]
    %v1684 = vld [vmem:[%s4 + $0x20] sm:$0xf]
    %v1685 = vld [vmem:[%s4 + $0x24] sm:$0xf]
    %v1686 = vld [vmem:[%s4 + $0x28] sm:$0xf]
    %v1687 = vld [vmem:[%s4 + $0x2c] sm:$0xf]
    %v1688 = vld [vmem:[%s4 + $0x30] sm:$0xf]
    %v1689 = vld [vmem:[%s4 + $0x34] sm:$0xf]
    %v1690 = vld [vmem:[%s4 + $0x38] sm:$0xf]
    %v1691 = vld [vmem:[%s4 + $0x3c] sm:$0xf]
    %v1692 = vld [vmem:[%s4 + $0x40] sm:$0xf]
    %v1693 = vld [vmem:[%s4 + $0x44] sm:$0xf]
    %v1694 = vld [vmem:[%s4 + $0x48] sm:$0xf]
    %v1695 = vld [vmem:[%s4 + $0x4c] sm:$0xf]
    %v1696 = vld [vmem:[%s4 + $0x50] sm:$0xf]
    %v1697 = vld [vmem:[%s4 + $0x54] sm:$0xf]
    %v1698 = vld [vmem:[%s4 + $0x58] sm:$0xf]
    %v1699 = vld [vmem:[%s4 + $0x5c] sm:$0xf]
    %v1700 = vld [vmem:[%s4 + $0x60] sm:$0xf]
    %v1701 = vld [vmem:[%s4 + $0x64] sm:$0xf]
    %v1702 = vld [vmem:[%s4 + $0x68] sm:$0xf]
    %v1703 = vld [vmem:[%s4 + $0x6c] sm:$0xf]
    %v1704 = vld [vmem:[%s4 + $0x70] sm:$0xf]
    %v1705 = vld [vmem:[%s4 + $0x74] sm:$0xf]
    %v1706 = vld [vmem:[%s4 + $0x78] sm:$0xf]
    %v1707 = vld [vmem:[%s4 + $0x7c] sm:$0xf]
    %v1740 = vunpack.c.l.b16 %v1676
    %v1741 = vunpack.c.l.b16 %v1677
    %v1742 = vunpack.c.l.b16 %v1678
    %v1743 = vunpack.c.l.b16 %v1679
    %v1744 = vunpack.c.l.b16 %v1680
    %v1745 = vunpack.c.l.b16 %v1681
    %v1746 = vunpack.c.l.b16 %v1682
    %v1747 = vunpack.c.l.b16 %v1683
    %v1748 = vunpack.c.l.b16 %v1684
    %v1749 = vunpack.c.l.b16 %v1685
    %v1750 = vunpack.c.l.b16 %v1686
    %v1751 = vunpack.c.l.b16 %v1687
    %v1752 = vunpack.c.l.b16 %v1688
    %v1753 = vunpack.c.l.b16 %v1689
    %v1754 = vunpack.c.l.b16 %v1690
    %v1755 = vunpack.c.l.b16 %v1691
    %v1756 = vunpack.c.l.b16 %v1692
    %v1757 = vunpack.c.l.b16 %v1693
    %v1758 = vunpack.c.l.b16 %v1694
    %v1759 = vunpack.c.l.b16 %v1695
    %v1760 = vunpack.c.l.b16 %v1696
    %v1761 = vunpack.c.l.b16 %v1697
    %v1762 = vunpack.c.l.b16 %v1698
    %v1763 = vunpack.c.l.b16 %v1699
    %v1764 = vunpack.c.l.b16 %v1700
    %v1765 = vunpack.c.l.b16 %v1701
    %v1766 = vunpack.c.l.b16 %v1702
    %v1767 = vunpack.c.l.b16 %v1703
    %v1768 = vunpack.c.l.b16 %v1704
    %v1769 = vunpack.c.l.b16 %v1705
    %v1770 = vunpack.c.l.b16 %v1706
    %v1771 = vunpack.c.l.b16 %v1707
    %v1772 = vpack.c.b16 %v1741, %v1740
    %v1773 = vpack.c.b16 %v1743, %v1742
    %v1774 = vpack.c.b16 %v1745, %v1744
    %v1775 = vpack.c.b16 %v1747, %v1746
    %v1776 = vpack.c.b16 %v1749, %v1748
    %v1777 = vpack.c.b16 %v1751, %v1750
    %v1778 = vpack.c.b16 %v1753, %v1752
    %v1779 = vpack.c.b16 %v1755, %v1754
    %v1780 = vpack.c.b16 %v1757, %v1756
    %v1781 = vpack.c.b16 %v1759, %v1758
    %v1782 = vpack.c.b16 %v1761, %v1760
    %v1783 = vpack.c.b16 %v1763, %v1762
    %v1784 = vpack.c.b16 %v1765, %v1764
    %v1785 = vpack.c.b16 %v1767, %v1766
    %v1786 = vpack.c.b16 %v1769, %v1768
    %v1787 = vpack.c.b16 %v1771, %v1770
    %1804 = vmatprep.subr.bf16.mxu0 0
    %1805 = vmatpush1.bf16.msra.mxu0 %v1772
    %1806 = vmatprep.subr.bf16.mxu0 0
    %1807 = vmatpush1.bf16.msra.mxu0 %v1773
    %1808 = vmatprep.subr.bf16.mxu0 0
    %1809 = vmatpush1.bf16.msra.mxu0 %v1774
    %1810 = vmatprep.subr.bf16.mxu0 0
    %1811 = vmatpush1.bf16.msra.mxu0 %v1775
    %1812 = vmatprep.subr.bf16.mxu0 0
    %1813 = vmatpush1.bf16.msra.mxu0 %v1776
    %1814 = vmatprep.subr.bf16.mxu0 0
    %1815 = vmatpush1.bf16.msra.mxu0 %v1777
    %1816 = vmatprep.subr.bf16.mxu0 0
    %1817 = vmatpush1.bf16.msra.mxu0 %v1778
    %1818 = vmatprep.subr.bf16.mxu0 0
    %1819 = vmatpush1.bf16.msra.mxu0 %v1779
    %1820 = vmatprep.subr.bf16.mxu0 0
    %1821 = vmatpush1.bf16.msra.mxu0 %v1780
    %1822 = vmatprep.subr.bf16.mxu0 0
    %1823 = vmatpush1.bf16.msra.mxu0 %v1781
    %1824 = vmatprep.subr.bf16.mxu0 0
    %1825 = vmatpush1.bf16.msra.mxu0 %v1782
    %1826 = vmatprep.subr.bf16.mxu0 0
    %1827 = vmatpush1.bf16.msra.mxu0 %v1783
    %1828 = vmatprep.subr.bf16.mxu0 0
    %1829 = vmatpush1.bf16.msra.mxu0 %v1784
    %1830 = vmatprep.subr.bf16.mxu0 0
    %1831 = vmatpush1.bf16.msra.mxu0 %v1785
    %1832 = vmatprep.subr.bf16.mxu0 0
    %1833 = vmatpush1.bf16.msra.mxu0 %v1786
    %1834 = vmatprep.subr.bf16.mxu0 0
    %1835 = vmatpush1.bf16.msra.mxu0 %v1787
    %1836 = vmatprep.mubr.bf16.mxu0 %v1675
    %1837 = vmatmul.mubr.bf16.gmra.mrb[0].mxu0 %v1674
    %v1838 = vpop.f32.mrb[0].mxu0
    %v1839 = vadd.f32 %v1671, %v1838
    %v1840 = vpop.f32.mrb[0].mxu0
    %v1841 = vpop.f32.mrb[0].mxu0
    %v1842 = vpop.f32.mrb[0].mxu0
    %1843 = vdwg.mxu0
    %v1844 = vrot.slane %v1839, 4
    %v1845 = vadd.f32 %v1839, %v1844
    %v1846 = vrot.slane %v1845, 2
    %v1847 = vadd.f32 %v1845, %v1846
    %v1848 = vrot.slane %v1847, 1
    %v1849 = vadd.f32 %v1847, %v1848
    %v1850 = vmul.f32 %v1849, %v1035
    %v1851 = vmul.f32 %v1839, %v1839
    %v1852 = vrot.slane %v1851, 4
    %v1853 = vadd.f32 %v1851, %v1852
    %v1854 = vrot.slane %v1853, 2
    %v1855 = vadd.f32 %v1853, %v1854
    %v1856 = vrot.slane %v1855, 1
    %v1857 = vadd.f32 %v1855, %v1856
    %v1858 = vmul.f32 %v1857, %v1035
    %v1859 = vmul.f32 %v1850, %v1850
    %v1860 = vsub.f32 %v1858, %v1859
    %v1861 = vadd.f32 %v1860, 1e-05
    %v1862 = vrsqrt.pop %v1861
    %v1863 = vmul.f32 %v1672, %v1862
    %v1864 = vmul.f32 %v1850, %v1863
    %v1865 = vsub.f32 %v1673, %v1864
    %v1866 = vmul.f32 %v1839, %v1863
    %v1867 = vadd.f32 %v1866, %v1865
    %v1868 = vmax.f32 %v1867, 0.0
    %v1869 = vld [vmem:[#allocation17 + $0x21] ss:$0 sm:$0xff]
    %v1870 = vld [vmem:[#allocation17 + $0x22] ss:$0 sm:$0xff]
    %v1871 = vld [vmem:[#allocation17 + $0x23] ss:$0 sm:$0xff]
    %v1872 = vpack.c.bf16 %v1868, %v1868
    %v1873 = vld [vmem:[#allocation7] sm:$0xf]
    %v1874 = vld [vmem:[#allocation7 + $0x4] sm:$0xf]
    %v1875 = vld [vmem:[#allocation7 + $0x8] sm:$0xf]
    %v1876 = vld [vmem:[#allocation7 + $0xc] sm:$0xf]
    %v1877 = vld [vmem:[#allocation7 + $0x10] sm:$0xf]
    %v1878 = vld [vmem:[#allocation7 + $0x14] sm:$0xf]
    %v1879 = vld [vmem:[#allocation7 + $0x18] sm:$0xf]
    %v1880 = vld [vmem:[#allocation7 + $0x1c] sm:$0xf]
    %v1881 = vld [vmem:[#allocation7 + $0x20] sm:$0xf]
    %v1882 = vld [vmem:[#allocation7 + $0x24] sm:$0xf]
    %v1883 = vld [vmem:[#allocation7 + $0x28] sm:$0xf]
    %v1884 = vld [vmem:[#allocation7 + $0x2c] sm:$0xf]
    %v1885 = vld [vmem:[#allocation7 + $0x30] sm:$0xf]
    %v1886 = vld [vmem:[#allocation7 + $0x34] sm:$0xf]
    %v1887 = vld [vmem:[#allocation7 + $0x38] sm:$0xf]
    %v1888 = vld [vmem:[#allocation7 + $0x3c] sm:$0xf]
    %v1905 = vunpack.c.l.b16 %v1873
    %v1906 = vunpack.c.l.b16 %v1874
    %v1907 = vunpack.c.l.b16 %v1875
    %v1908 = vunpack.c.l.b16 %v1876
    %v1909 = vunpack.c.l.b16 %v1877
    %v1910 = vunpack.c.l.b16 %v1878
    %v1911 = vunpack.c.l.b16 %v1879
    %v1912 = vunpack.c.l.b16 %v1880
    %v1913 = vunpack.c.l.b16 %v1881
    %v1914 = vunpack.c.l.b16 %v1882
    %v1915 = vunpack.c.l.b16 %v1883
    %v1916 = vunpack.c.l.b16 %v1884
    %v1917 = vunpack.c.l.b16 %v1885
    %v1918 = vunpack.c.l.b16 %v1886
    %v1919 = vunpack.c.l.b16 %v1887
    %v1920 = vunpack.c.l.b16 %v1888
    %v1921 = vpack.c.b16 %v1906, %v1905
    %v1922 = vpack.c.b16 %v1908, %v1907
    %v1923 = vpack.c.b16 %v1910, %v1909
    %v1924 = vpack.c.b16 %v1912, %v1911
    %v1925 = vpack.c.b16 %v1914, %v1913
    %v1926 = vpack.c.b16 %v1916, %v1915
    %v1927 = vpack.c.b16 %v1918, %v1917
    %v1928 = vpack.c.b16 %v1920, %v1919
    %1937 = vmatprep.subr.bf16.mxu0 0
    %1938 = vmatpush1.bf16.msra.mxu0 %v1921
    %1939 = vmatprep.subr.bf16.mxu0 0
    %1940 = vmatpush1.bf16.msra.mxu0 %v1922
    %1941 = vmatprep.subr.bf16.mxu0 0
    %1942 = vmatpush1.bf16.msra.mxu0 %v1923
    %1943 = vmatprep.subr.bf16.mxu0 0
    %1944 = vmatpush1.bf16.msra.mxu0 %v1924
    %1945 = vmatprep.subr.bf16.mxu0 0
    %1946 = vmatpush1.bf16.msra.mxu0 %v1925
    %1947 = vmatprep.subr.bf16.mxu0 0
    %1948 = vmatpush1.bf16.msra.mxu0 %v1926
    %1949 = vmatprep.subr.bf16.mxu0 0
    %1950 = vmatpush1.bf16.msra.mxu0 %v1927
    %1951 = vmatprep.subr.bf16.mxu0 0
    %1952 = vmatpush1.bf16.msra.mxu0 %v1928
    %1953 = vmatprep.subr.bf16.mxu0 0
    %1954 = vmatpush1.bf16.msra.mxu0 0
    %1955 = vmatprep.subr.bf16.mxu0 0
    %1956 = vmatpush1.bf16.msra.mxu0 0
    %1957 = vmatprep.subr.bf16.mxu0 0
    %1958 = vmatpush1.bf16.msra.mxu0 0
    %1959 = vmatprep.subr.bf16.mxu0 0
    %1960 = vmatpush1.bf16.msra.mxu0 0
    %1961 = vmatprep.subr.bf16.mxu0 0
    %1962 = vmatpush1.bf16.msra.mxu0 0
    %1963 = vmatprep.subr.bf16.mxu0 0
    %1964 = vmatpush1.bf16.msra.mxu0 0
    %1965 = vmatprep.subr.bf16.mxu0 0
    %1966 = vmatpush1.bf16.msra.mxu0 0
    %1967 = vmatprep.subr.bf16.mxu0 0
    %1968 = vmatpush1.bf16.msra.mxu0 0
    %1969 = vmatprep.mubr.bf16.mxu0 0
    %1970 = vmatmul.mubr.bf16.gmra.mrb[0].mxu0 %v1872
    %v1971 = vpop.f32.mrb[0].mxu0
    %v1972 = vadd.f32 %v1869, %v1971
    %v1973 = vpop.f32.mrb[0].mxu0
    %v1974 = vpop.f32.mrb[0].mxu0
    %v1975 = vpop.f32.mrb[0].mxu0
    %1976 = vdwg.mxu0
    %v1977 = vrot.slane %v1972, 4
    %v1978 = vadd.f32 %v1972, %v1977
    %v1979 = vrot.slane %v1978, 2
    %v1980 = vadd.f32 %v1978, %v1979
    %v1981 = vrot.slane %v1980, 1
    %v1982 = vadd.f32 %v1980, %v1981
    %v1983 = vmul.f32 %v1982, %v1035
    %v1984 = vmul.f32 %v1972, %v1972
    %v1985 = vrot.slane %v1984, 4
    %v1986 = vadd.f32 %v1984, %v1985
    %v1987 = vrot.slane %v1986, 2
    %v1988 = vadd.f32 %v1986, %v1987
    %v1989 = vrot.slane %v1988, 1
    %v1990 = vadd.f32 %v1988, %v1989
    %v1991 = vmul.f32 %v1990, %v1035
    %v1992 = vmul.f32 %v1983, %v1983
    %v1993 = vsub.f32 %v1991, %v1992
    %v1994 = vadd.f32 %v1993, 1e-05
    %v1995 = vrsqrt.pop %v1994
    %v1996 = vmul.f32 %v1870, %v1995
    %v1997 = vmul.f32 %v1983, %v1996
    %v1998 = vsub.f32 %v1871, %v1997
    %v1999 = vmul.f32 %v1972, %v1996
    %v2000 = vadd.f32 %v1999, %v1998
    %v2001 = vmax.f32 %v2000, 0.0
    %s2002 = scalar_lea.vmem [#allocation17], 36
    %v2003 = vld [vmem:[%s2002] ss:$8 sm:$0x3]
    %v2004 = vpack.c.bf16 %v2001, %v2001
    %v2005 = vld [vmem:[#allocation8] sm:$0xff]
    %v2006 = vld [vmem:[#allocation8 + $0x8] sm:$0xff]
    %v2007 = vld [vmem:[#allocation8 + $0x10] sm:$0xff]
    %v2008 = vld [vmem:[#allocation8 + $0x18] sm:$0xff]
    %v2009 = vld [vmem:[#allocation8 + $0x20] sm:$0xff]
    %v2010 = vld [vmem:[#allocation8 + $0x28] sm:$0xff]
    %v2011 = vld [vmem:[#allocation8 + $0x30] sm:$0xff]
    %v2012 = vld [vmem:[#allocation8 + $0x38] sm:$0xff]
    %v2013 = vld [vmem:[#allocation8 + $0x40] sm:$0xff]
    %v2014 = vld [vmem:[#allocation8 + $0x48] sm:$0xff]
    %v2015 = vld [vmem:[#allocation8 + $0x50] sm:$0xff]
    %v2016 = vld [vmem:[#allocation8 + $0x58] sm:$0xff]
    %v2017 = vld [vmem:[#allocation8 + $0x60] sm:$0xff]
    %v2018 = vld [vmem:[#allocation8 + $0x68] sm:$0xff]
    %v2019 = vld [vmem:[#allocation8 + $0x70] sm:$0xff]
    %v2020 = vld [vmem:[#allocation8 + $0x78] sm:$0xff]
    %v2022 = vlaneseq
    %v2023 = vshrl.u32 %v2022, 7
    %v2024 = vsub.s32 0, %v2023
    %v2025 = vrot.slane %v2003, %v2024
    %v2026 = vlaneseq
    %v2027 = vshrl.u32 %v2026, 7
    %v2028 = vsub.s32 1, %v2027
    %v2029 = vrot.slane %v2003, %v2028
    %v2048 = vunpack.c.l.b16 %v2005
    %v2049 = vunpack.c.h.b16 %v2005
    %v2050 = vunpack.c.l.b16 %v2006
    %v2051 = vunpack.c.h.b16 %v2006
    %v2052 = vunpack.c.l.b16 %v2007
    %v2053 = vunpack.c.h.b16 %v2007
    %v2054 = vunpack.c.l.b16 %v2008
    %v2055 = vunpack.c.h.b16 %v2008
    %v2056 = vunpack.c.l.b16 %v2009
    %v2057 = vunpack.c.h.b16 %v2009
    %v2058 = vunpack.c.l.b16 %v2010
    %v2059 = vunpack.c.h.b16 %v2010
    %v2060 = vunpack.c.l.b16 %v2011
    %v2061 = vunpack.c.h.b16 %v2011
    %v2062 = vunpack.c.l.b16 %v2012
    %v2063 = vunpack.c.h.b16 %v2012
    %v2064 = vunpack.c.l.b16 %v2013
    %v2065 = vunpack.c.h.b16 %v2013
    %v2066 = vunpack.c.l.b16 %v2014
    %v2067 = vunpack.c.h.b16 %v2014
    %v2068 = vunpack.c.l.b16 %v2015
    %v2069 = vunpack.c.h.b16 %v2015
    %v2070 = vunpack.c.l.b16 %v2016
    %v2071 = vunpack.c.h.b16 %v2016
    %v2072 = vunpack.c.l.b16 %v2017
    %v2073 = vunpack.c.h.b16 %v2017
    %v2074 = vunpack.c.l.b16 %v2018
    %v2075 = vunpack.c.h.b16 %v2018
    %v2076 = vunpack.c.l.b16 %v2019
    %v2077 = vunpack.c.h.b16 %v2019
    %v2078 = vunpack.c.l.b16 %v2020
    %v2079 = vunpack.c.h.b16 %v2020
    %v2080 = vpack.c.b16 %v2050, %v2048
    %v2081 = vpack.c.b16 %v2051, %v2049
    %v2082 = vpack.c.b16 %v2054, %v2052
    %v2083 = vpack.c.b16 %v2055, %v2053
    %v2084 = vpack.c.b16 %v2058, %v2056
    %v2085 = vpack.c.b16 %v2059, %v2057
    %v2086 = vpack.c.b16 %v2062, %v2060
    %v2087 = vpack.c.b16 %v2063, %v2061
    %v2088 = vpack.c.b16 %v2066, %v2064
    %v2089 = vpack.c.b16 %v2067, %v2065
    %v2090 = vpack.c.b16 %v2070, %v2068
    %v2091 = vpack.c.b16 %v2071, %v2069
    %v2092 = vpack.c.b16 %v2074, %v2072
    %v2093 = vpack.c.b16 %v2075, %v2073
    %v2094 = vpack.c.b16 %v2078, %v2076
    %v2095 = vpack.c.b16 %v2079, %v2077
    %2112 = vmatprep.subr.bf16.mxu0 %v2081
    %2113 = vmatpush1.bf16.msra.mxu0 %v2080
    %2114 = vmatprep.subr.bf16.mxu0 %v2083
    %2115 = vmatpush1.bf16.msra.mxu0 %v2082
    %2116 = vmatprep.subr.bf16.mxu0 %v2085
    %2117 = vmatpush1.bf16.msra.mxu0 %v2084
    %2118 = vmatprep.subr.bf16.mxu0 %v2087
    %2119 = vmatpush1.bf16.msra.mxu0 %v2086
    %2120 = vmatprep.subr.bf16.mxu0 %v2089
    %2121 = vmatpush1.bf16.msra.mxu0 %v2088
    %2122 = vmatprep.subr.bf16.mxu0 %v2091
    %2123 = vmatpush1.bf16.msra.mxu0 %v2090
    %2124 = vmatprep.subr.bf16.mxu0 %v2093
    %2125 = vmatpush1.bf16.msra.mxu0 %v2092
    %2126 = vmatprep.subr.bf16.mxu0 %v2095
    %2127 = vmatpush1.bf16.msra.mxu0 %v2094
    %2128 = vmatprep.subr.bf16.mxu0 0
    %2129 = vmatpush1.bf16.msra.mxu0 0
    %2130 = vmatprep.subr.bf16.mxu0 0
    %2131 = vmatpush1.bf16.msra.mxu0 0
    %2132 = vmatprep.subr.bf16.mxu0 0
    %2133 = vmatpush1.bf16.msra.mxu0 0
    %2134 = vmatprep.subr.bf16.mxu0 0
    %2135 = vmatpush1.bf16.msra.mxu0 0
    %2136 = vmatprep.subr.bf16.mxu0 0
    %2137 = vmatpush1.bf16.msra.mxu0 0
    %2138 = vmatprep.subr.bf16.mxu0 0
    %2139 = vmatpush1.bf16.msra.mxu0 0
    %2140 = vmatprep.subr.bf16.mxu0 0
    %2141 = vmatpush1.bf16.msra.mxu0 0
    %2142 = vmatprep.subr.bf16.mxu0 0
    %2143 = vmatpush1.bf16.msra.mxu0 0
    %2144 = vmatprep.mubr.bf16.mxu0 0
    %2145 = vmatmul.mubr.bf16.gmra.mrb[0].mxu0 %v2004
    %v2146 = vpop.f32.mrb[0].mxu0
    %v2147 = vadd.f32 %v2025, %v2146
    %v2148 = vpop.f32.mrb[0].mxu0
    %v2149 = vadd.f32 %v2029, %v2148
    %v2150 = vpop.f32.mrb[0].mxu0
    %v2151 = vpop.f32.mrb[0].mxu0
    %2152 = vdwg.mxu0
    %2153 = vst [vmem:[#allocation20] sm:$0xff] %v2147
    %2154 = vst [vmem:[#allocation22] sm:$0xff] %v2149
    %v2155 = vld [vmem:[%s1] sm:$0xff]
    %v2156 = vmul.f32 %v2149, 0.5
    %v2157 = vmul.f32 %v2156, 1.442695
    %v2158 = vpow.pop %v2157
    %v2159 = vmul.f32 %v2155, %v2158
    %v2160 = vadd.f32 %v2147, %v2159
    %v2161 = vld [vmem:[#allocation17 + $0x25] ss:$0 sm:$0xff]
    %v2162 = vld [vmem:[#allocation17 + $0x26] ss:$0 sm:$0xff]
    %v2163 = vld [vmem:[#allocation17 + $0x27] ss:$0 sm:$0xff]
    %v2164 = vpack.c.bf16 %v2160, %v2160
    %v2165 = vld [vmem:[#allocation10] sm:$0xf]
    %v2166 = vld [vmem:[#allocation10 + $0x4] sm:$0xf]
    %v2167 = vld [vmem:[#allocation10 + $0x8] sm:$0xf]
    %v2168 = vld [vmem:[#allocation10 + $0xc] sm:$0xf]
    %v2169 = vld [vmem:[#allocation10 + $0x10] sm:$0xf]
    %v2170 = vld [vmem:[#allocation10 + $0x14] sm:$0xf]
    %v2171 = vld [vmem:[#allocation10 + $0x18] sm:$0xf]
    %v2172 = vld [vmem:[#allocation10 + $0x1c] sm:$0xf]
    %v2173 = vld [vmem:[#allocation10 + $0x20] sm:$0xf]
    %v2174 = vld [vmem:[#allocation10 + $0x24] sm:$0xf]
    %v2175 = vld [vmem:[#allocation10 + $0x28] sm:$0xf]
    %v2176 = vld [vmem:[#allocation10 + $0x2c] sm:$0xf]
    %v2177 = vld [vmem:[#allocation10 + $0x30] sm:$0xf]
    %v2178 = vld [vmem:[#allocation10 + $0x34] sm:$0xf]
    %v2179 = vld [vmem:[#allocation10 + $0x38] sm:$0xf]
    %v2180 = vld [vmem:[#allocation10 + $0x3c] sm:$0xf]
    %v2197 = vunpack.c.l.b16 %v2165
    %v2198 = vunpack.c.l.b16 %v2166
    %v2199 = vunpack.c.l.b16 %v2167
    %v2200 = vunpack.c.l.b16 %v2168
    %v2201 = vunpack.c.l.b16 %v2169
    %v2202 = vunpack.c.l.b16 %v2170
    %v2203 = vunpack.c.l.b16 %v2171
    %v2204 = vunpack.c.l.b16 %v2172
    %v2205 = vunpack.c.l.b16 %v2173
    %v2206 = vunpack.c.l.b16 %v2174
    %v2207 = vunpack.c.l.b16 %v2175
    %v2208 = vunpack.c.l.b16 %v2176
    %v2209 = vunpack.c.l.b16 %v2177
    %v2210 = vunpack.c.l.b16 %v2178
    %v2211 = vunpack.c.l.b16 %v2179
    %v2212 = vunpack.c.l.b16 %v2180
    %v2213 = vpack.c.b16 %v2198, %v2197
    %v2214 = vpack.c.b16 %v2200, %v2199
    %v2215 = vpack.c.b16 %v2202, %v2201
    %v2216 = vpack.c.b16 %v2204, %v2203
    %v2217 = vpack.c.b16 %v2206, %v2205
    %v2218 = vpack.c.b16 %v2208, %v2207
    %v2219 = vpack.c.b16 %v2210, %v2209
    %v2220 = vpack.c.b16 %v2212, %v2211
    %2229 = vmatprep.subr.bf16.mxu0 0
    %2230 = vmatpush1.bf16.msra.mxu0 %v2213
    %2231 = vmatprep.subr.bf16.mxu0 0
    %2232 = vmatpush1.bf16.msra.mxu0 %v2214
    %2233 = vmatprep.subr.bf16.mxu0 0
    %2234 = vmatpush1.bf16.msra.mxu0 %v2215
    %2235 = vmatprep.subr.bf16.mxu0 0
    %2236 = vmatpush1.bf16.msra.mxu0 %v2216
    %2237 = vmatprep.subr.bf16.mxu0 0
    %2238 = vmatpush1.bf16.msra.mxu0 %v2217
    %2239 = vmatprep.subr.bf16.mxu0 0
    %2240 = vmatpush1.bf16.msra.mxu0 %v2218
    %2241 = vmatprep.subr.bf16.mxu0 0
    %2242 = vmatpush1.bf16.msra.mxu0 %v2219
    %2243 = vmatprep.subr.bf16.mxu0 0
    %2244 = vmatpush1.bf16.msra.mxu0 %v2220
    %2245 = vmatprep.subr.bf16.mxu0 0
    %2246 = vmatpush1.bf16.msra.mxu0 0
    %2247 = vmatprep.subr.bf16.mxu0 0
    %2248 = vmatpush1.bf16.msra.mxu0 0
    %2249 = vmatprep.subr.bf16.mxu0 0
    %2250 = vmatpush1.bf16.msra.mxu0 0
    %2251 = vmatprep.subr.bf16.mxu0 0
    %2252 = vmatpush1.bf16.msra.mxu0 0
    %2253 = vmatprep.subr.bf16.mxu0 0
    %2254 = vmatpush1.bf16.msra.mxu0 0
    %2255 = vmatprep.subr.bf16.mxu0 0
    %2256 = vmatpush1.bf16.msra.mxu0 0
    %2257 = vmatprep.subr.bf16.mxu0 0
    %2258 = vmatpush1.bf16.msra.mxu0 0
    %2259 = vmatprep.subr.bf16.mxu0 0
    %2260 = vmatpush1.bf16.msra.mxu0 0
    %2261 = vmatprep.mubr.bf16.mxu0 0
    %2262 = vmatmul.mubr.bf16.gmra.mrb[0].mxu0 %v2164
    %v2263 = vpop.f32.mrb[0].mxu0
    %v2264 = vadd.f32 %v2161, %v2263
    %v2265 = vpop.f32.mrb[0].mxu0
    %v2266 = vpop.f32.mrb[0].mxu0
    %v2267 = vpop.f32.mrb[0].mxu0
    %2268 = vdwg.mxu0
    %v2269 = vrot.slane %v2264, 4
    %v2270 = vadd.f32 %v2264, %v2269
    %v2271 = vrot.slane %v2270, 2
    %v2272 = vadd.f32 %v2270, %v2271
    %v2273 = vrot.slane %v2272, 1
    %v2274 = vadd.f32 %v2272, %v2273
    %v2275 = vmul.f32 %v2274, %v1035
    %v2276 = vmul.f32 %v2264, %v2264
    %v2277 = vrot.slane %v2276, 4
    %v2278 = vadd.f32 %v2276, %v2277
    %v2279 = vrot.slane %v2278, 2
    %v2280 = vadd.f32 %v2278, %v2279
    %v2281 = vrot.slane %v2280, 1
    %v2282 = vadd.f32 %v2280, %v2281
    %v2283 = vmul.f32 %v2282, %v1035
    %v2284 = vmul.f32 %v2275, %v2275
    %v2285 = vsub.f32 %v2283, %v2284
    %v2286 = vadd.f32 %v2285, 1e-05
    %v2287 = vrsqrt.pop %v2286
    %v2288 = vmul.f32 %v2162, %v2287
    %v2289 = vmul.f32 %v2275, %v2288
    %v2290 = vsub.f32 %v2163, %v2289
    %v2291 = vmul.f32 %v2264, %v2288
    %v2292 = vadd.f32 %v2291, %v2290
    %v2293 = vmax.f32 %v2292, 0.0
    %v2294 = vld [vmem:[#allocation17 + $0x40] ss:$0 sm:$0xff]
    %v2295 = vld [vmem:[#allocation17 + $0x41] ss:$0 sm:$0xff]
    %v2296 = vld [vmem:[#allocation17 + $0x42] ss:$0 sm:$0xff]
    %v2297 = vpack.c.bf16 %v2293, %v2293
    %v2298 = vld [vmem:[#allocation11] sm:$0xf]
    %v2299 = vld [vmem:[#allocation11 + $0x4] sm:$0xf]
    %v2300 = vld [vmem:[#allocation11 + $0x8] sm:$0xf]
    %v2301 = vld [vmem:[#allocation11 + $0xc] sm:$0xf]
    %v2302 = vld [vmem:[#allocation11 + $0x10] sm:$0xf]
    %v2303 = vld [vmem:[#allocation11 + $0x14] sm:$0xf]
    %v2304 = vld [vmem:[#allocation11 + $0x18] sm:$0xf]
    %v2305 = vld [vmem:[#allocation11 + $0x1c] sm:$0xf]
    %v2306 = vld [vmem:[#allocation11 + $0x20] sm:$0xf]
    %v2307 = vld [vmem:[#allocation11 + $0x24] sm:$0xf]
    %v2308 = vld [vmem:[#allocation11 + $0x28] sm:$0xf]
    %v2309 = vld [vmem:[#allocation11 + $0x2c] sm:$0xf]
    %v2310 = vld [vmem:[#allocation11 + $0x30] sm:$0xf]
    %v2311 = vld [vmem:[#allocation11 + $0x34] sm:$0xf]
    %v2312 = vld [vmem:[#allocation11 + $0x38] sm:$0xf]
    %v2313 = vld [vmem:[#allocation11 + $0x3c] sm:$0xf]
    %v2330 = vunpack.c.l.b16 %v2298
    %v2331 = vunpack.c.l.b16 %v2299
    %v2332 = vunpack.c.l.b16 %v2300
    %v2333 = vunpack.c.l.b16 %v2301
    %v2334 = vunpack.c.l.b16 %v2302
    %v2335 = vunpack.c.l.b16 %v2303
    %v2336 = vunpack.c.l.b16 %v2304
    %v2337 = vunpack.c.l.b16 %v2305
    %v2338 = vunpack.c.l.b16 %v2306
    %v2339 = vunpack.c.l.b16 %v2307
    %v2340 = vunpack.c.l.b16 %v2308
    %v2341 = vunpack.c.l.b16 %v2309
    %v2342 = vunpack.c.l.b16 %v2310
    %v2343 = vunpack.c.l.b16 %v2311
    %v2344 = vunpack.c.l.b16 %v2312
    %v2345 = vunpack.c.l.b16 %v2313
    %v2346 = vpack.c.b16 %v2331, %v2330
    %v2347 = vpack.c.b16 %v2333, %v2332
    %v2348 = vpack.c.b16 %v2335, %v2334
    %v2349 = vpack.c.b16 %v2337, %v2336
    %v2350 = vpack.c.b16 %v2339, %v2338
    %v2351 = vpack.c.b16 %v2341, %v2340
    %v2352 = vpack.c.b16 %v2343, %v2342
    %v2353 = vpack.c.b16 %v2345, %v2344
    %2362 = vmatprep.subr.bf16.mxu0 0
    %2363 = vmatpush1.bf16.msra.mxu0 %v2346
    %2364 = vmatprep.subr.bf16.mxu0 0
    %2365 = vmatpush1.bf16.msra.mxu0 %v2347
    %2366 = vmatprep.subr.bf16.mxu0 0
    %2367 = vmatpush1.bf16.msra.mxu0 %v2348
    %2368 = vmatprep.subr.bf16.mxu0 0
    %2369 = vmatpush1.bf16.msra.mxu0 %v2349
    %2370 = vmatprep.subr.bf16.mxu0 0
    %2371 = vmatpush1.bf16.msra.mxu0 %v2350
    %2372 = vmatprep.subr.bf16.mxu0 0
    %2373 = vmatpush1.bf16.msra.mxu0 %v2351
    %2374 = vmatprep.subr.bf16.mxu0 0
    %2375 = vmatpush1.bf16.msra.mxu0 %v2352
    %2376 = vmatprep.subr.bf16.mxu0 0
    %2377 = vmatpush1.bf16.msra.mxu0 %v2353
    %2378 = vmatprep.subr.bf16.mxu0 0
    %2379 = vmatpush1.bf16.msra.mxu0 0
    %2380 = vmatprep.subr.bf16.mxu0 0
    %2381 = vmatpush1.bf16.msra.mxu0 0
    %2382 = vmatprep.subr.bf16.mxu0 0
    %2383 = vmatpush1.bf16.msra.mxu0 0
    %2384 = vmatprep.subr.bf16.mxu0 0
    %2385 = vmatpush1.bf16.msra.mxu0 0
    %2386 = vmatprep.subr.bf16.mxu0 0
    %2387 = vmatpush1.bf16.msra.mxu0 0
    %2388 = vmatprep.subr.bf16.mxu0 0
    %2389 = vmatpush1.bf16.msra.mxu0 0
    %2390 = vmatprep.subr.bf16.mxu0 0
    %2391 = vmatpush1.bf16.msra.mxu0 0
    %2392 = vmatprep.subr.bf16.mxu0 0
    %2393 = vmatpush1.bf16.msra.mxu0 0
    %2394 = vmatprep.mubr.bf16.mxu0 0
    %2395 = vmatmul.mubr.bf16.gmra.mrb[0].mxu0 %v2297
    %v2396 = vpop.f32.mrb[0].mxu0
    %v2397 = vadd.f32 %v2294, %v2396
    %v2398 = vpop.f32.mrb[0].mxu0
    %v2399 = vpop.f32.mrb[0].mxu0
    %v2400 = vpop.f32.mrb[0].mxu0
    %2401 = vdwg.mxu0
    %v2402 = vrot.slane %v2397, 4
    %v2403 = vadd.f32 %v2397, %v2402
    %v2404 = vrot.slane %v2403, 2
    %v2405 = vadd.f32 %v2403, %v2404
    %v2406 = vrot.slane %v2405, 1
    %v2407 = vadd.f32 %v2405, %v2406
    %v2408 = vmul.f32 %v2407, %v1035
    %v2409 = vmul.f32 %v2397, %v2397
    %v2410 = vrot.slane %v2409, 4
    %v2411 = vadd.f32 %v2409, %v2410
    %v2412 = vrot.slane %v2411, 2
    %v2413 = vadd.f32 %v2411, %v2412
    %v2414 = vrot.slane %v2413, 1
    %v2415 = vadd.f32 %v2413, %v2414
    %v2416 = vmul.f32 %v2415, %v1035
    %v2417 = vmul.f32 %v2408, %v2408
    %v2418 = vsub.f32 %v2416, %v2417
    %v2419 = vadd.f32 %v2418, 1e-05
    %v2420 = vrsqrt.pop %v2419
    %v2421 = vmul.f32 %v2295, %v2420
    %v2422 = vmul.f32 %v2408, %v2421
    %v2423 = vsub.f32 %v2296, %v2422
    %v2424 = vmul.f32 %v2397, %v2421
    %v2425 = vadd.f32 %v2424, %v2423
    %v2426 = vmax.f32 %v2425, 0.0
    %s2427 = scalar_lea.vmem [#allocation17], 67
    %v2428 = vld [vmem:[%s2427] ss:$8 sm:$0x3]
    %s2429 = scalar_lea.vmem [#allocation17], 68
    %v2430 = vld [vmem:[%s2429] ss:$8 sm:$0x3]
    %s2431 = scalar_lea.vmem [#allocation17], 69
    %v2432 = vld [vmem:[%s2431] ss:$8 sm:$0x3]
    %v2433 = vpack.c.bf16 %v2426, %v2426
    %v2434 = vld [vmem:[#allocation13] sm:$0xff]
    %v2435 = vld [vmem:[#allocation13 + $0x8] sm:$0xff]
    %v2436 = vld [vmem:[#allocation13 + $0x10] sm:$0xff]
    %v2437 = vld [vmem:[#allocation13 + $0x18] sm:$0xff]
    %v2438 = vld [vmem:[#allocation13 + $0x20] sm:$0xff]
    %v2439 = vld [vmem:[#allocation13 + $0x28] sm:$0xff]
    %v2440 = vld [vmem:[#allocation13 + $0x30] sm:$0xff]
    %v2441 = vld [vmem:[#allocation13 + $0x38] sm:$0xff]
    %v2442 = vld [vmem:[#allocation13 + $0x40] sm:$0xff]
    %v2443 = vld [vmem:[#allocation13 + $0x48] sm:$0xff]
    %v2444 = vld [vmem:[#allocation13 + $0x50] sm:$0xff]
    %v2445 = vld [vmem:[#allocation13 + $0x58] sm:$0xff]
    %v2446 = vld [vmem:[#allocation13 + $0x60] sm:$0xff]
    %v2447 = vld [vmem:[#allocation13 + $0x68] sm:$0xff]
    %v2448 = vld [vmem:[#allocation13 + $0x70] sm:$0xff]
    %v2449 = vld [vmem:[#allocation13 + $0x78] sm:$0xff]
    %v2451 = vlaneseq
    %v2452 = vshrl.u32 %v2451, 7
    %v2453 = vsub.s32 0, %v2452
    %v2454 = vrot.slane %v2428, %v2453
    %v2455 = vlaneseq
    %v2456 = vshrl.u32 %v2455, 7
    %v2457 = vsub.s32 1, %v2456
    %v2458 = vrot.slane %v2428, %v2457
    %v2477 = vunpack.c.l.b16 %v2434
    %v2478 = vunpack.c.h.b16 %v2434
    %v2479 = vunpack.c.l.b16 %v2435
    %v2480 = vunpack.c.h.b16 %v2435
    %v2481 = vunpack.c.l.b16 %v2436
    %v2482 = vunpack.c.h.b16 %v2436
    %v2483 = vunpack.c.l.b16 %v2437
    %v2484 = vunpack.c.h.b16 %v2437
    %v2485 = vunpack.c.l.b16 %v2438
    %v2486 = vunpack.c.h.b16 %v2438
    %v2487 = vunpack.c.l.b16 %v2439
    %v2488 = vunpack.c.h.b16 %v2439
    %v2489 = vunpack.c.l.b16 %v2440
    %v2490 = vunpack.c.h.b16 %v2440
    %v2491 = vunpack.c.l.b16 %v2441
    %v2492 = vunpack.c.h.b16 %v2441
    %v2493 = vunpack.c.l.b16 %v2442
    %v2494 = vunpack.c.h.b16 %v2442
    %v2495 = vunpack.c.l.b16 %v2443
    %v2496 = vunpack.c.h.b16 %v2443
    %v2497 = vunpack.c.l.b16 %v2444
    %v2498 = vunpack.c.h.b16 %v2444
    %v2499 = vunpack.c.l.b16 %v2445
    %v2500 = vunpack.c.h.b16 %v2445
    %v2501 = vunpack.c.l.b16 %v2446
    %v2502 = vunpack.c.h.b16 %v2446
    %v2503 = vunpack.c.l.b16 %v2447
    %v2504 = vunpack.c.h.b16 %v2447
    %v2505 = vunpack.c.l.b16 %v2448
    %v2506 = vunpack.c.h.b16 %v2448
    %v2507 = vunpack.c.l.b16 %v2449
    %v2508 = vunpack.c.h.b16 %v2449
    %v2509 = vpack.c.b16 %v2479, %v2477
    %v2510 = vpack.c.b16 %v2480, %v2478
    %v2511 = vpack.c.b16 %v2483, %v2481
    %v2512 = vpack.c.b16 %v2484, %v2482
    %v2513 = vpack.c.b16 %v2487, %v2485
    %v2514 = vpack.c.b16 %v2488, %v2486
    %v2515 = vpack.c.b16 %v2491, %v2489
    %v2516 = vpack.c.b16 %v2492, %v2490
    %v2517 = vpack.c.b16 %v2495, %v2493
    %v2518 = vpack.c.b16 %v2496, %v2494
    %v2519 = vpack.c.b16 %v2499, %v2497
    %v2520 = vpack.c.b16 %v2500, %v2498
    %v2521 = vpack.c.b16 %v2503, %v2501
    %v2522 = vpack.c.b16 %v2504, %v2502
    %v2523 = vpack.c.b16 %v2507, %v2505
    %v2524 = vpack.c.b16 %v2508, %v2506
    %2541 = vmatprep.subr.bf16.mxu0 %v2510
    %2542 = vmatpush1.bf16.msra.mxu0 %v2509
    %2543 = vmatprep.subr.bf16.mxu0 %v2512
    %2544 = vmatpush1.bf16.msra.mxu0 %v2511
    %2545 = vmatprep.subr.bf16.mxu0 %v2514
    %2546 = vmatpush1.bf16.msra.mxu0 %v2513
    %2547 = vmatprep.subr.bf16.mxu0 %v2516
    %2548 = vmatpush1.bf16.msra.mxu0 %v2515
    %2549 = vmatprep.subr.bf16.mxu0 %v2518
    %2550 = vmatpush1.bf16.msra.mxu0 %v2517
    %2551 = vmatprep.subr.bf16.mxu0 %v2520
    %2552 = vmatpush1.bf16.msra.mxu0 %v2519
    %2553 = vmatprep.subr.bf16.mxu0 %v2522
    %2554 = vmatpush1.bf16.msra.mxu0 %v2521
    %2555 = vmatprep.subr.bf16.mxu0 %v2524
    %2556 = vmatpush1.bf16.msra.mxu0 %v2523
    %2557 = vmatprep.subr.bf16.mxu0 0
    %2558 = vmatpush1.bf16.msra.mxu0 0
    %2559 = vmatprep.subr.bf16.mxu0 0
    %2560 = vmatpush1.bf16.msra.mxu0 0
    %2561 = vmatprep.subr.bf16.mxu0 0
    %2562 = vmatpush1.bf16.msra.mxu0 0
    %2563 = vmatprep.subr.bf16.mxu0 0
    %2564 = vmatpush1.bf16.msra.mxu0 0
    %2565 = vmatprep.subr.bf16.mxu0 0
    %2566 = vmatpush1.bf16.msra.mxu0 0
    %2567 = vmatprep.subr.bf16.mxu0 0
    %2568 = vmatpush1.bf16.msra.mxu0 0
    %2569 = vmatprep.subr.bf16.mxu0 0
    %2570 = vmatpush1.bf16.msra.mxu0 0
    %2571 = vmatprep.subr.bf16.mxu0 0
    %2572 = vmatpush1.bf16.msra.mxu0 0
    %2573 = vmatprep.mubr.bf16.mxu0 0
    %2574 = vmatmul.mubr.bf16.gmra.mrb[0].mxu0 %v2433
    %v2575 = vpop.f32.mrb[0].mxu0
    %v2576 = vadd.f32 %v2454, %v2575
    %v2577 = vpop.f32.mrb[0].mxu0
    %v2578 = vadd.f32 %v2458, %v2577
    %v2579 = vpop.f32.mrb[0].mxu0
    %v2580 = vpop.f32.mrb[0].mxu0
    %2581 = vdwg.mxu0
    %v2582 = vrot.slane %v2576, 4
    %v2583 = vadd.f32 %v2576, %v2582
    %v2584 = vrot.slane %v2583, 2
    %v2585 = vadd.f32 %v2583, %v2584
    %v2586 = vrot.slane %v2585, 1
    %v2587 = vadd.f32 %v2585, %v2586
    %v2588 = vrot.slane %v2578, 4
    %v2589 = vadd.f32 %v2578, %v2588
    %v2590 = vrot.slane %v2589, 2
    %v2591 = vadd.f32 %v2589, %v2590
    %v2592 = vrot.slane %v2591, 1
    %v2593 = vadd.f32 %v2591, %v2592
    %v2594 = vmul.f32 %v2587, %v1035
    %v2595 = vmul.f32 %v2593, %v1035
    %v2596 = vmul.f32 %v2576, %v2576
    %v2597 = vmul.f32 %v2578, %v2578
    %v2598 = vrot.slane %v2596, 4
    %v2599 = vadd.f32 %v2596, %v2598
    %v2600 = vrot.slane %v2599, 2
    %v2601 = vadd.f32 %v2599, %v2600
    %v2602 = vrot.slane %v2601, 1
    %v2603 = vadd.f32 %v2601, %v2602
    %v2604 = vrot.slane %v2597, 4
    %v2605 = vadd.f32 %v2597, %v2604
    %v2606 = vrot.slane %v2605, 2
    %v2607 = vadd.f32 %v2605, %v2606
    %v2608 = vrot.slane %v2607, 1
    %v2609 = vadd.f32 %v2607, %v2608
    %v2610 = vmul.f32 %v2603, %v1035
    %v2611 = vmul.f32 %v2609, %v1035
    %v2612 = vmul.f32 %v2594, %v2594
    %v2613 = vmul.f32 %v2595, %v2595
    %v2614 = vsub.f32 %v2610, %v2612
    %v2615 = vsub.f32 %v2611, %v2613
    %v2616 = vadd.f32 %v2614, 1e-05
    %v2617 = vadd.f32 %v2615, 1e-05
    %v2618 = vrsqrt.pop %v2616
    %v2619 = vrsqrt.pop %v2617
    %v2622 = vcombine.low %v2618, %v2619
    %v2624 = vunpack.c.l.s4 1966171168
    %v2625 = vunpack.c.0.s8 %v2624
    %v2626 = vlaneseq
    %v2627 = vshrl.u32 %v2626, 7
    %v2628 = vsub.s32 %v2625, %v2627
    %v2629 = vrot.slane %v2622, %v2628
    %v2631 = vunpack.c.l.s4 1966171168
    %v2632 = vunpack.c.0.s8 %v2631
    %v2633 = vlaneseq
    %v2634 = vshrl.u32 %v2633, 7
    %v2635 = vsub.s32 %v2632, %v2634
    %v2636 = vrot.slane %v2629, %v2635
    %v2638 = vmul.f32 %v2430, %v2636
    %v2640 = vlaneseq
    %v2641 = vshrl.u32 %v2640, 7
    %v2642 = vsub.s32 0, %v2641
    %v2643 = vrot.slane %v2638, %v2642
    %v2644 = vlaneseq
    %v2645 = vshrl.u32 %v2644, 7
    %v2646 = vsub.s32 1, %v2645
    %v2647 = vrot.slane %v2638, %v2646
    %v2650 = vmul.f32 %v2594, %v2643
    %v2651 = vmul.f32 %v2595, %v2647
    %v2654 = vcombine.low %v2650, %v2651
    %v2656 = vunpack.c.l.s4 1966171168
    %v2657 = vunpack.c.0.s8 %v2656
    %v2658 = vlaneseq
    %v2659 = vshrl.u32 %v2658, 7
    %v2660 = vsub.s32 %v2657, %v2659
    %v2661 = vrot.slane %v2654, %v2660
    %v2663 = vunpack.c.l.s4 1966171168
    %v2664 = vunpack.c.0.s8 %v2663
    %v2665 = vlaneseq
    %v2666 = vshrl.u32 %v2665, 7
    %v2667 = vsub.s32 %v2664, %v2666
    %v2668 = vrot.slane %v2661, %v2667
    %v2670 = vsub.f32 %v2432, %v2668
    %v2671 = vmul.f32 %v2576, %v2643
    %v2672 = vmul.f32 %v2578, %v2647
    %v2674 = vlaneseq
    %v2675 = vshrl.u32 %v2674, 7
    %v2676 = vsub.s32 0, %v2675
    %v2677 = vrot.slane %v2670, %v2676
    %v2678 = vlaneseq
    %v2679 = vshrl.u32 %v2678, 7
    %v2680 = vsub.s32 1, %v2679
    %v2681 = vrot.slane %v2670, %v2680
    %v2684 = vadd.f32 %v2671, %v2677
    %v2685 = vadd.f32 %v2672, %v2681
    %v2686 = vmax.f32 %v2684, 0.0
    %v2687 = vmax.f32 %v2685, 0.0
    %s2688 = scalar_lea.vmem [#allocation17], 70
    %v2689 = vld [vmem:[%s2688] ss:$8 sm:$0x7]
    %s2690 = scalar_lea.vmem [#allocation17], 71
    %v2691 = vld [vmem:[%s2690] ss:$8 sm:$0x7]
    %s2692 = scalar_lea.vmem [#allocation17], 96
    %v2693 = vld [vmem:[%s2692] ss:$8 sm:$0x7]
    %v2694 = vpack.c.bf16 %v2686, %v2686
    %v2695 = vpack.c.bf16 %v2687, %v2687
    %v2696 = vld [vmem:[#allocation14] sm:$0xff]
    %v2697 = vld [vmem:[#allocation14 + $0x8] sm:$0xf]
    %v2698 = vld [vmem:[#allocation14 + $0xc] sm:$0xff]
    %v2699 = vld [vmem:[#allocation14 + $0x14] sm:$0xf]
    %v2700 = vld [vmem:[#allocation14 + $0x18] sm:$0xff]
    %v2701 = vld [vmem:[#allocation14 + $0x20] sm:$0xf]
    %v2702 = vld [vmem:[#allocation14 + $0x24] sm:$0xff]
    %v2703 = vld [vmem:[#allocation14 + $0x2c] sm:$0xf]
    %v2704 = vld [vmem:[#allocation14 + $0x30] sm:$0xff]
    %v2705 = vld [vmem:[#allocation14 + $0x38] sm:$0xf]
    %v2706 = vld [vmem:[#allocation14 + $0x3c] sm:$0xff]
    %v2707 = vld [vmem:[#allocation14 + $0x44] sm:$0xf]
    %v2708 = vld [vmem:[#allocation14 + $0x48] sm:$0xff]
    %v2709 = vld [vmem:[#allocation14 + $0x50] sm:$0xf]
    %v2710 = vld [vmem:[#allocation14 + $0x54] sm:$0xff]
    %v2711 = vld [vmem:[#allocation14 + $0x5c] sm:$0xf]
    %v2712 = vld [vmem:[#allocation14 + $0x60] sm:$0xff]
    %v2713 = vld [vmem:[#allocation14 + $0x68] sm:$0xf]
    %v2714 = vld [vmem:[#allocation14 + $0x6c] sm:$0xff]
    %v2715 = vld [vmem:[#allocation14 + $0x74] sm:$0xf]
    %v2716 = vld [vmem:[#allocation14 + $0x78] sm:$0xff]
    %v2717 = vld [vmem:[#allocation14 + $0x80] sm:$0xf]
    %v2718 = vld [vmem:[#allocation14 + $0x84] sm:$0xff]
    %v2719 = vld [vmem:[#allocation14 + $0x8c] sm:$0xf]
    %v2720 = vld [vmem:[#allocation14 + $0x90] sm:$0xff]
    %v2721 = vld [vmem:[#allocation14 + $0x98] sm:$0xf]
    %v2722 = vld [vmem:[#allocation14 + $0x9c] sm:$0xff]
    %v2723 = vld [vmem:[#allocation14 + $0xa4] sm:$0xf]
    %v2724 = vld [vmem:[#allocation14 + $0xa8] sm:$0xff]
    %v2725 = vld [vmem:[#allocation14 + $0xb0] sm:$0xf]
    %v2726 = vld [vmem:[#allocation14 + $0xb4] sm:$0xff]
    %v2727 = vld [vmem:[#allocation14 + $0xbc] sm:$0xf]
    %v2728 = vld [vmem:[#allocation14 + $0xc0] sm:$0xff]
    %v2729 = vld [vmem:[#allocation14 + $0xc8] sm:$0xf]
    %v2730 = vld [vmem:[#allocation14 + $0xcc] sm:$0xff]
    %v2731 = vld [vmem:[#allocation14 + $0xd4] sm:$0xf]
    %v2732 = vld [vmem:[#allocation14 + $0xd8] sm:$0xff]
    %v2733 = vld [vmem:[#allocation14 + $0xe0] sm:$0xf]
    %v2734 = vld [vmem:[#allocation14 + $0xe4] sm:$0xff]
    %v2735 = vld [vmem:[#allocation14 + $0xec] sm:$0xf]
    %v2736 = vld [vmem:[#allocation14 + $0xf0] sm:$0xff]
    %v2737 = vld [vmem:[#allocation14 + $0xf8] sm:$0xf]
    %v2738 = vld [vmem:[#allocation14 + $0xfc] sm:$0xff]
    %v2739 = vld [vmem:[#allocation14 + $0x104] sm:$0xf]
    %v2740 = vld [vmem:[#allocation14 + $0x108] sm:$0xff]
    %v2741 = vld [vmem:[#allocation14 + $0x110] sm:$0xf]
    %v2742 = vld [vmem:[#allocation14 + $0x114] sm:$0xff]
    %v2743 = vld [vmem:[#allocation14 + $0x11c] sm:$0xf]
    %v2744 = vld [vmem:[#allocation14 + $0x120] sm:$0xff]
    %v2745 = vld [vmem:[#allocation14 + $0x128] sm:$0xf]
    %v2746 = vld [vmem:[#allocation14 + $0x12c] sm:$0xff]
    %v2747 = vld [vmem:[#allocation14 + $0x134] sm:$0xf]
    %v2748 = vld [vmem:[#allocation14 + $0x138] sm:$0xff]
    %v2749 = vld [vmem:[#allocation14 + $0x140] sm:$0xf]
    %v2750 = vld [vmem:[#allocation14 + $0x144] sm:$0xff]
    %v2751 = vld [vmem:[#allocation14 + $0x14c] sm:$0xf]
    %v2752 = vld [vmem:[#allocation14 + $0x150] sm:$0xff]
    %v2753 = vld [vmem:[#allocation14 + $0x158] sm:$0xf]
    %v2754 = vld [vmem:[#allocation14 + $0x15c] sm:$0xff]
    %v2755 = vld [vmem:[#allocation14 + $0x164] sm:$0xf]
    %v2756 = vld [vmem:[#allocation14 + $0x168] sm:$0xff]
    %v2757 = vld [vmem:[#allocation14 + $0x170] sm:$0xf]
    %v2758 = vld [vmem:[#allocation14 + $0x174] sm:$0xff]
    %v2759 = vld [vmem:[#allocation14 + $0x17c] sm:$0xf]
    %v2761 = vlaneseq
    %v2762 = vshrl.u32 %v2761, 7
    %v2763 = vsub.s32 0, %v2762
    %v2764 = vrot.slane %v2689, %v2763
    %v2765 = vlaneseq
    %v2766 = vshrl.u32 %v2765, 7
    %v2767 = vsub.s32 1, %v2766
    %v2768 = vrot.slane %v2689, %v2767
    %v2769 = vlaneseq
    %v2770 = vshrl.u32 %v2769, 7
    %v2771 = vsub.s32 2, %v2770
    %v2772 = vrot.slane %v2689, %v2771
    %v2840 = vunpack.c.l.b16 %v2696
    %v2841 = vunpack.c.h.b16 %v2696
    %v2842 = vunpack.c.l.b16 %v2697
    %v2843 = vunpack.c.l.b16 %v2698
    %v2844 = vunpack.c.h.b16 %v2698
    %v2845 = vunpack.c.l.b16 %v2699
    %v2846 = vunpack.c.l.b16 %v2700
    %v2847 = vunpack.c.h.b16 %v2700
    %v2848 = vunpack.c.l.b16 %v2701
    %v2849 = vunpack.c.l.b16 %v2702
    %v2850 = vunpack.c.h.b16 %v2702
    %v2851 = vunpack.c.l.b16 %v2703
    %v2852 = vunpack.c.l.b16 %v2704
    %v2853 = vunpack.c.h.b16 %v2704
    %v2854 = vunpack.c.l.b16 %v2705
    %v2855 = vunpack.c.l.b16 %v2706
    %v2856 = vunpack.c.h.b16 %v2706
    %v2857 = vunpack.c.l.b16 %v2707
    %v2858 = vunpack.c.l.b16 %v2708
    %v2859 = vunpack.c.h.b16 %v2708
    %v2860 = vunpack.c.l.b16 %v2709
    %v2861 = vunpack.c.l.b16 %v2710
    %v2862 = vunpack.c.h.b16 %v2710
    %v2863 = vunpack.c.l.b16 %v2711
    %v2864 = vunpack.c.l.b16 %v2712
    %v2865 = vunpack.c.h.b16 %v2712
    %v2866 = vunpack.c.l.b16 %v2713
    %v2867 = vunpack.c.l.b16 %v2714
    %v2868 = vunpack.c.h.b16 %v2714
    %v2869 = vunpack.c.l.b16 %v2715
    %v2870 = vunpack.c.l.b16 %v2716
    %v2871 = vunpack.c.h.b16 %v2716
    %v2872 = vunpack.c.l.b16 %v2717
    %v2873 = vunpack.c.l.b16 %v2718
    %v2874 = vunpack.c.h.b16 %v2718
    %v2875 = vunpack.c.l.b16 %v2719
    %v2876 = vunpack.c.l.b16 %v2720
    %v2877 = vunpack.c.h.b16 %v2720
    %v2878 = vunpack.c.l.b16 %v2721
    %v2879 = vunpack.c.l.b16 %v2722
    %v2880 = vunpack.c.h.b16 %v2722
    %v2881 = vunpack.c.l.b16 %v2723
    %v2882 = vunpack.c.l.b16 %v2724
    %v2883 = vunpack.c.h.b16 %v2724
    %v2884 = vunpack.c.l.b16 %v2725
    %v2885 = vunpack.c.l.b16 %v2726
    %v2886 = vunpack.c.h.b16 %v2726
    %v2887 = vunpack.c.l.b16 %v2727
    %v2888 = vunpack.c.l.b16 %v2728
    %v2889 = vunpack.c.h.b16 %v2728
    %v2890 = vunpack.c.l.b16 %v2729
    %v2891 = vunpack.c.l.b16 %v2730
    %v2892 = vunpack.c.h.b16 %v2730
    %v2893 = vunpack.c.l.b16 %v2731
    %v2894 = vunpack.c.l.b16 %v2732
    %v2895 = vunpack.c.h.b16 %v2732
    %v2896 = vunpack.c.l.b16 %v2733
    %v2897 = vunpack.c.l.b16 %v2734
    %v2898 = vunpack.c.h.b16 %v2734
    %v2899 = vunpack.c.l.b16 %v2735
    %v2900 = vunpack.c.l.b16 %v2736
    %v2901 = vunpack.c.h.b16 %v2736
    %v2902 = vunpack.c.l.b16 %v2737
    %v2903 = vunpack.c.l.b16 %v2738
    %v2904 = vunpack.c.h.b16 %v2738
    %v2905 = vunpack.c.l.b16 %v2739
    %v2906 = vunpack.c.l.b16 %v2740
    %v2907 = vunpack.c.h.b16 %v2740
    %v2908 = vunpack.c.l.b16 %v2741
    %v2909 = vunpack.c.l.b16 %v2742
    %v2910 = vunpack.c.h.b16 %v2742
    %v2911 = vunpack.c.l.b16 %v2743
    %v2912 = vunpack.c.l.b16 %v2744
    %v2913 = vunpack.c.h.b16 %v2744
    %v2914 = vunpack.c.l.b16 %v2745
    %v2915 = vunpack.c.l.b16 %v2746
    %v2916 = vunpack.c.h.b16 %v2746
    %v2917 = vunpack.c.l.b16 %v2747
    %v2918 = vunpack.c.l.b16 %v2748
    %v2919 = vunpack.c.h.b16 %v2748
    %v2920 = vunpack.c.l.b16 %v2749
    %v2921 = vunpack.c.l.b16 %v2750
    %v2922 = vunpack.c.h.b16 %v2750
    %v2923 = vunpack.c.l.b16 %v2751
    %v2924 = vunpack.c.l.b16 %v2752
    %v2925 = vunpack.c.h.b16 %v2752
    %v2926 = vunpack.c.l.b16 %v2753
    %v2927 = vunpack.c.l.b16 %v2754
    %v2928 = vunpack.c.h.b16 %v2754
    %v2929 = vunpack.c.l.b16 %v2755
    %v2930 = vunpack.c.l.b16 %v2756
    %v2931 = vunpack.c.h.b16 %v2756
    %v2932 = vunpack.c.l.b16 %v2757
    %v2933 = vunpack.c.l.b16 %v2758
    %v2934 = vunpack.c.h.b16 %v2758
    %v2935 = vunpack.c.l.b16 %v2759
    %v2936 = vpack.c.b16 %v2843, %v2840
    %v2937 = vpack.c.b16 %v2844, %v2841
    %v2938 = vpack.c.b16 %v2845, %v2842
    %v2939 = vpack.c.b16 %v2849, %v2846
    %v2940 = vpack.c.b16 %v2850, %v2847
    %v2941 = vpack.c.b16 %v2851, %v2848
    %v2942 = vpack.c.b16 %v2855, %v2852
    %v2943 = vpack.c.b16 %v2856, %v2853
    %v2944 = vpack.c.b16 %v2857, %v2854
    %v2945 = vpack.c.b16 %v2861, %v2858
    %v2946 = vpack.c.b16 %v2862, %v2859
    %v2947 = vpack.c.b16 %v2863, %v2860
    %v2948 = vpack.c.b16 %v2867, %v2864
    %v2949 = vpack.c.b16 %v2868, %v2865
    %v2950 = vpack.c.b16 %v2869, %v2866
    %v2951 = vpack.c.b16 %v2873, %v2870
    %v2952 = vpack.c.b16 %v2874, %v2871
    %v2953 = vpack.c.b16 %v2875, %v2872
    %v2954 = vpack.c.b16 %v2879, %v2876
    %v2955 = vpack.c.b16 %v2880, %v2877
    %v2956 = vpack.c.b16 %v2881, %v2878
    %v2957 = vpack.c.b16 %v2885, %v2882
    %v2958 = vpack.c.b16 %v2886, %v2883
    %v2959 = vpack.c.b16 %v2887, %v2884
    %v2960 = vpack.c.b16 %v2891, %v2888
    %v2961 = vpack.c.b16 %v2892, %v2889
    %v2962 = vpack.c.b16 %v2893, %v2890
    %v2963 = vpack.c.b16 %v2897, %v2894
    %v2964 = vpack.c.b16 %v2898, %v2895
    %v2965 = vpack.c.b16 %v2899, %v2896
    %v2966 = vpack.c.b16 %v2903, %v2900
    %v2967 = vpack.c.b16 %v2904, %v2901
    %v2968 = vpack.c.b16 %v2905, %v2902
    %v2969 = vpack.c.b16 %v2909, %v2906
    %v2970 = vpack.c.b16 %v2910, %v2907
    %v2971 = vpack.c.b16 %v2911, %v2908
    %v2972 = vpack.c.b16 %v2915, %v2912
    %v2973 = vpack.c.b16 %v2916, %v2913
    %v2974 = vpack.c.b16 %v2917, %v2914
    %v2975 = vpack.c.b16 %v2921, %v2918
    %v2976 = vpack.c.b16 %v2922, %v2919
    %v2977 = vpack.c.b16 %v2923, %v2920
    %v2978 = vpack.c.b16 %v2927, %v2924
    %v2979 = vpack.c.b16 %v2928, %v2925
    %v2980 = vpack.c.b16 %v2929, %v2926
    %v2981 = vpack.c.b16 %v2933, %v2930
    %v2982 = vpack.c.b16 %v2934, %v2931
    %v2983 = vpack.c.b16 %v2935, %v2932
    %3032 = vmatprep.subr.bf16.mxu0 %v2937
    %3033 = vmatpush1.bf16.msra.mxu0 %v2936
    %3034 = vmatprep.subr.bf16.mxu0 %v2940
    %3035 = vmatpush1.bf16.msra.mxu0 %v2939
    %3036 = vmatprep.subr.bf16.mxu0 %v2943
    %3037 = vmatpush1.bf16.msra.mxu0 %v2942
    %3038 = vmatprep.subr.bf16.mxu0 %v2946
    %3039 = vmatpush1.bf16.msra.mxu0 %v2945
    %3040 = vmatprep.subr.bf16.mxu0 %v2949
    %3041 = vmatpush1.bf16.msra.mxu0 %v2948
    %3042 = vmatprep.subr.bf16.mxu0 %v2952
    %3043 = vmatpush1.bf16.msra.mxu0 %v2951
    %3044 = vmatprep.subr.bf16.mxu0 %v2955
    %3045 = vmatpush1.bf16.msra.mxu0 %v2954
    %3046 = vmatprep.subr.bf16.mxu0 %v2958
    %3047 = vmatpush1.bf16.msra.mxu0 %v2957
    %3048 = vmatprep.subr.bf16.mxu0 %v2961
    %3049 = vmatpush1.bf16.msra.mxu0 %v2960
    %3050 = vmatprep.subr.bf16.mxu0 %v2964
    %3051 = vmatpush1.bf16.msra.mxu0 %v2963
    %3052 = vmatprep.subr.bf16.mxu0 %v2967
    %3053 = vmatpush1.bf16.msra.mxu0 %v2966
    %3054 = vmatprep.subr.bf16.mxu0 %v2970
    %3055 = vmatpush1.bf16.msra.mxu0 %v2969
    %3056 = vmatprep.subr.bf16.mxu0 %v2973
    %3057 = vmatpush1.bf16.msra.mxu0 %v2972
    %3058 = vmatprep.subr.bf16.mxu0 %v2976
    %3059 = vmatpush1.bf16.msra.mxu0 %v2975
    %3060 = vmatprep.subr.bf16.mxu0 %v2979
    %3061 = vmatpush1.bf16.msra.mxu0 %v2978
    %3062 = vmatprep.subr.bf16.mxu0 %v2982
    %3063 = vmatpush1.bf16.msra.mxu0 %v2981
    %3064 = vmatprep.mubr.bf16.mxu0 %v2695
    %3065 = vmatmul.mubr.bf16.gmra.mrb[0].mxu0 %v2694
    %v3066 = vpop.f32.mrb[0].mxu0
    %v3067 = vadd.f32 %v2764, %v3066
    %v3068 = vpop.f32.mrb[0].mxu0
    %v3069 = vadd.f32 %v2768, %v3068
    %v3070 = vpop.f32.mrb[0].mxu0
    %v3071 = vpop.f32.mrb[0].mxu0
    %3072 = vdwg.mxu0
    %3073 = vmatprep.subr.bf16.mxu0 0
    %3074 = vmatpush1.bf16.msra.mxu0 %v2938
    %3075 = vmatprep.subr.bf16.mxu0 0
    %3076 = vmatpush1.bf16.msra.mxu0 %v2941
    %3077 = vmatprep.subr.bf16.mxu0 0
    %3078 = vmatpush1.bf16.msra.mxu0 %v2944
    %3079 = vmatprep.subr.bf16.mxu0 0
    %3080 = vmatpush1.bf16.msra.mxu0 %v2947
    %3081 = vmatprep.subr.bf16.mxu0 0
    %3082 = vmatpush1.bf16.msra.mxu0 %v2950
    %3083 = vmatprep.subr.bf16.mxu0 0
    %3084 = vmatpush1.bf16.msra.mxu0 %v2953
    %3085 = vmatprep.subr.bf16.mxu0 0
    %3086 = vmatpush1.bf16.msra.mxu0 %v2956
    %3087 = vmatprep.subr.bf16.mxu0 0
    %3088 = vmatpush1.bf16.msra.mxu0 %v2959
    %3089 = vmatprep.subr.bf16.mxu0 0
    %3090 = vmatpush1.bf16.msra.mxu0 %v2962
    %3091 = vmatprep.subr.bf16.mxu0 0
    %3092 = vmatpush1.bf16.msra.mxu0 %v2965
    %3093 = vmatprep.subr.bf16.mxu0 0
    %3094 = vmatpush1.bf16.msra.mxu0 %v2968
    %3095 = vmatprep.subr.bf16.mxu0 0
    %3096 = vmatpush1.bf16.msra.mxu0 %v2971
    %3097 = vmatprep.subr.bf16.mxu0 0
    %3098 = vmatpush1.bf16.msra.mxu0 %v2974
    %3099 = vmatprep.subr.bf16.mxu0 0
    %3100 = vmatpush1.bf16.msra.mxu0 %v2977
    %3101 = vmatprep.subr.bf16.mxu0 0
    %3102 = vmatpush1.bf16.msra.mxu0 %v2980
    %3103 = vmatprep.subr.bf16.mxu0 0
    %3104 = vmatpush1.bf16.msra.mxu0 %v2983
    %3105 = vmatprep.mubr.bf16.mxu0 %v2695
    %3106 = vmatmul.mubr.bf16.gmra.mrb[0].mxu0 %v2694
    %v3107 = vpop.f32.mrb[0].mxu0
    %v3108 = vadd.f32 %v2772, %v3107
    %v3109 = vpop.f32.mrb[0].mxu0
    %v3110 = vpop.f32.mrb[0].mxu0
    %v3111 = vpop.f32.mrb[0].mxu0
    %3112 = vdwg.mxu0
    %v3113 = vrot.slane %v3067, 4
    %v3114 = vadd.f32 %v3067, %v3113
    %v3115 = vrot.slane %v3114, 2
    %v3116 = vadd.f32 %v3114, %v3115
    %v3117 = vrot.slane %v3116, 1
    %v3118 = vadd.f32 %v3116, %v3117
    %v3119 = vrot.slane %v3069, 4
    %v3120 = vadd.f32 %v3069, %v3119
    %v3121 = vrot.slane %v3120, 2
    %v3122 = vadd.f32 %v3120, %v3121
    %v3123 = vrot.slane %v3122, 1
    %v3124 = vadd.f32 %v3122, %v3123
    %v3125 = vrot.slane %v3108, 4
    %v3126 = vadd.f32 %v3108, %v3125
    %v3127 = vrot.slane %v3126, 2
    %v3128 = vadd.f32 %v3126, %v3127
    %v3129 = vrot.slane %v3128, 1
    %v3130 = vadd.f32 %v3128, %v3129
    %v3131 = vmul.f32 %v3118, %v1035
    %v3132 = vmul.f32 %v3124, %v1035
    %v3133 = vmul.f32 %v3130, %v1035
    %v3134 = vmul.f32 %v3067, %v3067
    %v3135 = vmul.f32 %v3069, %v3069
    %v3136 = vmul.f32 %v3108, %v3108
    %v3137 = vrot.slane %v3134, 4
    %v3138 = vadd.f32 %v3134, %v3137
    %v3139 = vrot.slane %v3138, 2
    %v3140 = vadd.f32 %v3138, %v3139
    %v3141 = vrot.slane %v3140, 1
    %v3142 = vadd.f32 %v3140, %v3141
    %v3143 = vrot.slane %v3135, 4
    %v3144 = vadd.f32 %v3135, %v3143
    %v3145 = vrot.slane %v3144, 2
    %v3146 = vadd.f32 %v3144, %v3145
    %v3147 = vrot.slane %v3146, 1
    %v3148 = vadd.f32 %v3146, %v3147
    %v3149 = vrot.slane %v3136, 4
    %v3150 = vadd.f32 %v3136, %v3149
    %v3151 = vrot.slane %v3150, 2
    %v3152 = vadd.f32 %v3150, %v3151
    %v3153 = vrot.slane %v3152, 1
    %v3154 = vadd.f32 %v3152, %v3153
    %v3155 = vmul.f32 %v3142, %v1035
    %v3156 = vmul.f32 %v3148, %v1035
    %v3157 = vmul.f32 %v3154, %v1035
    %v3158 = vmul.f32 %v3131, %v3131
    %v3159 = vmul.f32 %v3132, %v3132
    %v3160 = vmul.f32 %v3133, %v3133
    %v3161 = vsub.f32 %v3155, %v3158
    %v3162 = vsub.f32 %v3156, %v3159
    %v3163 = vsub.f32 %v3157, %v3160
    %v3164 = vadd.f32 %v3161, 1e-05
    %v3165 = vadd.f32 %v3162, 1e-05
    %v3166 = vadd.f32 %v3163, 1e-05
    %v3167 = vrsqrt.pop %v3164
    %v3168 = vrsqrt.pop %v3165
    %v3169 = vrsqrt.pop %v3166
    %v3173 = vcombine.low %v3167, %v3168
    %v3175 = vunpack.c.l.s4 1966171168
    %v3176 = vunpack.c.0.s8 %v3175
    %v3177 = vlaneseq
    %v3178 = vshrl.u32 %v3177, 7
    %v3179 = vsub.s32 %v3176, %v3178
    %v3180 = vrot.slane %v3173, %v3179
    %v3182 = vunpack.c.l.s4 1966171168
    %v3183 = vunpack.c.0.s8 %v3182
    %v3184 = vlaneseq
    %v3185 = vshrl.u32 %v3184, 7
    %v3186 = vsub.s32 %v3183, %v3185
    %v3187 = vrot.slane %v3169, %v3186
    %v3188 = vcombine.low %v3180, %v3187
    %v3190 = vunpack.c.l.s4 1966171168
    %v3191 = vunpack.c.0.s8 %v3190
    %v3192 = vlaneseq
    %v3193 = vshrl.u32 %v3192, 7
    %v3194 = vsub.s32 %v3191, %v3193
    %v3195 = vrot.slane %v3188, %v3194
    %v3197 = vmul.f32 %v2691, %v3195
    %v3199 = vlaneseq
    %v3200 = vshrl.u32 %v3199, 7
    %v3201 = vsub.s32 0, %v3200
    %v3202 = vrot.slane %v3197, %v3201
    %v3203 = vlaneseq
    %v3204 = vshrl.u32 %v3203, 7
    %v3205 = vsub.s32 1, %v3204
    %v3206 = vrot.slane %v3197, %v3205
    %v3207 = vlaneseq
    %v3208 = vshrl.u32 %v3207, 7
    %v3209 = vsub.s32 2, %v3208
    %v3210 = vrot.slane %v3197, %v3209
    %v3214 = vmul.f32 %v3131, %v3202
    %v3215 = vmul.f32 %v3132, %v3206
    %v3216 = vmul.f32 %v3133, %v3210
    %v3220 = vcombine.low %v3214, %v3215
    %v3222 = vunpack.c.l.s4 1966171168
    %v3223 = vunpack.c.0.s8 %v3222
    %v3224 = vlaneseq
    %v3225 = vshrl.u32 %v3224, 7
    %v3226 = vsub.s32 %v3223, %v3225
    %v3227 = vrot.slane %v3220, %v3226
    %v3229 = vunpack.c.l.s4 1966171168
    %v3230 = vunpack.c.0.s8 %v3229
    %v3231 = vlaneseq
    %v3232 = vshrl.u32 %v3231, 7
    %v3233 = vsub.s32 %v3230, %v3232
    %v3234 = vrot.slane %v3216, %v3233
    %v3235 = vcombine.low %v3227, %v3234
    %v3237 = vunpack.c.l.s4 1966171168
    %v3238 = vunpack.c.0.s8 %v3237
    %v3239 = vlaneseq
    %v3240 = vshrl.u32 %v3239, 7
    %v3241 = vsub.s32 %v3238, %v3240
    %v3242 = vrot.slane %v3235, %v3241
    %v3244 = vsub.f32 %v2693, %v3242
    %v3245 = vmul.f32 %v3067, %v3202
    %v3246 = vmul.f32 %v3069, %v3206
    %v3247 = vmul.f32 %v3108, %v3210
    %v3249 = vlaneseq
    %v3250 = vshrl.u32 %v3249, 7
    %v3251 = vsub.s32 0, %v3250
    %v3252 = vrot.slane %v3244, %v3251
    %v3253 = vlaneseq
    %v3254 = vshrl.u32 %v3253, 7
    %v3255 = vsub.s32 1, %v3254
    %v3256 = vrot.slane %v3244, %v3255
    %v3257 = vlaneseq
    %v3258 = vshrl.u32 %v3257, 7
    %v3259 = vsub.s32 2, %v3258
    %v3260 = vrot.slane %v3244, %v3259
    %v3264 = vadd.f32 %v3245, %v3252
    %v3265 = vadd.f32 %v3246, %v3256
    %v3266 = vadd.f32 %v3247, %v3260
    %v3267 = vmax.f32 %v3264, 0.0
    %v3268 = vmax.f32 %v3265, 0.0
    %v3269 = vmax.f32 %v3266, 0.0
    %s3270 = scalar_lea.vmem [#allocation17], 97
    %v3271 = vld [vmem:[%s3270] ss:$8 sm:$0xf]
    %v3272 = vpack.c.bf16 %v3267, %v3267
    %v3273 = vpack.c.bf16 %v3268, %v3268
    %v3274 = vpack.c.bf16 %v3269, %v3269
    %v3275 = vld [vmem:[#allocation16] sm:$0xff]
    %v3276 = vld [vmem:[#allocation16 + $0x8] sm:$0xff]
    %v3277 = vld [vmem:[#allocation16 + $0x10] sm:$0xff]
    %v3278 = vld [vmem:[#allocation16 + $0x18] sm:$0xff]
    %v3279 = vld [vmem:[#allocation16 + $0x20] sm:$0xff]
    %v3280 = vld [vmem:[#allocation16 + $0x28] sm:$0xff]
    %v3281 = vld [vmem:[#allocation16 + $0x30] sm:$0xff]
    %v3282 = vld [vmem:[#allocation16 + $0x38] sm:$0xff]
    %v3283 = vld [vmem:[#allocation16 + $0x40] sm:$0xff]
    %v3284 = vld [vmem:[#allocation16 + $0x48] sm:$0xff]
    %v3285 = vld [vmem:[#allocation16 + $0x50] sm:$0xff]
    %v3286 = vld [vmem:[#allocation16 + $0x58] sm:$0xff]
    %v3287 = vld [vmem:[#allocation16 + $0x60] sm:$0xff]
    %v3288 = vld [vmem:[#allocation16 + $0x68] sm:$0xff]
    %v3289 = vld [vmem:[#allocation16 + $0x70] sm:$0xff]
    %v3290 = vld [vmem:[#allocation16 + $0x78] sm:$0xff]
    %v3291 = vld [vmem:[#allocation16 + $0x80] sm:$0xff]
    %v3292 = vld [vmem:[#allocation16 + $0x88] sm:$0xff]
    %v3293 = vld [vmem:[#allocation16 + $0x90] sm:$0xff]
    %v3294 = vld [vmem:[#allocation16 + $0x98] sm:$0xff]
    %v3295 = vld [vmem:[#allocation16 + $0xa0] sm:$0xff]
    %v3296 = vld [vmem:[#allocation16 + $0xa8] sm:$0xff]
    %v3297 = vld [vmem:[#allocation16 + $0xb0] sm:$0xff]
    %v3298 = vld [vmem:[#allocation16 + $0xb8] sm:$0xff]
    %v3299 = vld [vmem:[#allocation16 + $0xc0] sm:$0xff]
    %v3300 = vld [vmem:[#allocation16 + $0xc8] sm:$0xff]
    %v3301 = vld [vmem:[#allocation16 + $0xd0] sm:$0xff]
    %v3302 = vld [vmem:[#allocation16 + $0xd8] sm:$0xff]
    %v3303 = vld [vmem:[#allocation16 + $0xe0] sm:$0xff]
    %v3304 = vld [vmem:[#allocation16 + $0xe8] sm:$0xff]
    %v3305 = vld [vmem:[#allocation16 + $0xf0] sm:$0xff]
    %v3306 = vld [vmem:[#allocation16 + $0xf8] sm:$0xff]
    %v3307 = vld [vmem:[#allocation16 + $0x100] sm:$0xff]
    %v3308 = vld [vmem:[#allocation16 + $0x108] sm:$0xff]
    %v3309 = vld [vmem:[#allocation16 + $0x110] sm:$0xff]
    %v3310 = vld [vmem:[#allocation16 + $0x118] sm:$0xff]
    %v3311 = vld [vmem:[#allocation16 + $0x120] sm:$0xff]
    %v3312 = vld [vmem:[#allocation16 + $0x128] sm:$0xff]
    %v3313 = vld [vmem:[#allocation16 + $0x130] sm:$0xff]
    %v3314 = vld [vmem:[#allocation16 + $0x138] sm:$0xff]
    %v3315 = vld [vmem:[#allocation16 + $0x140] sm:$0xff]
    %v3316 = vld [vmem:[#allocation16 + $0x148] sm:$0xff]
    %v3317 = vld [vmem:[#allocation16 + $0x150] sm:$0xff]
    %v3318 = vld [vmem:[#allocation16 + $0x158] sm:$0xff]
    %v3319 = vld [vmem:[#allocation16 + $0x160] sm:$0xff]
    %v3320 = vld [vmem:[#allocation16 + $0x168] sm:$0xff]
    %v3321 = vld [vmem:[#allocation16 + $0x170] sm:$0xff]
    %v3322 = vld [vmem:[#allocation16 + $0x178] sm:$0xff]
    %v3323 = vld [vmem:[#allocation16 + $0x180] sm:$0xff]
    %v3324 = vld [vmem:[#allocation16 + $0x188] sm:$0xff]
    %v3325 = vld [vmem:[#allocation16 + $0x190] sm:$0xff]
    %v3326 = vld [vmem:[#allocation16 + $0x198] sm:$0xff]
    %v3327 = vld [vmem:[#allocation16 + $0x1a0] sm:$0xff]
    %v3328 = vld [vmem:[#allocation16 + $0x1a8] sm:$0xff]
    %v3329 = vld [vmem:[#allocation16 + $0x1b0] sm:$0xff]
    %v3330 = vld [vmem:[#allocation16 + $0x1b8] sm:$0xff]
    %v3331 = vld [vmem:[#allocation16 + $0x1c0] sm:$0xff]
    %v3332 = vld [vmem:[#allocation16 + $0x1c8] sm:$0xff]
    %v3333 = vld [vmem:[#allocation16 + $0x1d0] sm:$0xff]
    %v3334 = vld [vmem:[#allocation16 + $0x1d8] sm:$0xff]
    %v3335 = vld [vmem:[#allocation16 + $0x1e0] sm:$0xff]
    %v3336 = vld [vmem:[#allocation16 + $0x1e8] sm:$0xff]
    %v3337 = vld [vmem:[#allocation16 + $0x1f0] sm:$0xff]
    %v3338 = vld [vmem:[#allocation16 + $0x1f8] sm:$0xff]
    %v3339 = vld [vmem:[#allocation16 + $0x200] sm:$0xff]
    %v3340 = vld [vmem:[#allocation16 + $0x208] sm:$0xff]
    %v3341 = vld [vmem:[#allocation16 + $0x210] sm:$0xff]
    %v3342 = vld [vmem:[#allocation16 + $0x218] sm:$0xff]
    %v3343 = vld [vmem:[#allocation16 + $0x220] sm:$0xff]
    %v3344 = vld [vmem:[#allocation16 + $0x228] sm:$0xff]
    %v3345 = vld [vmem:[#allocation16 + $0x230] sm:$0xff]
    %v3346 = vld [vmem:[#allocation16 + $0x238] sm:$0xff]
    %v3347 = vld [vmem:[#allocation16 + $0x240] sm:$0xff]
    %v3348 = vld [vmem:[#allocation16 + $0x248] sm:$0xff]
    %v3349 = vld [vmem:[#allocation16 + $0x250] sm:$0xff]
    %v3350 = vld [vmem:[#allocation16 + $0x258] sm:$0xff]
    %v3351 = vld [vmem:[#allocation16 + $0x260] sm:$0xff]
    %v3352 = vld [vmem:[#allocation16 + $0x268] sm:$0xff]
    %v3353 = vld [vmem:[#allocation16 + $0x270] sm:$0xff]
    %v3354 = vld [vmem:[#allocation16 + $0x278] sm:$0xff]
    %v3355 = vld [vmem:[#allocation16 + $0x280] sm:$0xff]
    %v3356 = vld [vmem:[#allocation16 + $0x288] sm:$0xff]
    %v3357 = vld [vmem:[#allocation16 + $0x290] sm:$0xff]
    %v3358 = vld [vmem:[#allocation16 + $0x298] sm:$0xff]
    %v3359 = vld [vmem:[#allocation16 + $0x2a0] sm:$0xff]
    %v3360 = vld [vmem:[#allocation16 + $0x2a8] sm:$0xff]
    %v3361 = vld [vmem:[#allocation16 + $0x2b0] sm:$0xff]
    %v3362 = vld [vmem:[#allocation16 + $0x2b8] sm:$0xff]
    %v3363 = vld [vmem:[#allocation16 + $0x2c0] sm:$0xff]
    %v3364 = vld [vmem:[#allocation16 + $0x2c8] sm:$0xff]
    %v3365 = vld [vmem:[#allocation16 + $0x2d0] sm:$0xff]
    %v3366 = vld [vmem:[#allocation16 + $0x2d8] sm:$0xff]
    %v3367 = vld [vmem:[#allocation16 + $0x2e0] sm:$0xff]
    %v3368 = vld [vmem:[#allocation16 + $0x2e8] sm:$0xff]
    %v3369 = vld [vmem:[#allocation16 + $0x2f0] sm:$0xff]
    %v3370 = vld [vmem:[#allocation16 + $0x2f8] sm:$0xff]
    %v3372 = vlaneseq
    %v3373 = vshrl.u32 %v3372, 7
    %v3374 = vsub.s32 0, %v3373
    %v3375 = vrot.slane %v3271, %v3374
    %v3376 = vlaneseq
    %v3377 = vshrl.u32 %v3376, 7
    %v3378 = vsub.s32 1, %v3377
    %v3379 = vrot.slane %v3271, %v3378
    %v3380 = vlaneseq
    %v3381 = vshrl.u32 %v3380, 7
    %v3382 = vsub.s32 2, %v3381
    %v3383 = vrot.slane %v3271, %v3382
    %v3384 = vlaneseq
    %v3385 = vshrl.u32 %v3384, 7
    %v3386 = vsub.s32 3, %v3385
    %v3387 = vrot.slane %v3271, %v3386
    %v3488 = vunpack.c.l.b16 %v3275
    %v3489 = vunpack.c.h.b16 %v3275
    %v3490 = vunpack.c.l.b16 %v3276
    %v3491 = vunpack.c.h.b16 %v3276
    %v3492 = vunpack.c.l.b16 %v3277
    %v3493 = vunpack.c.h.b16 %v3277
    %v3494 = vunpack.c.l.b16 %v3278
    %v3495 = vunpack.c.h.b16 %v3278
    %v3496 = vunpack.c.l.b16 %v3279
    %v3497 = vunpack.c.h.b16 %v3279
    %v3498 = vunpack.c.l.b16 %v3280
    %v3499 = vunpack.c.h.b16 %v3280
    %v3500 = vunpack.c.l.b16 %v3281
    %v3501 = vunpack.c.h.b16 %v3281
    %v3502 = vunpack.c.l.b16 %v3282
    %v3503 = vunpack.c.h.b16 %v3282
    %v3504 = vunpack.c.l.b16 %v3283
    %v3505 = vunpack.c.h.b16 %v3283
    %v3506 = vunpack.c.l.b16 %v3284
    %v3507 = vunpack.c.h.b16 %v3284
    %v3508 = vunpack.c.l.b16 %v3285
    %v3509 = vunpack.c.h.b16 %v3285
    %v3510 = vunpack.c.l.b16 %v3286
    %v3511 = vunpack.c.h.b16 %v3286
    %v3512 = vunpack.c.l.b16 %v3287
    %v3513 = vunpack.c.h.b16 %v3287
    %v3514 = vunpack.c.l.b16 %v3288
    %v3515 = vunpack.c.h.b16 %v3288
    %v3516 = vunpack.c.l.b16 %v3289
    %v3517 = vunpack.c.h.b16 %v3289
    %v3518 = vunpack.c.l.b16 %v3290
    %v3519 = vunpack.c.h.b16 %v3290
    %v3520 = vunpack.c.l.b16 %v3291
    %v3521 = vunpack.c.h.b16 %v3291
    %v3522 = vunpack.c.l.b16 %v3292
    %v3523 = vunpack.c.h.b16 %v3292
    %v3524 = vunpack.c.l.b16 %v3293
    %v3525 = vunpack.c.h.b16 %v3293
    %v3526 = vunpack.c.l.b16 %v3294
    %v3527 = vunpack.c.h.b16 %v3294
    %v3528 = vunpack.c.l.b16 %v3295
    %v3529 = vunpack.c.h.b16 %v3295
    %v3530 = vunpack.c.l.b16 %v3296
    %v3531 = vunpack.c.h.b16 %v3296
    %v3532 = vunpack.c.l.b16 %v3297
    %v3533 = vunpack.c.h.b16 %v3297
    %v3534 = vunpack.c.l.b16 %v3298
    %v3535 = vunpack.c.h.b16 %v3298
    %v3536 = vunpack.c.l.b16 %v3299
    %v3537 = vunpack.c.h.b16 %v3299
    %v3538 = vunpack.c.l.b16 %v3300
    %v3539 = vunpack.c.h.b16 %v3300
    %v3540 = vunpack.c.l.b16 %v3301
    %v3541 = vunpack.c.h.b16 %v3301
    %v3542 = vunpack.c.l.b16 %v3302
    %v3543 = vunpack.c.h.b16 %v3302
    %v3544 = vunpack.c.l.b16 %v3303
    %v3545 = vunpack.c.h.b16 %v3303
    %v3546 = vunpack.c.l.b16 %v3304
    %v3547 = vunpack.c.h.b16 %v3304
    %v3548 = vunpack.c.l.b16 %v3305
    %v3549 = vunpack.c.h.b16 %v3305
    %v3550 = vunpack.c.l.b16 %v3306
    %v3551 = vunpack.c.h.b16 %v3306
    %v3552 = vunpack.c.l.b16 %v3307
    %v3553 = vunpack.c.h.b16 %v3307
    %v3554 = vunpack.c.l.b16 %v3308
    %v3555 = vunpack.c.h.b16 %v3308
    %v3556 = vunpack.c.l.b16 %v3309
    %v3557 = vunpack.c.h.b16 %v3309
    %v3558 = vunpack.c.l.b16 %v3310
    %v3559 = vunpack.c.h.b16 %v3310
    %v3560 = vunpack.c.l.b16 %v3311
    %v3561 = vunpack.c.h.b16 %v3311
    %v3562 = vunpack.c.l.b16 %v3312
    %v3563 = vunpack.c.h.b16 %v3312
    %v3564 = vunpack.c.l.b16 %v3313
    %v3565 = vunpack.c.h.b16 %v3313
    %v3566 = vunpack.c.l.b16 %v3314
    %v3567 = vunpack.c.h.b16 %v3314
    %v3568 = vunpack.c.l.b16 %v3315
    %v3569 = vunpack.c.h.b16 %v3315
    %v3570 = vunpack.c.l.b16 %v3316
    %v3571 = vunpack.c.h.b16 %v3316
    %v3572 = vunpack.c.l.b16 %v3317
    %v3573 = vunpack.c.h.b16 %v3317
    %v3574 = vunpack.c.l.b16 %v3318
    %v3575 = vunpack.c.h.b16 %v3318
    %v3576 = vunpack.c.l.b16 %v3319
    %v3577 = vunpack.c.h.b16 %v3319
    %v3578 = vunpack.c.l.b16 %v3320
    %v3579 = vunpack.c.h.b16 %v3320
    %v3580 = vunpack.c.l.b16 %v3321
    %v3581 = vunpack.c.h.b16 %v3321
    %v3582 = vunpack.c.l.b16 %v3322
    %v3583 = vunpack.c.h.b16 %v3322
    %v3584 = vunpack.c.l.b16 %v3323
    %v3585 = vunpack.c.h.b16 %v3323
    %v3586 = vunpack.c.l.b16 %v3324
    %v3587 = vunpack.c.h.b16 %v3324
    %v3588 = vunpack.c.l.b16 %v3325
    %v3589 = vunpack.c.h.b16 %v3325
    %v3590 = vunpack.c.l.b16 %v3326
    %v3591 = vunpack.c.h.b16 %v3326
    %v3592 = vunpack.c.l.b16 %v3327
    %v3593 = vunpack.c.h.b16 %v3327
    %v3594 = vunpack.c.l.b16 %v3328
    %v3595 = vunpack.c.h.b16 %v3328
    %v3596 = vunpack.c.l.b16 %v3329
    %v3597 = vunpack.c.h.b16 %v3329
    %v3598 = vunpack.c.l.b16 %v3330
    %v3599 = vunpack.c.h.b16 %v3330
    %v3600 = vunpack.c.l.b16 %v3331
    %v3601 = vunpack.c.h.b16 %v3331
    %v3602 = vunpack.c.l.b16 %v3332
    %v3603 = vunpack.c.h.b16 %v3332
    %v3604 = vunpack.c.l.b16 %v3333
    %v3605 = vunpack.c.h.b16 %v3333
    %v3606 = vunpack.c.l.b16 %v3334
    %v3607 = vunpack.c.h.b16 %v3334
    %v3608 = vunpack.c.l.b16 %v3335
    %v3609 = vunpack.c.h.b16 %v3335
    %v3610 = vunpack.c.l.b16 %v3336
    %v3611 = vunpack.c.h.b16 %v3336
    %v3612 = vunpack.c.l.b16 %v3337
    %v3613 = vunpack.c.h.b16 %v3337
    %v3614 = vunpack.c.l.b16 %v3338
    %v3615 = vunpack.c.h.b16 %v3338
    %v3616 = vunpack.c.l.b16 %v3339
    %v3617 = vunpack.c.h.b16 %v3339
    %v3618 = vunpack.c.l.b16 %v3340
    %v3619 = vunpack.c.h.b16 %v3340
    %v3620 = vunpack.c.l.b16 %v3341
    %v3621 = vunpack.c.h.b16 %v3341
    %v3622 = vunpack.c.l.b16 %v3342
    %v3623 = vunpack.c.h.b16 %v3342
    %v3624 = vunpack.c.l.b16 %v3343
    %v3625 = vunpack.c.h.b16 %v3343
    %v3626 = vunpack.c.l.b16 %v3344
    %v3627 = vunpack.c.h.b16 %v3344
    %v3628 = vunpack.c.l.b16 %v3345
    %v3629 = vunpack.c.h.b16 %v3345
    %v3630 = vunpack.c.l.b16 %v3346
    %v3631 = vunpack.c.h.b16 %v3346
    %v3632 = vunpack.c.l.b16 %v3347
    %v3633 = vunpack.c.h.b16 %v3347
    %v3634 = vunpack.c.l.b16 %v3348
    %v3635 = vunpack.c.h.b16 %v3348
    %v3636 = vunpack.c.l.b16 %v3349
    %v3637 = vunpack.c.h.b16 %v3349
    %v3638 = vunpack.c.l.b16 %v3350
    %v3639 = vunpack.c.h.b16 %v3350
    %v3640 = vunpack.c.l.b16 %v3351
    %v3641 = vunpack.c.h.b16 %v3351
    %v3642 = vunpack.c.l.b16 %v3352
    %v3643 = vunpack.c.h.b16 %v3352
    %v3644 = vunpack.c.l.b16 %v3353
    %v3645 = vunpack.c.h.b16 %v3353
    %v3646 = vunpack.c.l.b16 %v3354
    %v3647 = vunpack.c.h.b16 %v3354
    %v3648 = vunpack.c.l.b16 %v3355
    %v3649 = vunpack.c.h.b16 %v3355
    %v3650 = vunpack.c.l.b16 %v3356
    %v3651 = vunpack.c.h.b16 %v3356
    %v3652 = vunpack.c.l.b16 %v3357
    %v3653 = vunpack.c.h.b16 %v3357
    %v3654 = vunpack.c.l.b16 %v3358
    %v3655 = vunpack.c.h.b16 %v3358
    %v3656 = vunpack.c.l.b16 %v3359
    %v3657 = vunpack.c.h.b16 %v3359
    %v3658 = vunpack.c.l.b16 %v3360
    %v3659 = vunpack.c.h.b16 %v3360
    %v3660 = vunpack.c.l.b16 %v3361
    %v3661 = vunpack.c.h.b16 %v3361
    %v3662 = vunpack.c.l.b16 %v3362
    %v3663 = vunpack.c.h.b16 %v3362
    %v3664 = vunpack.c.l.b16 %v3363
    %v3665 = vunpack.c.h.b16 %v3363
    %v3666 = vunpack.c.l.b16 %v3364
    %v3667 = vunpack.c.h.b16 %v3364
    %v3668 = vunpack.c.l.b16 %v3365
    %v3669 = vunpack.c.h.b16 %v3365
    %v3670 = vunpack.c.l.b16 %v3366
    %v3671 = vunpack.c.h.b16 %v3366
    %v3672 = vunpack.c.l.b16 %v3367
    %v3673 = vunpack.c.h.b16 %v3367
    %v3674 = vunpack.c.l.b16 %v3368
    %v3675 = vunpack.c.h.b16 %v3368
    %v3676 = vunpack.c.l.b16 %v3369
    %v3677 = vunpack.c.h.b16 %v3369
    %v3678 = vunpack.c.l.b16 %v3370
    %v3679 = vunpack.c.h.b16 %v3370
    %v3680 = vpack.c.b16 %v3492, %v3488
    %v3681 = vpack.c.b16 %v3493, %v3489
    %v3682 = vpack.c.b16 %v3494, %v3490
    %v3683 = vpack.c.b16 %v3495, %v3491
    %v3684 = vpack.c.b16 %v3500, %v3496
    %v3685 = vpack.c.b16 %v3501, %v3497
    %v3686 = vpack.c.b16 %v3502, %v3498
    %v3687 = vpack.c.b16 %v3503, %v3499
    %v3688 = vpack.c.b16 %v3508, %v3504
    %v3689 = vpack.c.b16 %v3509, %v3505
    %v3690 = vpack.c.b16 %v3510, %v3506
    %v3691 = vpack.c.b16 %v3511, %v3507
    %v3692 = vpack.c.b16 %v3516, %v3512
    %v3693 = vpack.c.b16 %v3517, %v3513
    %v3694 = vpack.c.b16 %v3518, %v3514
    %v3695 = vpack.c.b16 %v3519, %v3515
    %v3696 = vpack.c.b16 %v3524, %v3520
    %v3697 = vpack.c.b16 %v3525, %v3521
    %v3698 = vpack.c.b16 %v3526, %v3522
    %v3699 = vpack.c.b16 %v3527, %v3523
    %v3700 = vpack.c.b16 %v3532, %v3528
    %v3701 = vpack.c.b16 %v3533, %v3529
    %v3702 = vpack.c.b16 %v3534, %v3530
    %v3703 = vpack.c.b16 %v3535, %v3531
    %v3704 = vpack.c.b16 %v3540, %v3536
    %v3705 = vpack.c.b16 %v3541, %v3537
    %v3706 = vpack.c.b16 %v3542, %v3538
    %v3707 = vpack.c.b16 %v3543, %v3539
    %v3708 = vpack.c.b16 %v3548, %v3544
    %v3709 = vpack.c.b16 %v3549, %v3545
    %v3710 = vpack.c.b16 %v3550, %v3546
    %v3711 = vpack.c.b16 %v3551, %v3547
    %v3712 = vpack.c.b16 %v3556, %v3552
    %v3713 = vpack.c.b16 %v3557, %v3553
    %v3714 = vpack.c.b16 %v3558, %v3554
    %v3715 = vpack.c.b16 %v3559, %v3555
    %v3716 = vpack.c.b16 %v3564, %v3560
    %v3717 = vpack.c.b16 %v3565, %v3561
    %v3718 = vpack.c.b16 %v3566, %v3562
    %v3719 = vpack.c.b16 %v3567, %v3563
    %v3720 = vpack.c.b16 %v3572, %v3568
    %v3721 = vpack.c.b16 %v3573, %v3569
    %v3722 = vpack.c.b16 %v3574, %v3570
    %v3723 = vpack.c.b16 %v3575, %v3571
    %v3724 = vpack.c.b16 %v3580, %v3576
    %v3725 = vpack.c.b16 %v3581, %v3577
    %v3726 = vpack.c.b16 %v3582, %v3578
    %v3727 = vpack.c.b16 %v3583, %v3579
    %v3728 = vpack.c.b16 %v3588, %v3584
    %v3729 = vpack.c.b16 %v3589, %v3585
    %v3730 = vpack.c.b16 %v3590, %v3586
    %v3731 = vpack.c.b16 %v3591, %v3587
    %v3732 = vpack.c.b16 %v3596, %v3592
    %v3733 = vpack.c.b16 %v3597, %v3593
    %v3734 = vpack.c.b16 %v3598, %v3594
    %v3735 = vpack.c.b16 %v3599, %v3595
    %v3736 = vpack.c.b16 %v3604, %v3600
    %v3737 = vpack.c.b16 %v3605, %v3601
    %v3738 = vpack.c.b16 %v3606, %v3602
    %v3739 = vpack.c.b16 %v3607, %v3603
    %v3740 = vpack.c.b16 %v3612, %v3608
    %v3741 = vpack.c.b16 %v3613, %v3609
    %v3742 = vpack.c.b16 %v3614, %v3610
    %v3743 = vpack.c.b16 %v3615, %v3611
    %v3744 = vpack.c.b16 %v3620, %v3616
    %v3745 = vpack.c.b16 %v3621, %v3617
    %v3746 = vpack.c.b16 %v3622, %v3618
    %v3747 = vpack.c.b16 %v3623, %v3619
    %v3748 = vpack.c.b16 %v3628, %v3624
    %v3749 = vpack.c.b16 %v3629, %v3625
    %v3750 = vpack.c.b16 %v3630, %v3626
    %v3751 = vpack.c.b16 %v3631, %v3627
    %v3752 = vpack.c.b16 %v3636, %v3632
    %v3753 = vpack.c.b16 %v3637, %v3633
    %v3754 = vpack.c.b16 %v3638, %v3634
    %v3755 = vpack.c.b16 %v3639, %v3635
    %v3756 = vpack.c.b16 %v3644, %v3640
    %v3757 = vpack.c.b16 %v3645, %v3641
    %v3758 = vpack.c.b16 %v3646, %v3642
    %v3759 = vpack.c.b16 %v3647, %v3643
    %v3760 = vpack.c.b16 %v3652, %v3648
    %v3761 = vpack.c.b16 %v3653, %v3649
    %v3762 = vpack.c.b16 %v3654, %v3650
    %v3763 = vpack.c.b16 %v3655, %v3651
    %v3764 = vpack.c.b16 %v3660, %v3656
    %v3765 = vpack.c.b16 %v3661, %v3657
    %v3766 = vpack.c.b16 %v3662, %v3658
    %v3767 = vpack.c.b16 %v3663, %v3659
    %v3768 = vpack.c.b16 %v3668, %v3664
    %v3769 = vpack.c.b16 %v3669, %v3665
    %v3770 = vpack.c.b16 %v3670, %v3666
    %v3771 = vpack.c.b16 %v3671, %v3667
    %v3772 = vpack.c.b16 %v3676, %v3672
    %v3773 = vpack.c.b16 %v3677, %v3673
    %v3774 = vpack.c.b16 %v3678, %v3674
    %v3775 = vpack.c.b16 %v3679, %v3675
    %3872 = vmatprep.subr.bf16.mxu0 %v3681
    %3873 = vmatpush1.bf16.msra.mxu0 %v3680
    %3874 = vmatprep.subr.bf16.mxu0 %v3685
    %3875 = vmatpush1.bf16.msra.mxu0 %v3684
    %3876 = vmatprep.subr.bf16.mxu0 %v3689
    %3877 = vmatpush1.bf16.msra.mxu0 %v3688
    %3878 = vmatprep.subr.bf16.mxu0 %v3693
    %3879 = vmatpush1.bf16.msra.mxu0 %v3692
    %3880 = vmatprep.subr.bf16.mxu0 %v3697
    %3881 = vmatpush1.bf16.msra.mxu0 %v3696
    %3882 = vmatprep.subr.bf16.mxu0 %v3701
    %3883 = vmatpush1.bf16.msra.mxu0 %v3700
    %3884 = vmatprep.subr.bf16.mxu0 %v3705
    %3885 = vmatpush1.bf16.msra.mxu0 %v3704
    %3886 = vmatprep.subr.bf16.mxu0 %v3709
    %3887 = vmatpush1.bf16.msra.mxu0 %v3708
    %3888 = vmatprep.subr.bf16.mxu0 %v3713
    %3889 = vmatpush1.bf16.msra.mxu0 %v3712
    %3890 = vmatprep.subr.bf16.mxu0 %v3717
    %3891 = vmatpush1.bf16.msra.mxu0 %v3716
    %3892 = vmatprep.subr.bf16.mxu0 %v3721
    %3893 = vmatpush1.bf16.msra.mxu0 %v3720
    %3894 = vmatprep.subr.bf16.mxu0 %v3725
    %3895 = vmatpush1.bf16.msra.mxu0 %v3724
    %3896 = vmatprep.subr.bf16.mxu0 %v3729
    %3897 = vmatpush1.bf16.msra.mxu0 %v3728
    %3898 = vmatprep.subr.bf16.mxu0 %v3733
    %3899 = vmatpush1.bf16.msra.mxu0 %v3732
    %3900 = vmatprep.subr.bf16.mxu0 %v3737
    %3901 = vmatpush1.bf16.msra.mxu0 %v3736
    %3902 = vmatprep.subr.bf16.mxu0 %v3741
    %3903 = vmatpush1.bf16.msra.mxu0 %v3740
    %3904 = vmatprep.mubr.bf16.mxu0 %v3273
    %3905 = vmatmul.mubr.bf16.gmra.mrb[0].mxu0 %v3272
    %v3906 = vpop.f32.mrb[0].mxu0
    %v3907 = vadd.f32 %v3375, %v3906
    %v3908 = vpop.f32.mrb[0].mxu0
    %v3909 = vadd.f32 %v3379, %v3908
    %v3910 = vpop.f32.mrb[0].mxu0
    %v3911 = vpop.f32.mrb[0].mxu0
    %3912 = vdwg.mxu0
    %3913 = vmatprep.subr.bf16.mxu0 %v3745
    %3914 = vmatpush1.bf16.msra.mxu0 %v3744
    %3915 = vmatprep.subr.bf16.mxu0 %v3749
    %3916 = vmatpush1.bf16.msra.mxu0 %v3748
    %3917 = vmatprep.subr.bf16.mxu0 %v3753
    %3918 = vmatpush1.bf16.msra.mxu0 %v3752
    %3919 = vmatprep.subr.bf16.mxu0 %v3757
    %3920 = vmatpush1.bf16.msra.mxu0 %v3756
    %3921 = vmatprep.subr.bf16.mxu0 %v3761
    %3922 = vmatpush1.bf16.msra.mxu0 %v3760
    %3923 = vmatprep.subr.bf16.mxu0 %v3765
    %3924 = vmatpush1.bf16.msra.mxu0 %v3764
    %3925 = vmatprep.subr.bf16.mxu0 %v3769
    %3926 = vmatpush1.bf16.msra.mxu0 %v3768
    %3927 = vmatprep.subr.bf16.mxu0 %v3773
    %3928 = vmatpush1.bf16.msra.mxu0 %v3772
    %3929 = vmatprep.subr.bf16.mxu0 0
    %3930 = vmatpush1.bf16.msra.mxu0 0
    %3931 = vmatprep.subr.bf16.mxu0 0
    %3932 = vmatpush1.bf16.msra.mxu0 0
    %3933 = vmatprep.subr.bf16.mxu0 0
    %3934 = vmatpush1.bf16.msra.mxu0 0
    %3935 = vmatprep.subr.bf16.mxu0 0
    %3936 = vmatpush1.bf16.msra.mxu0 0
    %3937 = vmatprep.subr.bf16.mxu0 0
    %3938 = vmatpush1.bf16.msra.mxu0 0
    %3939 = vmatprep.subr.bf16.mxu0 0
    %3940 = vmatpush1.bf16.msra.mxu0 0
    %3941 = vmatprep.subr.bf16.mxu0 0
    %3942 = vmatpush1.bf16.msra.mxu0 0
    %3943 = vmatprep.subr.bf16.mxu0 0
    %3944 = vmatpush1.bf16.msra.mxu0 0
    %3945 = vmatprep.mubr.bf16.mxu0 0
    %3946 = vmatmul.mubr.bf16.gmra.mrb[0].mxu0 %v3274
    %v3947 = vpop.f32.mrb[0].mxu0
    %v3948 = vadd.f32 %v3907, %v3947
    %v3949 = vpop.f32.mrb[0].mxu0
    %v3950 = vadd.f32 %v3909, %v3949
    %v3951 = vpop.f32.mrb[0].mxu0
    %v3952 = vpop.f32.mrb[0].mxu0
    %3953 = vdwg.mxu0
    %3954 = vmatprep.subr.bf16.mxu0 %v3683
    %3955 = vmatpush1.bf16.msra.mxu0 %v3682
    %3956 = vmatprep.subr.bf16.mxu0 %v3687
    %3957 = vmatpush1.bf16.msra.mxu0 %v3686
    %3958 = vmatprep.subr.bf16.mxu0 %v3691
    %3959 = vmatpush1.bf16.msra.mxu0 %v3690
    %3960 = vmatprep.subr.bf16.mxu0 %v3695
    %3961 = vmatpush1.bf16.msra.mxu0 %v3694
    %3962 = vmatprep.subr.bf16.mxu0 %v3699
    %3963 = vmatpush1.bf16.msra.mxu0 %v3698
    %3964 = vmatprep.subr.bf16.mxu0 %v3703
    %3965 = vmatpush1.bf16.msra.mxu0 %v3702
    %3966 = vmatprep.subr.bf16.mxu0 %v3707
    %3967 = vmatpush1.bf16.msra.mxu0 %v3706
    %3968 = vmatprep.subr.bf16.mxu0 %v3711
    %3969 = vmatpush1.bf16.msra.mxu0 %v3710
    %3970 = vmatprep.subr.bf16.mxu0 %v3715
    %3971 = vmatpush1.bf16.msra.mxu0 %v3714
    %3972 = vmatprep.subr.bf16.mxu0 %v3719
    %3973 = vmatpush1.bf16.msra.mxu0 %v3718
    %3974 = vmatprep.subr.bf16.mxu0 %v3723
    %3975 = vmatpush1.bf16.msra.mxu0 %v3722
    %3976 = vmatprep.subr.bf16.mxu0 %v3727
    %3977 = vmatpush1.bf16.msra.mxu0 %v3726
    %3978 = vmatprep.subr.bf16.mxu0 %v3731
    %3979 = vmatpush1.bf16.msra.mxu0 %v3730
    %3980 = vmatprep.subr.bf16.mxu0 %v3735
    %3981 = vmatpush1.bf16.msra.mxu0 %v3734
    %3982 = vmatprep.subr.bf16.mxu0 %v3739
    %3983 = vmatpush1.bf16.msra.mxu0 %v3738
    %3984 = vmatprep.subr.bf16.mxu0 %v3743
    %3985 = vmatpush1.bf16.msra.mxu0 %v3742
    %3986 = vmatprep.mubr.bf16.mxu0 %v3273
    %3987 = vmatmul.mubr.bf16.gmra.mrb[0].mxu0 %v3272
    %v3988 = vpop.f32.mrb[0].mxu0
    %v3989 = vadd.f32 %v3383, %v3988
    %v3990 = vpop.f32.mrb[0].mxu0
    %v3991 = vadd.f32 %v3387, %v3990
    %v3992 = vpop.f32.mrb[0].mxu0
    %v3993 = vpop.f32.mrb[0].mxu0
    %3994 = vdwg.mxu0
    %3995 = vmatprep.subr.bf16.mxu0 %v3747
    %3996 = vmatpush1.bf16.msra.mxu0 %v3746
    %3997 = vmatprep.subr.bf16.mxu0 %v3751
    %3998 = vmatpush1.bf16.msra.mxu0 %v3750
    %3999 = vmatprep.subr.bf16.mxu0 %v3755
    %4000 = vmatpush1.bf16.msra.mxu0 %v3754
    %4001 = vmatprep.subr.bf16.mxu0 %v3759
    %4002 = vmatpush1.bf16.msra.mxu0 %v3758
    %4003 = vmatprep.subr.bf16.mxu0 %v3763
    %4004 = vmatpush1.bf16.msra.mxu0 %v3762
    %4005 = vmatprep.subr.bf16.mxu0 %v3767
    %4006 = vmatpush1.bf16.msra.mxu0 %v3766
    %4007 = vmatprep.subr.bf16.mxu0 %v3771
    %4008 = vmatpush1.bf16.msra.mxu0 %v3770
    %4009 = vmatprep.subr.bf16.mxu0 %v3775
    %4010 = vmatpush1.bf16.msra.mxu0 %v3774
    %4011 = vmatprep.subr.bf16.mxu0 0
    %4012 = vmatpush1.bf16.msra.mxu0 0
    %4013 = vmatprep.subr.bf16.mxu0 0
    %4014 = vmatpush1.bf16.msra.mxu0 0
    %4015 = vmatprep.subr.bf16.mxu0 0
    %4016 = vmatpush1.bf16.msra.mxu0 0
    %4017 = vmatprep.subr.bf16.mxu0 0
    %4018 = vmatpush1.bf16.msra.mxu0 0
    %4019 = vmatprep.subr.bf16.mxu0 0
    %4020 = vmatpush1.bf16.msra.mxu0 0
    %4021 = vmatprep.subr.bf16.mxu0 0
    %4022 = vmatpush1.bf16.msra.mxu0 0
    %4023 = vmatprep.subr.bf16.mxu0 0
    %4024 = vmatpush1.bf16.msra.mxu0 0
    %4025 = vmatprep.subr.bf16.mxu0 0
    %4026 = vmatpush1.bf16.msra.mxu0 0
    %4027 = vmatprep.mubr.bf16.mxu0 0
    %4028 = vmatmul.mubr.bf16.gmra.mrb[0].mxu0 %v3274
    %v4029 = vpop.f32.mrb[0].mxu0
    %v4030 = vadd.f32 %v3989, %v4029
    %v4031 = vpop.f32.mrb[0].mxu0
    %v4032 = vadd.f32 %v3991, %v4031
    %v4033 = vpop.f32.mrb[0].mxu0
    %v4034 = vpop.f32.mrb[0].mxu0
    %4035 = vdwg.mxu0
    %4036 = vst [vmem:[#allocation19] sm:$0xff] %v3948
    %4037 = vst [vmem:[#allocation19 + $0x8] sm:$0xff] %v3950
    %4038 = vst [vmem:[#allocation19 + $0x10] sm:$0xff] %v4030
    %4039 = vst [vmem:[#allocation19 + $0x18] sm:$0xff] %v4032
    // Predicated region
    $region94: #{vae_forward.1} parent=1 // pred_check
      _
    $region95: #{vae_forward.1} parent=1 // pred_check_branch
      %4041 = sbr.rel (0) target = $region97
    $region96: #{vae_forward.1} parent=1 // pred_region
      %s4043 = ssub.s32 512, 512
      %4044 = vsyncadd [#allocation4], %s4043
      %s4046 = sshll.u32 [#allocation19], 4
      %s4047 = int_to_ptr.vmem [resolvable:$true] %s4046
      %4049 = dma.vmem_to_hbm [thread:$0]  %s4047, 512, %s13, [#allocation4]
    $region97: #{vae_forward.1} parent=1 // pred_fallthru
      _
    // Predicated region
    $region98: #{vae_forward.1} parent=1 // pred_check
      _
    $region99: #{vae_forward.1} parent=1 // pred_check_branch
      %4051 = sbr.rel (0) target = $region101
    $region100: #{vae_forward.1} parent=1 // pred_region
      %s4053 = ssub.s32 128, 128
      %4054 = vsyncadd [#allocation21], %s4053
      %s4056 = sshll.u32 [#allocation20], 4
      %s4057 = int_to_ptr.vmem [resolvable:$true] %s4056
      %4059 = dma.vmem_to_hbm [thread:$0]  %s4057, 128, %s14, [#allocation21]
    $region101: #{vae_forward.1} parent=1 // pred_fallthru
      _
    // Predicated region
    $region102: #{vae_forward.1} parent=1 // pred_check
      _
    $region103: #{vae_forward.1} parent=1 // pred_check_branch
      %4061 = sbr.rel (0) target = $region105
    $region104: #{vae_forward.1} parent=1 // pred_region
      %s4063 = ssub.s32 128, 128
      %4064 = vsyncadd [#allocation21], %s4063
      %s4066 = sshll.u32 [#allocation22], 4
      %s4067 = int_to_ptr.vmem [resolvable:$true] %s4066
      %4069 = dma.vmem_to_hbm [thread:$0]  %s4067, 128, %s15, [#allocation21]
    $region105: #{vae_forward.1} parent=1 // pred_fallthru
      _
    // Predicated region
    $region106: #{vae_forward.1} parent=1 // pred_check
      _
    $region107: #{vae_forward.1} parent=1 // pred_check_branch
      %4071 = sbr.rel (0) target = $region109
    $region108: #{vae_forward.1} parent=1 // pred_region
      %4072 = dma.done [#allocation4], 512
    $region109: #{vae_forward.1} parent=1 // pred_fallthru
      _
    // Predicated region
    $region110: #{vae_forward.1} parent=1 // pred_check
      _
    $region111: #{vae_forward.1} parent=1 // pred_check_branch
      %4074 = sbr.rel (0) target = $region113
    $region112: #{vae_forward.1} parent=1 // pred_region
      %4075 = dma.done [#allocation21], 128
    $region113: #{vae_forward.1} parent=1 // pred_fallthru
      _
    // Predicated region
    $region114: #{vae_forward.1} parent=1 // pred_check
      _
    $region115: #{vae_forward.1} parent=1 // pred_check_branch
      %4077 = sbr.rel (0) target = $region117
    $region116: #{vae_forward.1} parent=1 // pred_region
      %4078 = dma.done [#allocation21], 128
    $region117: #{vae_forward.1} parent=1 // pred_fallthru
      _
    %4079 = vsyncpa [#allocation3], 1
    %4080 = vsyncpa [#allocation6], 1
    %4081 = vsyncpa [#allocation9], 1
    %4082 = vsyncpa [#allocation12], 1
    %4083 = vsyncpa [#allocation15], 1
    %4084 = vsyncpa [#allocation18], 1
    %4085 = vsyncpa [#allocation4], 1
    %4086 = vsyncpa [#allocation21], 1

</llo_original>
